<compile_context>
chip_gen: v6e
topology: v6e:2x2x1
jax: 0.10.0
libtpu: 0.0.40
codegen_flags: <defaults>
</compile_context>

<pallas_src>
import functools

import jax
import jax.numpy as jnp
import numpy as np
from jax import lax
from jax.experimental import pallas as pl
from jax.experimental.pallas import tpu as pltpu

EPS = 1e-5
BLOCK_M = 256      # rows per grid step for the flat (M, C) stages
LANE = 128         # channel padding granularity


def _rup(x, m):
    return ((x + m - 1) // m) * m


def _pad2d(a, rows, cols):
    return jnp.pad(a, ((0, rows - a.shape[0]), (0, cols - a.shape[1])))


# ----------------------------- Pallas kernels -------------------------------

def _row_mask(m_total, block_m):
    # (1, block_m) f32 mask of valid (non padding) rows of this tile.
    valid = m_total - pl.program_id(0) * block_m
    rows = lax.broadcasted_iota(jnp.int32, (1, block_m), 1)
    return (rows < valid).astype(jnp.float32)


def _emit_stats(ps_ref, z, mask):
    # Per-tile partial BN stats: row 0 = sum, row 1 = sum of squares.
    # Masked column sums ride the MXU (ones/mask-row matmul) instead of a
    # cross-sublane XLU reduction.
    ps_ref[0:1, :] = jnp.dot(mask, z, preferred_element_type=jnp.float32)
    ps_ref[1:2, :] = jnp.dot(mask, z * z, preferred_element_type=jnp.float32)


def _pw_conv_stats_kernel(x_ref, w_ref, z_ref, ps_ref, *, m_total, block_m):
    # 1x1 conv (matmul) tile + partial BN stats.
    z = jnp.dot(x_ref[...], w_ref[...], preferred_element_type=jnp.float32)
    z_ref[...] = z
    _emit_stats(ps_ref, z, _row_mask(m_total, block_m))


def _bn_relu_pw_conv_stats_kernel(z_in_ref, ss_ref, w_ref, z_ref, ps_ref, *,
                                  m_total, block_m):
    # Fused: previous stage's BN+ReLU, then 1x1 conv + partial BN stats.
    y = jnp.maximum(z_in_ref[...] * ss_ref[0:1, :] + ss_ref[1:2, :], 0.0)
    z = jnp.dot(y, w_ref[...], preferred_element_type=jnp.float32)
    z_ref[...] = z
    _emit_stats(ps_ref, z, _row_mask(m_total, block_m))


def _bn_relu_kernel(z_ref, ss_ref, o_ref):
    o_ref[...] = jnp.maximum(z_ref[...] * ss_ref[0:1, :] + ss_ref[1:2, :], 0.0)


def _bn_relu_res_kernel(z_ref, ss_ref, r_ref, o_ref):
    # Fast-SCNN LinearBottleneck: pw2 has ReLU, the residual is added after it.
    o_ref[...] = (jnp.maximum(z_ref[...] * ss_ref[0:1, :] + ss_ref[1:2, :], 0.0)
                  + r_ref[...])


def _dw_s1_conv_stats_kernel(x0_ref, x1_ref, x2_ref, w_ref, z_ref, ps_ref, *,
                             w_out):
    # stride-1 depthwise 3x3: one output row per grid step.  The three kh taps
    # arrive as three row-offset views of the same zero-padded tensor; the
    # three kw taps are shifted in-VMEM slices (no im2col materialized in HBM).
    wts = w_ref[...]                                   # (9, C)
    taps = (x0_ref[...], x1_ref[...], x2_ref[...])     # each (W+2, C)
    wrows = [wts[k:k + 1, :] for k in range(9)]        # hoisted once
    acc = jnp.zeros((w_out, wts.shape[1]), jnp.float32)
    for kh in range(3):
        xk = taps[kh]
        for kw in range(3):
            acc = acc + xk[kw:kw + w_out, :] * wrows[kh * 3 + kw]
    z_ref[...] = acc
    ones = jnp.ones((1, w_out), jnp.float32)
    _emit_stats(ps_ref, acc, ones)


def _dw9_conv_stats_kernel(p_ref, w_ref, z_ref, ps_ref, *, m_total, block_m):
    # Generic-stride depthwise from a host tap stack (9, M, C), tiled over M.
    wts = w_ref[...]                                   # (9, C)
    wrows = [wts[k:k + 1, :] for k in range(9)]
    acc = p_ref[0] * wrows[0]
    for k in range(1, 9):
        acc = acc + p_ref[k] * wrows[k]
    z_ref[...] = acc
    _emit_stats(ps_ref, acc, _row_mask(m_total, block_m))


# ------------------------------ pallas_call wrappers -------------------------

def _row_spec(bm, c):
    return pl.BlockSpec((bm, c), lambda i: (i, 0))


def _parallel(n):
    return pltpu.CompilerParams(dimension_semantics=("parallel",) * n)


def pw_conv_stats(x2d, w, m_total, fused_in_ss=None):
    """1x1 conv (+ optional fused input BN+ReLU) over M tiles.
    Returns (pre-BN conv output, per-tile partial stats)."""
    mp, cin_p = x2d.shape
    cout_p = w.shape[1]
    bm = BLOCK_M
    nt = mp // bm
    out_shape = (jax.ShapeDtypeStruct((mp, cout_p), jnp.float32),
                 jax.ShapeDtypeStruct((nt, 2, cout_p), jnp.float32))
    out_specs = (_row_spec(bm, cout_p),
                 pl.BlockSpec((None, 2, cout_p), lambda i: (i, 0, 0)))
    if fused_in_ss is None:
        kern = functools.partial(_pw_conv_stats_kernel,
                                 m_total=m_total, block_m=bm)
        in_specs = (_row_spec(bm, cin_p),
                    pl.BlockSpec((cin_p, cout_p), lambda i: (0, 0)))
        args = (x2d, w)
    else:
        kern = functools.partial(_bn_relu_pw_conv_stats_kernel,
                                 m_total=m_total, block_m=bm)
        in_specs = (_row_spec(bm, cin_p),
                    pl.BlockSpec((2, cin_p), lambda i: (0, 0)),
                    pl.BlockSpec((cin_p, cout_p), lambda i: (0, 0)))
        args = (x2d, fused_in_ss, w)
    return pl.pallas_call(
        kern, grid=(nt,), in_specs=in_specs, out_specs=out_specs,
        out_shape=out_shape, compiler_params=_parallel(1))(*args)


def bn_relu_apply(z, ss, residual=None):
    mp, cp = z.shape
    bm = BLOCK_M
    nt = mp // bm
    out_shape = jax.ShapeDtypeStruct((mp, cp), jnp.float32)
    if residual is None:
        return pl.pallas_call(
            _bn_relu_kernel, grid=(nt,),
            in_specs=(_row_spec(bm, cp),
                      pl.BlockSpec((2, cp), lambda i: (0, 0))),
            out_specs=_row_spec(bm, cp), out_shape=out_shape,
            compiler_params=_parallel(1))(z, ss)
    return pl.pallas_call(
        _bn_relu_res_kernel, grid=(nt,),
        in_specs=(_row_spec(bm, cp),
                  pl.BlockSpec((2, cp), lambda i: (0, 0)),
                  _row_spec(bm, cp)),
        out_specs=_row_spec(bm, cp), out_shape=out_shape,
        compiler_params=_parallel(1))(z, ss, residual)


def dw_conv_stats_s1(y_nhwc, w9):
    """stride-1 depthwise 3x3 (pad=1) without HBM im2col."""
    n, h, w, cp = y_nhwc.shape
    yp = jnp.pad(y_nhwc, ((0, 0), (1, 1), (1, 1), (0, 0)))  # zero pad == conv pad
    wp2 = w + 2

    def tap_spec(kh):
        return pl.BlockSpec((None, None, wp2, cp),
                            lambda b, r, kh=kh: (b, r + kh, 0, 0))

    kern = functools.partial(_dw_s1_conv_stats_kernel, w_out=w)
    z, ps = pl.pallas_call(
        kern, grid=(n, h),
        in_specs=(tap_spec(0), tap_spec(1), tap_spec(2),
                  pl.BlockSpec((9, cp), lambda b, r: (0, 0))),
        out_specs=(pl.BlockSpec((None, None, w, cp),
                                lambda b, r: (b, r, 0, 0)),
                   pl.BlockSpec((None, None, 2, cp),
                                lambda b, r: (b, r, 0, 0))),
        out_shape=(jax.ShapeDtypeStruct((n, h, w, cp), jnp.float32),
                   jax.ShapeDtypeStruct((n, h, 2, cp), jnp.float32)),
        compiler_params=_parallel(2),
    )(yp, yp, yp, w9)
    return z.reshape(n * h * w, cp), ps


def dw_conv_stats_general(y_nhwc, w9, stride):
    """generic-stride depthwise via a host tap stack (still tiled/pipelined)."""
    n, h, w, cp = y_nhwc.shape
    ho = (h + 2 - 3) // stride + 1
    wo = (w + 2 - 3) // stride + 1
    mo = n * ho * wo
    yp = jnp.pad(y_nhwc, ((0, 0), (1, 1), (1, 1), (0, 0)))
    taps = []
    for kh in range(3):
        for kw in range(3):
            t = lax.slice(
                yp, (0, kh, kw, 0),
                (n, kh + (ho - 1) * stride + 1, kw + (wo - 1) * stride + 1, cp),
                (1, stride, stride, 1))
            taps.append(t.reshape(mo, cp))
    bm = BLOCK_M
    mo_p = _rup(mo, bm)
    pstack = jnp.pad(jnp.stack(taps, axis=0), ((0, 0), (0, mo_p - mo), (0, 0)))
    nt = mo_p // bm
    kern = functools.partial(_dw9_conv_stats_kernel, m_total=mo, block_m=bm)
    z, ps = pl.pallas_call(
        kern, grid=(nt,),
        in_specs=(pl.BlockSpec((9, bm, cp), lambda i: (0, i, 0)),
                  pl.BlockSpec((9, cp), lambda i: (0, 0))),
        out_specs=(_row_spec(bm, cp),
                   pl.BlockSpec((None, 2, cp), lambda i: (i, 0, 0))),
        out_shape=(jax.ShapeDtypeStruct((mo_p, cp), jnp.float32),
                   jax.ShapeDtypeStruct((nt, 2, cp), jnp.float32)),
        compiler_params=_parallel(1),
    )(pstack, w9)
    return z, ps


def _finalize_stats(pstats, gamma_p, beta_p, count):
    # Tiny O(C) reduction + BN folding into per-channel (scale, shift);
    # parameter-sized work, intentionally outside the kernels.
    s = pstats.reshape(-1, 2, pstats.shape[-1]).sum(axis=0)      # (2, C)
    mu = s[0:1, :] / count
    var = s[1:2, :] / count - mu * mu                            # biased var
    scale = gamma_p * lax.rsqrt(var + EPS)
    shift = beta_p - mu * scale
    return jnp.concatenate([scale, shift], axis=0)               # (2, C)


# ------------------------------ module forward -------------------------------

def init_linear_bottleneck_params(key, in_ch, out_ch, t):
    k1, k2, k3 = jax.random.split(key, 3)
    cm = in_ch * t
    return dict(
        w_pw1=0.1 * jax.random.normal(k1, (in_ch, cm), jnp.float32),
        g_pw1=jnp.ones((1, cm), jnp.float32),     # PyTorch BN init: weight=1
        b_pw1=jnp.zeros((1, cm), jnp.float32),    # PyTorch BN init: bias=0
        w_dw=0.1 * jax.random.normal(k2, (3, 3, cm), jnp.float32),
        g_dw=jnp.ones((1, cm), jnp.float32),
        b_dw=jnp.zeros((1, cm), jnp.float32),
        w_pw2=0.1 * jax.random.normal(k3, (cm, out_ch), jnp.float32),
        g_pw2=jnp.ones((1, out_ch), jnp.float32),
        b_pw2=jnp.zeros((1, out_ch), jnp.float32),
    )


@functools.partial(jax.jit, static_argnums=(2, 3, 4))
def linear_bottleneck(x_nchw, params, stride, in_ch, out_ch):
    use_res = (stride == 1) and (in_ch == out_ch)
    n, c, h, w = x_nchw.shape
    cm = params["w_pw1"].shape[1]

    cin_p = _rup(c, LANE)
    cm_p = _rup(cm, LANE)
    cout_p = _rup(out_ch, LANE)

    # NCHW -> channels-last, channel + row padded.
    x_nhwc = jnp.transpose(x_nchw, (0, 2, 3, 1))
    m_in = n * h * w
    mp_in = _rup(m_in, BLOCK_M)
    x2d = _pad2d(x_nhwc.reshape(m_in, c), mp_in, cin_p)

    # Padded parameters.  gamma/beta pad with zeros so padded channels stay
    # exactly 0 through every stage (isolated from real channels & residual).
    w1 = _pad2d(params["w_pw1"], cin_p, cm_p)
    g1 = _pad2d(params["g_pw1"], 1, cm_p)
    b1 = _pad2d(params["b_pw1"], 1, cm_p)
    w_dw = _pad2d(params["w_dw"].reshape(9, cm), 9, cm_p)
    g2 = _pad2d(params["g_dw"], 1, cm_p)
    b2 = _pad2d(params["b_dw"], 1, cm_p)
    w2 = _pad2d(params["w_pw2"], cm_p, cout_p)
    g3 = _pad2d(params["g_pw2"], 1, cout_p)
    b3 = _pad2d(params["b_pw2"], 1, cout_p)

    # ---- stage 1: pw1 conv + stats, then BN+ReLU apply ----------------------
    z1, ps1 = pw_conv_stats(x2d, w1, m_in)
    ss1 = _finalize_stats(ps1, g1, b1, m_in)
    y1 = bn_relu_apply(z1, ss1)
    y1_nhwc = y1[:m_in].reshape(n, h, w, cm_p)

    # ---- stage 2: depthwise 3x3 conv + stats --------------------------------
    if stride == 1:
        z2, ps2 = dw_conv_stats_s1(y1_nhwc, w_dw)
        ho, wo = h, w
    else:
        z2, ps2 = dw_conv_stats_general(y1_nhwc, w_dw, stride)
        ho = (h + 2 - 3) // stride + 1
        wo = (w + 2 - 3) // stride + 1
    m_out = n * ho * wo
    mp_out = _rup(m_out, BLOCK_M)
    z2 = _pad2d(z2, mp_out, cm_p)
    ss2 = _finalize_stats(ps2, g2, b2, m_out)

    # ---- stage 3: (BN2+ReLU fused) pw2 conv + stats, then BN3+ReLU(+res) ----
    z3, ps3 = pw_conv_stats(z2, w2, m_out, fused_in_ss=ss2)
    ss3 = _finalize_stats(ps3, g3, b3, m_out)
    res = x2d if use_res else None     # stride==1 & cin==cout => same shapes
    out = bn_relu_apply(z3, ss3, residual=res)

    out = out[:m_out, :out_ch].reshape(n, ho, wo, out_ch)
    return jnp.transpose(out, (0, 3, 1, 2))          # back to NCHW


# ------------------------- pure-JAX reference check --------------------------

def reference_linear_bottleneck(x, params, stride, in_ch, out_ch):
    def bn_relu(z, g, b):
        mu = jnp.mean(z, axis=(0, 2, 3), keepdims=True)
        var = jnp.mean((z - mu) ** 2, axis=(0, 2, 3), keepdims=True)
        y = (z - mu) * lax.rsqrt(var + EPS) * g.reshape(1, -1, 1, 1) \
            + b.reshape(1, -1, 1, 1)
        return jnp.maximum(y, 0.0)

    z = jnp.einsum("nchw,co->nohw", x, params["w_pw1"],
                   precision=lax.Precision.HIGHEST)
    z = bn_relu(z, params["g_pw1"], params["b_pw1"])
    cm = z.shape[1]
    w_dw = jnp.transpose(params["w_dw"], (2, 0, 1))[:, None, :, :]  # (C,1,3,3)
    z = lax.conv_general_dilated(
        z, w_dw, (stride, stride), ((1, 1), (1, 1)),
        feature_group_count=cm,
        dimension_numbers=("NCHW", "OIHW", "NCHW"),
        precision=lax.Precision.HIGHEST)
    z = bn_relu(z, params["g_dw"], params["b_dw"])
    z = jnp.einsum("nchw,co->nohw", z, params["w_pw2"],
                   precision=lax.Precision.HIGHEST)
    z = bn_relu(z, params["g_pw2"], params["b_pw2"])
    if stride == 1 and in_ch == out_ch:
        z = z + x
    return z


if __name__ == "__main__":
    key = jax.random.PRNGKey(0)
    kx, kp, kp2 = jax.random.split(key, 3)

    # LinearBottleneck(in_channels=4, out_channels=4, stride=1, t=6) + residual
    in_ch, out_ch, stride, t = 4, 4, 1, 6
    x = jax.random.normal(kx, (2, in_ch, 16, 16), jnp.float32)   # NCHW
    params = init_linear_bottleneck_params(kp, in_ch, out_ch, t)
    out = jax.block_until_ready(
        linear_bottleneck(x, params, stride, in_ch, out_ch))
    ref = jax.block_until_ready(
        reference_linear_bottleneck(x, params, stride, in_ch, out_ch))
    np.testing.assert_allclose(np.asarray(out), np.asarray(ref),
                               rtol=1e-2, atol=1e-2)

    # stride-2 / channel-changing variant (exercises the general dw path).
    in_ch2, out_ch2, stride2, t2 = 4, 8, 2, 6
    params2 = init_linear_bottleneck_params(kp2, in_ch2, out_ch2, t2)
    out2 = jax.block_until_ready(
        linear_bottleneck(x, params2, stride2, in_ch2, out_ch2))
    ref2 = jax.block_until_ready(
        reference_linear_bottleneck(x, params2, stride2, in_ch2, out_ch2))
    np.testing.assert_allclose(np.asarray(out2), np.asarray(ref2),
                               rtol=1e-2, atol=1e-2)

    print("KERNEL_OK")
</pallas_src>

<mosaic_0001>
module attributes {stable_mosaic.version = 11 : i64} {
  func.func @_pw_conv_stats_kernel(%arg0: i32, %arg1: memref<256x128xf32, #tpu.memory_space<vmem>>, %arg2: memref<128x128xf32, #tpu.memory_space<vmem>>, %arg3: memref<256x128xf32, #tpu.memory_space<vmem>>, %arg4: memref<1x2x128xf32, #tpu.memory_space<vmem>>) attributes {dimension_semantics = [#tpu.dimension_semantics<parallel>], iteration_bounds = array<i64: 2>, scalar_prefetch = 0 : i64, scratch_operands = 0 : i64, tpu.core_type = #tpu.core_type<tc>, window_params = [{transform_indices = @transform_0, window_bounds = array<i64: 256, 128>}, {pipeline_mode = #tpu.pipeline_mode<synchronous>, transform_indices = @transform_1, window_bounds = array<i64: 128, 128>}, {transform_indices = @transform_2, window_bounds = array<i64: 256, 128>}, {transform_indices = @transform_3, window_bounds = array<i64: 1, 2, 128>}]} {
    %c0 = arith.constant 0 : index
    %c0_0 = arith.constant 0 : index
    %0 = vector.load %arg1[%c0, %c0_0] : memref<256x128xf32, #tpu.memory_space<vmem>>, vector<256x128xf32>
    %c0_1 = arith.constant 0 : index
    %c0_2 = arith.constant 0 : index
    %1 = vector.load %arg2[%c0_1, %c0_2] : memref<128x128xf32, #tpu.memory_space<vmem>>, vector<128x128xf32>
    %cst = arith.constant dense<0.000000e+00> : vector<256x128xf32>
    %2 = tpu.matmul %0, %1, %cst {dimension_numbers = #tpu.dot_dimension_numbers<[1], [0], [0], [1], [0, 0, 1, 1], [], []>} : vector<256x128xf32>, vector<128x128xf32>, vector<256x128xf32> -> vector<256x128xf32>
    %c0_3 = arith.constant 0 : index
    %c0_4 = arith.constant 0 : index
    %3 = vector.load %arg3[%c0_3, %c0_4] : memref<256x128xf32, #tpu.memory_space<vmem>>, vector<256x128xf32>
    tpu.vector_store %arg3[%c0_3, %c0_4], %2 {strides = array<i32>} : memref<256x128xf32, #tpu.memory_space<vmem>>, vector<256x128xf32>,
    %c256_i32 = arith.constant 256 : i32
    %4 = arith.muli %arg0, %c256_i32 : i32
    %c512_i32 = arith.constant 512 : i32
    %5 = arith.subi %c512_i32, %4 : i32
    %6 = tpu.iota {dimensions = array<i32: 1>} : vector<1x256xi32>
    %7 = vector.broadcast %5 : i32 to vector<1x256xi32>
    %8 = arith.cmpi slt, %6, %7 : vector<1x256xi32>
    %9 = arith.extui %8 : vector<1x256xi1> to vector<1x256xi32>
    %10 = arith.sitofp %9 : vector<1x256xi32> to vector<1x256xf32>
    %cst_5 = arith.constant dense<0.000000e+00> : vector<1x128xf32>
    %11 = tpu.matmul %10, %2, %cst_5 {dimension_numbers = #tpu.dot_dimension_numbers<[1], [0], [0], [1], [0, 0, 1, 1], [], []>} : vector<1x256xf32>, vector<256x128xf32>, vector<1x128xf32> -> vector<1x128xf32>
    %c0_6 = arith.constant 0 : index
    %c0_7 = arith.constant 0 : index
    %c0_8 = arith.constant 0 : index
    %12 = vector.load %arg4[%c0_6, %c0_7, %c0_8] : memref<1x2x128xf32, #tpu.memory_space<vmem>>, vector<1x1x128xf32>
    %13 = vector.shape_cast %12 : vector<1x1x128xf32> to vector<1x128xf32>
    %14 = vector.shape_cast %11 : vector<1x128xf32> to vector<1x1x128xf32>
    tpu.vector_store %arg4[%c0_6, %c0_7, %c0_8], %14 {strides = array<i32>} : memref<1x2x128xf32, #tpu.memory_space<vmem>>, vector<1x1x128xf32>,
    %15 = arith.mulf %2, %2 : vector<256x128xf32>
    %cst_9 = arith.constant dense<0.000000e+00> : vector<1x128xf32>
    %16 = tpu.matmul %10, %15, %cst_9 {dimension_numbers = #tpu.dot_dimension_numbers<[1], [0], [0], [1], [0, 0, 1, 1], [], []>} : vector<1x256xf32>, vector<256x128xf32>, vector<1x128xf32> -> vector<1x128xf32>
    %c0_10 = arith.constant 0 : index
    %c1 = arith.constant 1 : index
    %c0_11 = arith.constant 0 : index
    %17 = vector.load %arg4[%c0_10, %c1, %c0_11] : memref<1x2x128xf32, #tpu.memory_space<vmem>>, vector<1x1x128xf32>
    %18 = vector.shape_cast %17 : vector<1x1x128xf32> to vector<1x128xf32>
    %19 = vector.shape_cast %16 : vector<1x128xf32> to vector<1x1x128xf32>
    tpu.vector_store %arg4[%c0_10, %c1, %c0_11], %19 {strides = array<i32>} : memref<1x2x128xf32, #tpu.memory_space<vmem>>, vector<1x1x128xf32>,
    return
  }
  func.func @transform_0(%arg0: i32) -> (i32, i32) {
    %c0_i32 = arith.constant 0 : i32
    %c0_i32_0 = arith.constant 0 : i32
    return %arg0, %c0_i32 : i32, i32
  }
  func.func @transform_1(%arg0: i32) -> (i32, i32) {
    %c0_i32 = arith.constant 0 : i32
    %c0_i32_0 = arith.constant 0 : i32
    %c0_i32_1 = arith.constant 0 : i32
    return %c0_i32, %c0_i32_0 : i32, i32
  }
  func.func @transform_2(%arg0: i32) -> (i32, i32) {
    %c0_i32 = arith.constant 0 : i32
    %c0_i32_0 = arith.constant 0 : i32
    return %arg0, %c0_i32 : i32, i32
  }
  func.func @transform_3(%arg0: i32) -> (i32, i32, i32) {
    %c0_i32 = arith.constant 0 : i32
    %c0_i32_0 = arith.constant 0 : i32
    %c0_i32_1 = arith.constant 0 : i32
    return %arg0, %c0_i32, %c0_i32_0 : i32, i32, i32
  }
}

module attributes {stable_mosaic.version = 11 : i64} {
  func.func @_bn_relu_kernel(%arg0: i32, %arg1: memref<256x128xf32, #tpu.memory_space<vmem>>, %arg2: memref<2x128xf32, #tpu.memory_space<vmem>>, %arg3: memref<256x128xf32, #tpu.memory_space<vmem>>) attributes {dimension_semantics = [#tpu.dimension_semantics<parallel>], iteration_bounds = array<i64: 2>, scalar_prefetch = 0 : i64, scratch_operands = 0 : i64, tpu.core_type = #tpu.core_type<tc>, window_params = [{transform_indices = @transform_0, window_bounds = array<i64: 256, 128>}, {pipeline_mode = #tpu.pipeline_mode<synchronous>, transform_indices = @transform_1, window_bounds = array<i64: 2, 128>}, {transform_indices = @transform_2, window_bounds = array<i64: 256, 128>}]} {
    %c0 = arith.constant 0 : index
    %c0_0 = arith.constant 0 : index
    %0 = vector.load %arg1[%c0, %c0_0] : memref<256x128xf32, #tpu.memory_space<vmem>>, vector<256x128xf32>
    %c0_1 = arith.constant 0 : index
    %c0_2 = arith.constant 0 : index
    %1 = vector.load %arg2[%c0_1, %c0_2] : memref<2x128xf32, #tpu.memory_space<vmem>>, vector<1x128xf32>
    %2 = vector.broadcast %1 : vector<1x128xf32> to vector<256x128xf32>
    %3 = arith.mulf %0, %2 : vector<256x128xf32>
    %c1 = arith.constant 1 : index
    %c0_3 = arith.constant 0 : index
    %4 = vector.load %arg2[%c1, %c0_3] : memref<2x128xf32, #tpu.memory_space<vmem>>, vector<1x128xf32>
    %5 = vector.broadcast %4 : vector<1x128xf32> to vector<256x128xf32>
    %6 = arith.addf %3, %5 : vector<256x128xf32>
    %cst = arith.constant 0.000000e+00 : f32
    %7 = vector.broadcast %cst : f32 to vector<256x128xf32>
    %8 = arith.maximumf %6, %7 : vector<256x128xf32>
    %c0_4 = arith.constant 0 : index
    %c0_5 = arith.constant 0 : index
    %9 = vector.load %arg3[%c0_4, %c0_5] : memref<256x128xf32, #tpu.memory_space<vmem>>, vector<256x128xf32>
    tpu.vector_store %arg3[%c0_4, %c0_5], %8 {strides = array<i32>} : memref<256x128xf32, #tpu.memory_space<vmem>>, vector<256x128xf32>,
    return
  }
  func.func @transform_0(%arg0: i32) -> (i32, i32) {
    %c0_i32 = arith.constant 0 : i32
    %c0_i32_0 = arith.constant 0 : i32
    return %arg0, %c0_i32 : i32, i32
  }
  func.func @transform_1(%arg0: i32) -> (i32, i32) {
    %c0_i32 = arith.constant 0 : i32
    %c0_i32_0 = arith.constant 0 : i32
    %c0_i32_1 = arith.constant 0 : i32
    return %c0_i32, %c0_i32_0 : i32, i32
  }
  func.func @transform_2(%arg0: i32) -> (i32, i32) {
    %c0_i32 = arith.constant 0 : i32
    %c0_i32_0 = arith.constant 0 : i32
    return %arg0, %c0_i32 : i32, i32
  }
}

module attributes {stable_mosaic.version = 11 : i64} {
  func.func @_dw_s1_conv_stats_kernel(%arg0: i32, %arg1: i32, %arg2: memref<1x1x18x128xf32, #tpu.memory_space<vmem>>, %arg3: memref<1x1x18x128xf32, #tpu.memory_space<vmem>>, %arg4: memref<1x1x18x128xf32, #tpu.memory_space<vmem>>, %arg5: memref<9x128xf32, #tpu.memory_space<vmem>>, %arg6: memref<1x1x16x128xf32, #tpu.memory_space<vmem>>, %arg7: memref<1x1x2x128xf32, #tpu.memory_space<vmem>>) attributes {dimension_semantics = [#tpu.dimension_semantics<parallel>, #tpu.dimension_semantics<parallel>], iteration_bounds = array<i64: 2, 16>, scalar_prefetch = 0 : i64, scratch_operands = 0 : i64, tpu.core_type = #tpu.core_type<tc>, window_params = [{transform_indices = @transform_0, window_bounds = array<i64: 1, 1, 18, 128>}, {transform_indices = @transform_1, window_bounds = array<i64: 1, 1, 18, 128>}, {transform_indices = @transform_2, window_bounds = array<i64: 1, 1, 18, 128>}, {pipeline_mode = #tpu.pipeline_mode<synchronous>, transform_indices = @transform_3, window_bounds = array<i64: 9, 128>}, {transform_indices = @transform_4, window_bounds = array<i64: 1, 1, 16, 128>}, {transform_indices = @transform_5, window_bounds = array<i64: 1, 1, 2, 128>}]} {
    %c0 = arith.constant 0 : index
    %c0_0 = arith.constant 0 : index
    %0 = vector.load %arg5[%c0, %c0_0] : memref<9x128xf32, #tpu.memory_space<vmem>>, vector<9x128xf32>
    %c0_1 = arith.constant 0 : index
    %c0_2 = arith.constant 0 : index
    %c0_3 = arith.constant 0 : index
    %c0_4 = arith.constant 0 : index
    %1 = vector.load %arg2[%c0_1, %c0_2, %c0_3, %c0_4] : memref<1x1x18x128xf32, #tpu.memory_space<vmem>>, vector<1x1x18x128xf32>
    %2 = vector.shape_cast %1 : vector<1x1x18x128xf32> to vector<18x128xf32>
    %c0_5 = arith.constant 0 : index
    %c0_6 = arith.constant 0 : index
    %c0_7 = arith.constant 0 : index
    %c0_8 = arith.constant 0 : index
    %3 = vector.load %arg3[%c0_5, %c0_6, %c0_7, %c0_8] : memref<1x1x18x128xf32, #tpu.memory_space<vmem>>, vector<1x1x18x128xf32>
    %4 = vector.shape_cast %3 : vector<1x1x18x128xf32> to vector<18x128xf32>
    %c0_9 = arith.constant 0 : index
    %c0_10 = arith.constant 0 : index
    %c0_11 = arith.constant 0 : index
    %c0_12 = arith.constant 0 : index
    %5 = vector.load %arg4[%c0_9, %c0_10, %c0_11, %c0_12] : memref<1x1x18x128xf32, #tpu.memory_space<vmem>>, vector<1x1x18x128xf32>
    %6 = vector.shape_cast %5 : vector<1x1x18x128xf32> to vector<18x128xf32>
    %7 = vector.extract_strided_slice %0 {offsets = [0, 0], sizes = [1, 128], strides = [1, 1]} : vector<9x128xf32> to vector<1x128xf32>
    %8 = vector.extract_strided_slice %0 {offsets = [1, 0], sizes = [1, 128], strides = [1, 1]} : vector<9x128xf32> to vector<1x128xf32>
    %9 = vector.extract_strided_slice %0 {offsets = [2, 0], sizes = [1, 128], strides = [1, 1]} : vector<9x128xf32> to vector<1x128xf32>
    %10 = vector.extract_strided_slice %0 {offsets = [3, 0], sizes = [1, 128], strides = [1, 1]} : vector<9x128xf32> to vector<1x128xf32>
    %11 = vector.extract_strided_slice %0 {offsets = [4, 0], sizes = [1, 128], strides = [1, 1]} : vector<9x128xf32> to vector<1x128xf32>
    %12 = vector.extract_strided_slice %0 {offsets = [5, 0], sizes = [1, 128], strides = [1, 1]} : vector<9x128xf32> to vector<1x128xf32>
    %13 = vector.extract_strided_slice %0 {offsets = [6, 0], sizes = [1, 128], strides = [1, 1]} : vector<9x128xf32> to vector<1x128xf32>
    %14 = vector.extract_strided_slice %0 {offsets = [7, 0], sizes = [1, 128], strides = [1, 1]} : vector<9x128xf32> to vector<1x128xf32>
    %15 = vector.extract_strided_slice %0 {offsets = [8, 0], sizes = [1, 128], strides = [1, 1]} : vector<9x128xf32> to vector<1x128xf32>
    %cst = arith.constant 0.000000e+00 : f32
    %16 = vector.broadcast %cst : f32 to vector<16x128xf32>
    %17 = vector.extract_strided_slice %2 {offsets = [0, 0], sizes = [16, 128], strides = [1, 1]} : vector<18x128xf32> to vector<16x128xf32>
    %18 = vector.broadcast %7 : vector<1x128xf32> to vector<16x128xf32>
    %19 = arith.mulf %17, %18 : vector<16x128xf32>
    %20 = arith.addf %16, %19 : vector<16x128xf32>
    %21 = vector.extract_strided_slice %2 {offsets = [1, 0], sizes = [16, 128], strides = [1, 1]} : vector<18x128xf32> to vector<16x128xf32>
    %22 = vector.broadcast %8 : vector<1x128xf32> to vector<16x128xf32>
    %23 = arith.mulf %21, %22 : vector<16x128xf32>
    %24 = arith.addf %20, %23 : vector<16x128xf32>
    %25 = vector.extract_strided_slice %2 {offsets = [2, 0], sizes = [16, 128], strides = [1, 1]} : vector<18x128xf32> to vector<16x128xf32>
    %26 = vector.broadcast %9 : vector<1x128xf32> to vector<16x128xf32>
    %27 = arith.mulf %25, %26 : vector<16x128xf32>
    %28 = arith.addf %24, %27 : vector<16x128xf32>
    %29 = vector.extract_strided_slice %4 {offsets = [0, 0], sizes = [16, 128], strides = [1, 1]} : vector<18x128xf32> to vector<16x128xf32>
    %30 = vector.broadcast %10 : vector<1x128xf32> to vector<16x128xf32>
    %31 = arith.mulf %29, %30 : vector<16x128xf32>
    %32 = arith.addf %28, %31 : vector<16x128xf32>
    %33 = vector.extract_strided_slice %4 {offsets = [1, 0], sizes = [16, 128], strides = [1, 1]} : vector<18x128xf32> to vector<16x128xf32>
    %34 = vector.broadcast %11 : vector<1x128xf32> to vector<16x128xf32>
    %35 = arith.mulf %33, %34 : vector<16x128xf32>
    %36 = arith.addf %32, %35 : vector<16x128xf32>
    %37 = vector.extract_strided_slice %4 {offsets = [2, 0], sizes = [16, 128], strides = [1, 1]} : vector<18x128xf32> to vector<16x128xf32>
    %38 = vector.broadcast %12 : vector<1x128xf32> to vector<16x128xf32>
    %39 = arith.mulf %37, %38 : vector<16x128xf32>
    %40 = arith.addf %36, %39 : vector<16x128xf32>
    %41 = vector.extract_strided_slice %6 {offsets = [0, 0], sizes = [16, 128], strides = [1, 1]} : vector<18x128xf32> to vector<16x128xf32>
    %42 = vector.broadcast %13 : vector<1x128xf32> to vector<16x128xf32>
    %43 = arith.mulf %41, %42 : vector<16x128xf32>
    %44 = arith.addf %40, %43 : vector<16x128xf32>
    %45 = vector.extract_strided_slice %6 {offsets = [1, 0], sizes = [16, 128], strides = [1, 1]} : vector<18x128xf32> to vector<16x128xf32>
    %46 = vector.broadcast %14 : vector<1x128xf32> to vector<16x128xf32>
    %47 = arith.mulf %45, %46 : vector<16x128xf32>
    %48 = arith.addf %44, %47 : vector<16x128xf32>
    %49 = vector.extract_strided_slice %6 {offsets = [2, 0], sizes = [16, 128], strides = [1, 1]} : vector<18x128xf32> to vector<16x128xf32>
    %50 = vector.broadcast %15 : vector<1x128xf32> to vector<16x128xf32>
    %51 = arith.mulf %49, %50 : vector<16x128xf32>
    %52 = arith.addf %48, %51 : vector<16x128xf32>
    %c0_13 = arith.constant 0 : index
    %c0_14 = arith.constant 0 : index
    %c0_15 = arith.constant 0 : index
    %c0_16 = arith.constant 0 : index
    %53 = vector.load %arg6[%c0_13, %c0_14, %c0_15, %c0_16] : memref<1x1x16x128xf32, #tpu.memory_space<vmem>>, vector<1x1x16x128xf32>
    %54 = vector.shape_cast %53 : vector<1x1x16x128xf32> to vector<16x128xf32>
    %55 = vector.shape_cast %52 : vector<16x128xf32> to vector<1x1x16x128xf32>
    tpu.vector_store %arg6[%c0_13, %c0_14, %c0_15, %c0_16], %55 {strides = array<i32>} : memref<1x1x16x128xf32, #tpu.memory_space<vmem>>, vector<1x1x16x128xf32>,
    %cst_17 = arith.constant 1.000000e+00 : f32
    %56 = vector.broadcast %cst_17 : f32 to vector<1x16xf32>
    %cst_18 = arith.constant dense<0.000000e+00> : vector<1x128xf32>
    %57 = tpu.matmul %56, %52, %cst_18 {dimension_numbers = #tpu.dot_dimension_numbers<[1], [0], [0], [1], [0, 0, 1, 1], [], []>} : vector<1x16xf32>, vector<16x128xf32>, vector<1x128xf32> -> vector<1x128xf32>
    %c0_19 = arith.constant 0 : index
    %c0_20 = arith.constant 0 : index
    %c0_21 = arith.constant 0 : index
    %c0_22 = arith.constant 0 : index
    %58 = vector.load %arg7[%c0_19, %c0_20, %c0_21, %c0_22] : memref<1x1x2x128xf32, #tpu.memory_space<vmem>>, vector<1x1x1x128xf32>
    %59 = vector.shape_cast %58 : vector<1x1x1x128xf32> to vector<1x128xf32>
    %60 = vector.shape_cast %57 : vector<1x128xf32> to vector<1x1x1x128xf32>
    tpu.vector_store %arg7[%c0_19, %c0_20, %c0_21, %c0_22], %60 {strides = array<i32>} : memref<1x1x2x128xf32, #tpu.memory_space<vmem>>, vector<1x1x1x128xf32>,
    %61 = arith.mulf %52, %52 : vector<16x128xf32>
    %cst_23 = arith.constant dense<0.000000e+00> : vector<1x128xf32>
    %62 = tpu.matmul %56, %61, %cst_23 {dimension_numbers = #tpu.dot_dimension_numbers<[1], [0], [0], [1], [0, 0, 1, 1], [], []>} : vector<1x16xf32>, vector<16x128xf32>, vector<1x128xf32> -> vector<1x128xf32>
    %c0_24 = arith.constant 0 : index
    %c0_25 = arith.constant 0 : index
    %c1 = arith.constant 1 : index
    %c0_26 = arith.constant 0 : index
    %63 = vector.load %arg7[%c0_24, %c0_25, %c1, %c0_26] : memref<1x1x2x128xf32, #tpu.memory_space<vmem>>, vector<1x1x1x128xf32>
    %64 = vector.shape_cast %63 : vector<1x1x1x128xf32> to vector<1x128xf32>
    %65 = vector.shape_cast %62 : vector<1x128xf32> to vector<1x1x1x128xf32>
    tpu.vector_store %arg7[%c0_24, %c0_25, %c1, %c0_26], %65 {strides = array<i32>} : memref<1x1x2x128xf32, #tpu.memory_space<vmem>>, vector<1x1x1x128xf32>,
    return
  }
  func.func @transform_0(%arg0: i32, %arg1: i32) -> (i32, i32, i32, i32) {
    %c0_i32 = arith.constant 0 : i32
    %0 = arith.addi %arg1, %c0_i32 : i32
    %c0_i32_0 = arith.constant 0 : i32
    %c0_i32_1 = arith.constant 0 : i32
    %c0_i32_2 = arith.constant 0 : i32
    return %arg0, %0, %c0_i32_0, %c0_i32_1 : i32, i32, i32, i32
  }
  func.func @transform_1(%arg0: i32, %arg1: i32) -> (i32, i32, i32, i32) {
    %c1_i32 = arith.constant 1 : i32
    %0 = arith.addi %arg1, %c1_i32 : i32
    %c0_i32 = arith.constant 0 : i32
    %c0_i32_0 = arith.constant 0 : i32
    %c0_i32_1 = arith.constant 0 : i32
    return %arg0, %0, %c0_i32, %c0_i32_0 : i32, i32, i32, i32
  }
  func.func @transform_2(%arg0: i32, %arg1: i32) -> (i32, i32, i32, i32) {
    %c2_i32 = arith.constant 2 : i32
    %0 = arith.addi %arg1, %c2_i32 : i32
    %c0_i32 = arith.constant 0 : i32
    %c0_i32_0 = arith.constant 0 : i32
    %c0_i32_1 = arith.constant 0 : i32
    return %arg0, %0, %c0_i32, %c0_i32_0 : i32, i32, i32, i32
  }
  func.func @transform_3(%arg0: i32, %arg1: i32) -> (i32, i32) {
    %c0_i32 = arith.constant 0 : i32
    %c0_i32_0 = arith.constant 0 : i32
    %c0_i32_1 = arith.constant 0 : i32
    return %c0_i32, %c0_i32_0 : i32, i32
  }
  func.func @transform_4(%arg0: i32, %arg1: i32) -> (i32, i32, i32, i32) {
    %c0_i32 = arith.constant 0 : i32
    %c0_i32_0 = arith.constant 0 : i32
    %c0_i32_1 = arith.constant 0 : i32
    return %arg0, %arg1, %c0_i32, %c0_i32_0 : i32, i32, i32, i32
  }
  func.func @transform_5(%arg0: i32, %arg1: i32) -> (i32, i32, i32, i32) {
    %c0_i32 = arith.constant 0 : i32
    %c0_i32_0 = arith.constant 0 : i32
    %c0_i32_1 = arith.constant 0 : i32
    return %arg0, %arg1, %c0_i32, %c0_i32_0 : i32, i32, i32, i32
  }
}

module attributes {stable_mosaic.version = 11 : i64} {
  func.func @_bn_relu_pw_conv_stats_kernel(%arg0: i32, %arg1: memref<256x128xf32, #tpu.memory_space<vmem>>, %arg2: memref<2x128xf32, #tpu.memory_space<vmem>>, %arg3: memref<128x128xf32, #tpu.memory_space<vmem>>, %arg4: memref<256x128xf32, #tpu.memory_space<vmem>>, %arg5: memref<1x2x128xf32, #tpu.memory_space<vmem>>) attributes {dimension_semantics = [#tpu.dimension_semantics<parallel>], iteration_bounds = array<i64: 2>, scalar_prefetch = 0 : i64, scratch_operands = 0 : i64, tpu.core_type = #tpu.core_type<tc>, window_params = [{transform_indices = @transform_0, window_bounds = array<i64: 256, 128>}, {pipeline_mode = #tpu.pipeline_mode<synchronous>, transform_indices = @transform_1, window_bounds = array<i64: 2, 128>}, {pipeline_mode = #tpu.pipeline_mode<synchronous>, transform_indices = @transform_2, window_bounds = array<i64: 128, 128>}, {transform_indices = @transform_3, window_bounds = array<i64: 256, 128>}, {transform_indices = @transform_4, window_bounds = array<i64: 1, 2, 128>}]} {
    %c0 = arith.constant 0 : index
    %c0_0 = arith.constant 0 : index
    %0 = vector.load %arg1[%c0, %c0_0] : memref<256x128xf32, #tpu.memory_space<vmem>>, vector<256x128xf32>
    %c0_1 = arith.constant 0 : index
    %c0_2 = arith.constant 0 : index
    %1 = vector.load %arg2[%c0_1, %c0_2] : memref<2x128xf32, #tpu.memory_space<vmem>>, vector<1x128xf32>
    %2 = vector.broadcast %1 : vector<1x128xf32> to vector<256x128xf32>
    %3 = arith.mulf %0, %2 : vector<256x128xf32>
    %c1 = arith.constant 1 : index
    %c0_3 = arith.constant 0 : index
    %4 = vector.load %arg2[%c1, %c0_3] : memref<2x128xf32, #tpu.memory_space<vmem>>, vector<1x128xf32>
    %5 = vector.broadcast %4 : vector<1x128xf32> to vector<256x128xf32>
    %6 = arith.addf %3, %5 : vector<256x128xf32>
    %cst = arith.constant 0.000000e+00 : f32
    %7 = vector.broadcast %cst : f32 to vector<256x128xf32>
    %8 = arith.maximumf %6, %7 : vector<256x128xf32>
    %c0_4 = arith.constant 0 : index
    %c0_5 = arith.constant 0 : index
    %9 = vector.load %arg3[%c0_4, %c0_5] : memref<128x128xf32, #tpu.memory_space<vmem>>, vector<128x128xf32>
    %cst_6 = arith.constant dense<0.000000e+00> : vector<256x128xf32>
    %10 = tpu.matmul %8, %9, %cst_6 {dimension_numbers = #tpu.dot_dimension_numbers<[1], [0], [0], [1], [0, 0, 1, 1], [], []>} : vector<256x128xf32>, vector<128x128xf32>, vector<256x128xf32> -> vector<256x128xf32>
    %c0_7 = arith.constant 0 : index
    %c0_8 = arith.constant 0 : index
    %11 = vector.load %arg4[%c0_7, %c0_8] : memref<256x128xf32, #tpu.memory_space<vmem>>, vector<256x128xf32>
    tpu.vector_store %arg4[%c0_7, %c0_8], %10 {strides = array<i32>} : memref<256x128xf32, #tpu.memory_space<vmem>>, vector<256x128xf32>,
    %c256_i32 = arith.constant 256 : i32
    %12 = arith.muli %arg0, %c256_i32 : i32
    %c512_i32 = arith.constant 512 : i32
    %13 = arith.subi %c512_i32, %12 : i32
    %14 = tpu.iota {dimensions = array<i32: 1>} : vector<1x256xi32>
    %15 = vector.broadcast %13 : i32 to vector<1x256xi32>
    %16 = arith.cmpi slt, %14, %15 : vector<1x256xi32>
    %17 = arith.extui %16 : vector<1x256xi1> to vector<1x256xi32>
    %18 = arith.sitofp %17 : vector<1x256xi32> to vector<1x256xf32>
    %cst_9 = arith.constant dense<0.000000e+00> : vector<1x128xf32>
    %19 = tpu.matmul %18, %10, %cst_9 {dimension_numbers = #tpu.dot_dimension_numbers<[1], [0], [0], [1], [0, 0, 1, 1], [], []>} : vector<1x256xf32>, vector<256x128xf32>, vector<1x128xf32> -> vector<1x128xf32>
    %c0_10 = arith.constant 0 : index
    %c0_11 = arith.constant 0 : index
    %c0_12 = arith.constant 0 : index
    %20 = vector.load %arg5[%c0_10, %c0_11, %c0_12] : memref<1x2x128xf32, #tpu.memory_space<vmem>>, vector<1x1x128xf32>
    %21 = vector.shape_cast %20 : vector<1x1x128xf32> to vector<1x128xf32>
    %22 = vector.shape_cast %19 : vector<1x128xf32> to vector<1x1x128xf32>
    tpu.vector_store %arg5[%c0_10, %c0_11, %c0_12], %22 {strides = array<i32>} : memref<1x2x128xf32, #tpu.memory_space<vmem>>, vector<1x1x128xf32>,
    %23 = arith.mulf %10, %10 : vector<256x128xf32>
    %cst_13 = arith.constant dense<0.000000e+00> : vector<1x128xf32>
    %24 = tpu.matmul %18, %23, %cst_13 {dimension_numbers = #tpu.dot_dimension_numbers<[1], [0], [0], [1], [0, 0, 1, 1], [], []>} : vector<1x256xf32>, vector<256x128xf32>, vector<1x128xf32> -> vector<1x128xf32>
    %c0_14 = arith.constant 0 : index
    %c1_15 = arith.constant 1 : index
    %c0_16 = arith.constant 0 : index
    %25 = vector.load %arg5[%c0_14, %c1_15, %c0_16] : memref<1x2x128xf32, #tpu.memory_space<vmem>>, vector<1x1x128xf32>
    %26 = vector.shape_cast %25 : vector<1x1x128xf32> to vector<1x128xf32>
    %27 = vector.shape_cast %24 : vector<1x128xf32> to vector<1x1x128xf32>
    tpu.vector_store %arg5[%c0_14, %c1_15, %c0_16], %27 {strides = array<i32>} : memref<1x2x128xf32, #tpu.memory_space<vmem>>, vector<1x1x128xf32>,
    return
  }
  func.func @transform_0(%arg0: i32) -> (i32, i32) {
    %c0_i32 = arith.constant 0 : i32
    %c0_i32_0 = arith.constant 0 : i32
    return %arg0, %c0_i32 : i32, i32
  }
  func.func @transform_1(%arg0: i32) -> (i32, i32) {
    %c0_i32 = arith.constant 0 : i32
    %c0_i32_0 = arith.constant 0 : i32
    %c0_i32_1 = arith.constant 0 : i32
    return %c0_i32, %c0_i32_0 : i32, i32
  }
  func.func @transform_2(%arg0: i32) -> (i32, i32) {
    %c0_i32 = arith.constant 0 : i32
    %c0_i32_0 = arith.constant 0 : i32
    %c0_i32_1 = arith.constant 0 : i32
    return %c0_i32, %c0_i32_0 : i32, i32
  }
  func.func @transform_3(%arg0: i32) -> (i32, i32) {
    %c0_i32 = arith.constant 0 : i32
    %c0_i32_0 = arith.constant 0 : i32
    return %arg0, %c0_i32 : i32, i32
  }
  func.func @transform_4(%arg0: i32) -> (i32, i32, i32) {
    %c0_i32 = arith.constant 0 : i32
    %c0_i32_0 = arith.constant 0 : i32
    %c0_i32_1 = arith.constant 0 : i32
    return %arg0, %c0_i32, %c0_i32_0 : i32, i32, i32
  }
}

module attributes {stable_mosaic.version = 11 : i64} {
  func.func @_bn_relu_res_kernel(%arg0: i32, %arg1: memref<256x128xf32, #tpu.memory_space<vmem>>, %arg2: memref<2x128xf32, #tpu.memory_space<vmem>>, %arg3: memref<256x128xf32, #tpu.memory_space<vmem>>, %arg4: memref<256x128xf32, #tpu.memory_space<vmem>>) attributes {dimension_semantics = [#tpu.dimension_semantics<parallel>], iteration_bounds = array<i64: 2>, scalar_prefetch = 0 : i64, scratch_operands = 0 : i64, tpu.core_type = #tpu.core_type<tc>, window_params = [{transform_indices = @transform_0, window_bounds = array<i64: 256, 128>}, {pipeline_mode = #tpu.pipeline_mode<synchronous>, transform_indices = @transform_1, window_bounds = array<i64: 2, 128>}, {transform_indices = @transform_2, window_bounds = array<i64: 256, 128>}, {transform_indices = @transform_3, window_bounds = array<i64: 256, 128>}]} {
    %c0 = arith.constant 0 : index
    %c0_0 = arith.constant 0 : index
    %0 = vector.load %arg1[%c0, %c0_0] : memref<256x128xf32, #tpu.memory_space<vmem>>, vector<256x128xf32>
    %c0_1 = arith.constant 0 : index
    %c0_2 = arith.constant 0 : index
    %1 = vector.load %arg2[%c0_1, %c0_2] : memref<2x128xf32, #tpu.memory_space<vmem>>, vector<1x128xf32>
    %2 = vector.broadcast %1 : vector<1x128xf32> to vector<256x128xf32>
    %3 = arith.mulf %0, %2 : vector<256x128xf32>
    %c1 = arith.constant 1 : index
    %c0_3 = arith.constant 0 : index
    %4 = vector.load %arg2[%c1, %c0_3] : memref<2x128xf32, #tpu.memory_space<vmem>>, vector<1x128xf32>
    %5 = vector.broadcast %4 : vector<1x128xf32> to vector<256x128xf32>
    %6 = arith.addf %3, %5 : vector<256x128xf32>
    %cst = arith.constant 0.000000e+00 : f32
    %7 = vector.broadcast %cst : f32 to vector<256x128xf32>
    %8 = arith.maximumf %6, %7 : vector<256x128xf32>
    %c0_4 = arith.constant 0 : index
    %c0_5 = arith.constant 0 : index
    %9 = vector.load %arg3[%c0_4, %c0_5] : memref<256x128xf32, #tpu.memory_space<vmem>>, vector<256x128xf32>
    %10 = arith.addf %8, %9 : vector<256x128xf32>
    %c0_6 = arith.constant 0 : index
    %c0_7 = arith.constant 0 : index
    %11 = vector.load %arg4[%c0_6, %c0_7] : memref<256x128xf32, #tpu.memory_space<vmem>>, vector<256x128xf32>
    tpu.vector_store %arg4[%c0_6, %c0_7], %10 {strides = array<i32>} : memref<256x128xf32, #tpu.memory_space<vmem>>, vector<256x128xf32>,
    return
  }
  func.func @transform_0(%arg0: i32) -> (i32, i32) {
    %c0_i32 = arith.constant 0 : i32
    %c0_i32_0 = arith.constant 0 : i32
    return %arg0, %c0_i32 : i32, i32
  }
  func.func @transform_1(%arg0: i32) -> (i32, i32) {
    %c0_i32 = arith.constant 0 : i32
    %c0_i32_0 = arith.constant 0 : i32
    %c0_i32_1 = arith.constant 0 : i32
    return %c0_i32, %c0_i32_0 : i32, i32
  }
  func.func @transform_2(%arg0: i32) -> (i32, i32) {
    %c0_i32 = arith.constant 0 : i32
    %c0_i32_0 = arith.constant 0 : i32
    return %arg0, %c0_i32 : i32, i32
  }
  func.func @transform_3(%arg0: i32) -> (i32, i32) {
    %c0_i32 = arith.constant 0 : i32
    %c0_i32_0 = arith.constant 0 : i32
    return %arg0, %c0_i32 : i32, i32
  }
}

</mosaic_0001>

<llo_original>
// kernel: linear_bottleneck.6
$region0: #{linear_bottleneck.6}
  #allocation0 [shape = 'u32[]', space=smem, size = 0x4, offset = 0x4, fixed_abs, tag = 'smem constant byte address 0x4 - core index']
  #allocation1 [shape = 'u32[144,128]{1,0:T(1,128)}', space=vmem, size = 0x12000, scoped, tag = 'internal scratch']
  %s0 = inlined_call_operand.vmem [shape: f32[512,128], index: 0, kind: input, shape index: {}]
  %s1 = inlined_call_operand.vmem [shape: f32[2,128], index: 1, kind: input, shape index: {}]
  %s2 = inlined_call_operand.vmem [shape: f32[512,128], index: 2, kind: output, shape index: {}]
  %s3 = sld [smem:[#allocation0]]
  $region41: #{linear_bottleneck.6} parent=0
    _
  %s5 = ssub.s32 1, %s3
  %s6 = scalar_select 0, %s5, %s3
  loop: start=0, step=1, limit=4
  $region2: #{linear_bottleneck.6} parent=0 // loop_pre_header
    _
  $region3: #{linear_bottleneck.6} parent=0 // loop_header
    %s8 = sphi 0, %s12
    %p9 = scmp.ge.s32.totalorder %s8, 4
    %s18 = sphi 0, %s20
    %s21 = sphi 0, %s18
    %s22 = sphi 0, %s21
    %s38 = sphi 0, %s22
    %s42 = sphi 0, %s42
    %s44 = sphi 0, %s42
    %s45 = sphi 0, %s44
    %s59 = sphi 0, %s45
    %s65 = sphi 0, %s67
    %s68 = sphi 0, %s65
    %s69 = sphi 0, %s68
    %s85 = sphi 0, %s69
  $region4: #{linear_bottleneck.6} parent=0 // loop_header_branch
    %11 = sbr.rel (%p9) target = $region8
  $region5: #{linear_bottleneck.6} parent=0 // loop_body
    %s13 = ssub.s32 %s8, 1
    %s14 = ssub.s32 %s8, 2
    %s15 = sadd.s32 %s8, 1
    %s16 = ssub.s32 %s8, %s15
    %p17 = scmp.eq.s32.totalorder %s16, 0
    %s19 = sadd.s32 %s18, 1
    %s20 = scalar_select %p17, %s18, %s19
    %p23 = pneg %p17
    %p24 = scmp.eq.s32.totalorder %s8, 1
    %p25 = por %p23, %p24
    %p26 = scmp.ne.s32.totalorder %s18, %s21
    %p27 = scmp.eq.s32.totalorder %s8, 0
    %p28 = por %p26, %p27
    %p29 = scmp.ne.s32.totalorder %s18, %s21
    %p30 = scmp.eq.s32.totalorder %s13, 1
    %p31 = por %p29, %p30
    %p32 = scmp.ne.s32.totalorder %s21, %s22
    %p33 = scmp.eq.s32.totalorder %s13, 0
    %p34 = por %p32, %p33
    %p35 = scmp.ne.s32.totalorder %s21, %s22
    %p36 = scmp.eq.s32.totalorder %s14, 1
    %p37 = por %p35, %p36
    %p39 = scmp.ne.s32.totalorder %s22, %s38
    %p40 = scmp.eq.s32.totalorder %s14, 0
    %p41 = por %p39, %p40
    %s43 = sadd.s32 %s42, 1
    %p46 = scmp.eq.s32.totalorder %s8, 1
    %p47 = scmp.ne.s32.totalorder %s42, %s44
    %p48 = scmp.eq.s32.totalorder %s8, 0
    %p49 = por %p47, %p48
    %p50 = scmp.ne.s32.totalorder %s42, %s44
    %p51 = scmp.eq.s32.totalorder %s13, 1
    %p52 = por %p50, %p51
    %p53 = scmp.ne.s32.totalorder %s44, %s45
    %p54 = scmp.eq.s32.totalorder %s13, 0
    %p55 = por %p53, %p54
    %p56 = scmp.ne.s32.totalorder %s44, %s45
    %p57 = scmp.eq.s32.totalorder %s14, 1
    %p58 = por %p56, %p57
    %p60 = scmp.ne.s32.totalorder %s45, %s59
    %p61 = scmp.eq.s32.totalorder %s14, 0
    %p62 = por %p60, %p61
    %s63 = ssub.s32 %s8, %s15
    %p64 = scmp.eq.s32.totalorder %s63, 0
    %s66 = sadd.s32 %s65, 1
    %s67 = scalar_select %p64, %s65, %s66
    %p70 = pneg %p64
    %p71 = scmp.eq.s32.totalorder %s8, 1
    %p72 = por %p70, %p71
    %p73 = scmp.ne.s32.totalorder %s65, %s68
    %p74 = scmp.eq.s32.totalorder %s8, 0
    %p75 = por %p73, %p74
    %p76 = scmp.ne.s32.totalorder %s65, %s68
    %p77 = scmp.eq.s32.totalorder %s13, 1
    %p78 = por %p76, %p77
    %p79 = scmp.ne.s32.totalorder %s68, %s69
    %p80 = scmp.eq.s32.totalorder %s13, 0
    %p81 = por %p79, %p80
    %p82 = scmp.ne.s32.totalorder %s68, %s69
    %p83 = scmp.eq.s32.totalorder %s14, 1
    %p84 = por %p82, %p83
    %p86 = scmp.ne.s32.totalorder %s69, %s85
    %p87 = scmp.eq.s32.totalorder %s14, 0
    %p88 = por %p86, %p87
    %p89 = scmp.le.s32.totalorder 1, %s8
    %p90 = scmp.lt.s32.totalorder %s8, 3
    %p91 = pnand %p89, %p90
    %p92 = pneg %p91
    // Predicated region
    $region9: #{linear_bottleneck.6} parent=5 // pred_check
      _
    $region10: #{linear_bottleneck.6} parent=5 // pred_check_branch
      %94 = sbr.rel (%p91) target = $region12
    $region11: #{linear_bottleneck.6} parent=5 // pred_region
      %s95 = ssub.s32 %s8, 1
      // Predicated region
      $region13: #{linear_bottleneck.6} parent=11 // pred_check
        %p96 = pneg %p55
      $region14: #{linear_bottleneck.6} parent=11 // pred_check_branch
        %98 = sbr.rel (%p96) target = $region16
      $region15: #{linear_bottleneck.6} parent=11 // pred_region
        _
      $region16: #{linear_bottleneck.6} parent=11 // pred_fallthru
        _
    $region12: #{linear_bottleneck.6} parent=5 // pred_fallthru
      _
    %p99 = scmp.lt.s32.totalorder %s8, 2
    // Predicated region
    $region17: #{linear_bottleneck.6} parent=5 // pred_check
      %p100 = pneg %p99
    $region18: #{linear_bottleneck.6} parent=5 // pred_check_branch
      %102 = sbr.rel (%p100) target = $region20
    $region19: #{linear_bottleneck.6} parent=5 // pred_region
      // Predicated region
      $region21: #{linear_bottleneck.6} parent=19 // pred_check
        %p103 = pneg %p28
      $region22: #{linear_bottleneck.6} parent=19 // pred_check_branch
        %105 = sbr.rel (%p103) target = $region24
      $region23: #{linear_bottleneck.6} parent=19 // pred_region
        %s106 = smul.u32 32, %s8
        %p107 = scmp.lt.s32.totalorder %s106, 63
        %s108 = scalar_select %p107, %s106, 63
        %s109 = smul.addr %s108, 8
        %s110 = scalar_lea.vmem %s0, %s109
        %s111 = smul.u32 32, %s8
      $region24: #{linear_bottleneck.6} parent=19 // pred_fallthru
        _
    $region20: #{linear_bottleneck.6} parent=5 // pred_fallthru
      _
    %p112 = scmp.le.s32.totalorder 1, %s8
    %p113 = scmp.lt.s32.totalorder %s8, 3
    %p114 = pnand %p112, %p113
    %p115 = pneg %p114
    // Predicated region
    $region25: #{linear_bottleneck.6} parent=5 // pred_check
      _
    $region26: #{linear_bottleneck.6} parent=5 // pred_check_branch
      %117 = sbr.rel (%p114) target = $region28
    $region27: #{linear_bottleneck.6} parent=5 // pred_region
      %s118 = ssub.s32 %s8, 1
      %s119 = smul.u32 32, %s13
      %p120 = scmp.lt.s32.totalorder %s119, 63
      %s121 = scalar_select %p120, %s119, 63
      %s122 = smul.addr %s121, 8
      %s123 = scalar_lea.vmem %s0, %s122
      %p124 = pneg %p34
      %p125 = pneg %p31
      %p126 = pneg %p55
      %p127 = pneg %p52
      %p128 = pneg %p81
      %p129 = pneg %p78
      %s130 = smul.u32 32, %s13
      %p131 = scmp.lt.s32.totalorder %s130, 63
      %s132 = scalar_select %p131, %s130, 63
      %s133 = smul.addr %s132, 8
      %s134 = scalar_lea.vmem %s2, %s133
      %s135 = smul.u32 32, %s13
      %p136 = scmp.lt.s32.totalorder %s135, 63
      %s137 = scalar_select %p136, %s135, 63
      %s138 = smul.addr %s137, 8
      %s139 = scalar_lea.vmem %s0, %s138
      %s140 = smul.u32 32, %s13
      %s141 = smul.u32 32, %s13
      %p142 = scmp.lt.s32.totalorder %s141, 63
      %s143 = scalar_select %p142, %s141, 63
      %s144 = smul.addr %s143, 8
      %s145 = scalar_lea.vmem %s2, %s144
      %s146 = smul.u32 32, %s13
      %v147 = vld [vmem:[%s139] sm:$0xff]
      %v148 = vld [vmem:[%s139 + $0x8] sm:$0xff]
      %v149 = vld [vmem:[%s139 + $0x10] sm:$0xff]
      %v150 = vld [vmem:[%s139 + $0x18] sm:$0xff]
      %v151 = vld [vmem:[%s139 + $0x20] sm:$0xff]
      %v152 = vld [vmem:[%s139 + $0x28] sm:$0xff]
      %v153 = vld [vmem:[%s139 + $0x30] sm:$0xff]
      %v154 = vld [vmem:[%s139 + $0x38] sm:$0xff]
      %v155 = vld [vmem:[%s139 + $0x40] sm:$0xff]
      %v156 = vld [vmem:[%s139 + $0x48] sm:$0xff]
      %v157 = vld [vmem:[%s139 + $0x50] sm:$0xff]
      %v158 = vld [vmem:[%s139 + $0x58] sm:$0xff]
      %v159 = vld [vmem:[%s139 + $0x60] sm:$0xff]
      %v160 = vld [vmem:[%s139 + $0x68] sm:$0xff]
      %v161 = vld [vmem:[%s139 + $0x70] sm:$0xff]
      %v162 = vld [vmem:[%s139 + $0x78] sm:$0xff]
      %v163 = vld [vmem:[%s139 + $0x80] sm:$0xff]
      %v164 = vld [vmem:[%s139 + $0x88] sm:$0xff]
      %v165 = vld [vmem:[%s139 + $0x90] sm:$0xff]
      %v166 = vld [vmem:[%s139 + $0x98] sm:$0xff]
      %v167 = vld [vmem:[%s139 + $0xa0] sm:$0xff]
      %v168 = vld [vmem:[%s139 + $0xa8] sm:$0xff]
      %v169 = vld [vmem:[%s139 + $0xb0] sm:$0xff]
      %v170 = vld [vmem:[%s139 + $0xb8] sm:$0xff]
      %v171 = vld [vmem:[%s139 + $0xc0] sm:$0xff]
      %v172 = vld [vmem:[%s139 + $0xc8] sm:$0xff]
      %v173 = vld [vmem:[%s139 + $0xd0] sm:$0xff]
      %v174 = vld [vmem:[%s139 + $0xd8] sm:$0xff]
      %v175 = vld [vmem:[%s139 + $0xe0] sm:$0xff]
      %v176 = vld [vmem:[%s139 + $0xe8] sm:$0xff]
      %v177 = vld [vmem:[%s139 + $0xf0] sm:$0xff]
      %v178 = vld [vmem:[%s139 + $0xf8] sm:$0xff]
      %v179 = vld [vmem:[%s1] sm:$0x1]
      %v180 = vlaneseq
      %v181 = vshrl.u32 %v180, 7
      %v182 = vsub.s32 0, %v181
      %v183 = vrot.slane %v179, %v182
      %v184 = vmul.f32 %v147, %v183
      %v185 = vmul.f32 %v148, %v183
      %v186 = vmul.f32 %v149, %v183
      %v187 = vmul.f32 %v150, %v183
      %v188 = vmul.f32 %v151, %v183
      %v189 = vmul.f32 %v152, %v183
      %v190 = vmul.f32 %v153, %v183
      %v191 = vmul.f32 %v154, %v183
      %v192 = vmul.f32 %v155, %v183
      %v193 = vmul.f32 %v156, %v183
      %v194 = vmul.f32 %v157, %v183
      %v195 = vmul.f32 %v158, %v183
      %v196 = vmul.f32 %v159, %v183
      %v197 = vmul.f32 %v160, %v183
      %v198 = vmul.f32 %v161, %v183
      %v199 = vmul.f32 %v162, %v183
      %v200 = vmul.f32 %v163, %v183
      %v201 = vmul.f32 %v164, %v183
      %v202 = vmul.f32 %v165, %v183
      %v203 = vmul.f32 %v166, %v183
      %v204 = vmul.f32 %v167, %v183
      %v205 = vmul.f32 %v168, %v183
      %v206 = vmul.f32 %v169, %v183
      %v207 = vmul.f32 %v170, %v183
      %v208 = vmul.f32 %v171, %v183
      %v209 = vmul.f32 %v172, %v183
      %v210 = vmul.f32 %v173, %v183
      %v211 = vmul.f32 %v174, %v183
      %v212 = vmul.f32 %v175, %v183
      %v213 = vmul.f32 %v176, %v183
      %v214 = vmul.f32 %v177, %v183
      %v215 = vmul.f32 %v178, %v183
      %v216 = vld [vmem:[%s1 + $0x1] sm:$0x1]
      %v217 = vlaneseq
      %v218 = vshrl.u32 %v217, 7
      %v219 = vsub.s32 0, %v218
      %v220 = vrot.slane %v216, %v219
      %v221 = vadd.f32 %v184, %v220
      %v222 = vadd.f32 %v185, %v220
      %v223 = vadd.f32 %v186, %v220
      %v224 = vadd.f32 %v187, %v220
      %v225 = vadd.f32 %v188, %v220
      %v226 = vadd.f32 %v189, %v220
      %v227 = vadd.f32 %v190, %v220
      %v228 = vadd.f32 %v191, %v220
      %v229 = vadd.f32 %v192, %v220
      %v230 = vadd.f32 %v193, %v220
      %v231 = vadd.f32 %v194, %v220
      %v232 = vadd.f32 %v195, %v220
      %v233 = vadd.f32 %v196, %v220
      %v234 = vadd.f32 %v197, %v220
      %v235 = vadd.f32 %v198, %v220
      %v236 = vadd.f32 %v199, %v220
      %v237 = vadd.f32 %v200, %v220
      %v238 = vadd.f32 %v201, %v220
      %v239 = vadd.f32 %v202, %v220
      %v240 = vadd.f32 %v203, %v220
      %v241 = vadd.f32 %v204, %v220
      %v242 = vadd.f32 %v205, %v220
      %v243 = vadd.f32 %v206, %v220
      %v244 = vadd.f32 %v207, %v220
      %v245 = vadd.f32 %v208, %v220
      %v246 = vadd.f32 %v209, %v220
      %v247 = vadd.f32 %v210, %v220
      %v248 = vadd.f32 %v211, %v220
      %v249 = vadd.f32 %v212, %v220
      %v250 = vadd.f32 %v213, %v220
      %v251 = vadd.f32 %v214, %v220
      %v252 = vadd.f32 %v215, %v220
      %v253 = vmax.f32 %v221, 0.0
      %v254 = vmax.f32 %v222, 0.0
      %v255 = vmax.f32 %v223, 0.0
      %v256 = vmax.f32 %v224, 0.0
      %v257 = vmax.f32 %v225, 0.0
      %v258 = vmax.f32 %v226, 0.0
      %v259 = vmax.f32 %v227, 0.0
      %v260 = vmax.f32 %v228, 0.0
      %v261 = vmax.f32 %v229, 0.0
      %v262 = vmax.f32 %v230, 0.0
      %v263 = vmax.f32 %v231, 0.0
      %v264 = vmax.f32 %v232, 0.0
      %v265 = vmax.f32 %v233, 0.0
      %v266 = vmax.f32 %v234, 0.0
      %v267 = vmax.f32 %v235, 0.0
      %v268 = vmax.f32 %v236, 0.0
      %v269 = vmax.f32 %v237, 0.0
      %v270 = vmax.f32 %v238, 0.0
      %v271 = vmax.f32 %v239, 0.0
      %v272 = vmax.f32 %v240, 0.0
      %v273 = vmax.f32 %v241, 0.0
      %v274 = vmax.f32 %v242, 0.0
      %v275 = vmax.f32 %v243, 0.0
      %v276 = vmax.f32 %v244, 0.0
      %v277 = vmax.f32 %v245, 0.0
      %v278 = vmax.f32 %v246, 0.0
      %v279 = vmax.f32 %v247, 0.0
      %v280 = vmax.f32 %v248, 0.0
      %v281 = vmax.f32 %v249, 0.0
      %v282 = vmax.f32 %v250, 0.0
      %v283 = vmax.f32 %v251, 0.0
      %v284 = vmax.f32 %v252, 0.0
      %285 = vst [vmem:[%s145] sm:$0xff] %v253
      %286 = vst [vmem:[%s145 + $0x8] sm:$0xff] %v254
      %287 = vst [vmem:[%s145 + $0x10] sm:$0xff] %v255
      %288 = vst [vmem:[%s145 + $0x18] sm:$0xff] %v256
      %289 = vst [vmem:[%s145 + $0x20] sm:$0xff] %v257
      %290 = vst [vmem:[%s145 + $0x28] sm:$0xff] %v258
      %291 = vst [vmem:[%s145 + $0x30] sm:$0xff] %v259
      %292 = vst [vmem:[%s145 + $0x38] sm:$0xff] %v260
      %293 = vst [vmem:[%s145 + $0x40] sm:$0xff] %v261
      %294 = vst [vmem:[%s145 + $0x48] sm:$0xff] %v262
      %295 = vst [vmem:[%s145 + $0x50] sm:$0xff] %v263
      %296 = vst [vmem:[%s145 + $0x58] sm:$0xff] %v264
      %297 = vst [vmem:[%s145 + $0x60] sm:$0xff] %v265
      %298 = vst [vmem:[%s145 + $0x68] sm:$0xff] %v266
      %299 = vst [vmem:[%s145 + $0x70] sm:$0xff] %v267
      %300 = vst [vmem:[%s145 + $0x78] sm:$0xff] %v268
      %301 = vst [vmem:[%s145 + $0x80] sm:$0xff] %v269
      %302 = vst [vmem:[%s145 + $0x88] sm:$0xff] %v270
      %303 = vst [vmem:[%s145 + $0x90] sm:$0xff] %v271
      %304 = vst [vmem:[%s145 + $0x98] sm:$0xff] %v272
      %305 = vst [vmem:[%s145 + $0xa0] sm:$0xff] %v273
      %306 = vst [vmem:[%s145 + $0xa8] sm:$0xff] %v274
      %307 = vst [vmem:[%s145 + $0xb0] sm:$0xff] %v275
      %308 = vst [vmem:[%s145 + $0xb8] sm:$0xff] %v276
      %309 = vst [vmem:[%s145 + $0xc0] sm:$0xff] %v277
      %310 = vst [vmem:[%s145 + $0xc8] sm:$0xff] %v278
      %311 = vst [vmem:[%s145 + $0xd0] sm:$0xff] %v279
      %312 = vst [vmem:[%s145 + $0xd8] sm:$0xff] %v280
      %313 = vst [vmem:[%s145 + $0xe0] sm:$0xff] %v281
      %314 = vst [vmem:[%s145 + $0xe8] sm:$0xff] %v282
      %315 = vst [vmem:[%s145 + $0xf0] sm:$0xff] %v283
      %316 = vst [vmem:[%s145 + $0xf8] sm:$0xff] %v284
      %s317 = smul.u32 32, %s13
      %p318 = scmp.lt.s32.totalorder %s317, 63
      %s319 = scalar_select %p318, %s317, 63
      %s320 = smul.addr %s319, 8
      %s321 = scalar_lea.vmem %s2, %s320
      // Predicated region
      $region29: #{linear_bottleneck.6} parent=27 // pred_check
        %p322 = pneg %p78
      $region30: #{linear_bottleneck.6} parent=27 // pred_check_branch
        %324 = sbr.rel (%p322) target = $region32
      $region31: #{linear_bottleneck.6} parent=27 // pred_region
        %s325 = smul.u32 32, %s13
      $region32: #{linear_bottleneck.6} parent=27 // pred_fallthru
        _
    $region28: #{linear_bottleneck.6} parent=5 // pred_fallthru
      _
    %p326 = scmp.le.s32.totalorder 2, %s8
    // Predicated region
    $region33: #{linear_bottleneck.6} parent=5 // pred_check
      %p327 = pneg %p326
    $region34: #{linear_bottleneck.6} parent=5 // pred_check_branch
      %329 = sbr.rel (%p327) target = $region36
    $region35: #{linear_bottleneck.6} parent=5 // pred_region
      %s330 = ssub.s32 %s8, 2
      // Predicated region
      $region37: #{linear_bottleneck.6} parent=35 // pred_check
        %p331 = pneg %p84
      $region38: #{linear_bottleneck.6} parent=35 // pred_check_branch
        %333 = sbr.rel (%p331) target = $region40
      $region39: #{linear_bottleneck.6} parent=35 // pred_region
        %s334 = smul.u32 32, %s14
        %p335 = scmp.lt.s32.totalorder %s334, 63
        %s336 = scalar_select %p335, %s334, 63
        %s337 = smul.addr %s336, 8
        %s338 = scalar_lea.vmem %s2, %s337
      $region40: #{linear_bottleneck.6} parent=35 // pred_fallthru
        _
    $region36: #{linear_bottleneck.6} parent=5 // pred_fallthru
      _
  $region6: #{linear_bottleneck.6} parent=0 // loop_footer
    %s12 = sadd.s32 1, %s8
  $region7: #{linear_bottleneck.6} parent=0 // loop_footer_branch
    %7 = sbr.rel target = $region3
  $region8: #{linear_bottleneck.6} parent=0 // loop_exit
    _

// kernel: linear_bottleneck.5
$region0: #{linear_bottleneck.5}
  #allocation0 [shape = 'u32[]', space=smem, size = 0x4, offset = 0x4, fixed_abs, tag = 'smem constant byte address 0x4 - core index']
  #allocation1 [shape = 'u32[144,128]{1,0:T(1,128)}', space=vmem, size = 0x12000, scoped, tag = 'internal scratch']
  %s0 = inlined_call_operand.vmem [shape: f32[512,128], index: 0, kind: input, shape index: {}]
  %s1 = inlined_call_operand.vmem [shape: f32[128,128], index: 1, kind: input, shape index: {}]
  %s2 = inlined_call_operand.vmem [shape: f32[512,128], index: 2, kind: output, shape index: {0}]
  %s3 = inlined_call_operand.vmem [shape: f32[2,2,128], index: 3, kind: output, shape index: {1}]
  %4 = xla_tuple %s2, %s3
  %s5 = sld [smem:[#allocation0]]
  $region49: #{linear_bottleneck.5} parent=0
    _
  %s7 = ssub.s32 1, %s5
  %s8 = scalar_select 0, %s7, %s5
  loop: start=0, step=1, limit=4
  $region2: #{linear_bottleneck.5} parent=0 // loop_pre_header
    _
  $region3: #{linear_bottleneck.5} parent=0 // loop_header
    %s10 = sphi 0, %s14
    %p11 = scmp.ge.s32.totalorder %s10, 4
    %s20 = sphi 0, %s22
    %s23 = sphi 0, %s20
    %s24 = sphi 0, %s23
    %s40 = sphi 0, %s24
    %s44 = sphi 0, %s44
    %s46 = sphi 0, %s44
    %s47 = sphi 0, %s46
    %s61 = sphi 0, %s47
    %s67 = sphi 0, %s69
    %s70 = sphi 0, %s67
    %s71 = sphi 0, %s70
    %s87 = sphi 0, %s71
    %s93 = sphi 0, %s95
    %s96 = sphi 0, %s93
    %s97 = sphi 0, %s96
    %s113 = sphi 0, %s97
  $region4: #{linear_bottleneck.5} parent=0 // loop_header_branch
    %13 = sbr.rel (%p11) target = $region8
  $region5: #{linear_bottleneck.5} parent=0 // loop_body
    %s15 = ssub.s32 %s10, 1
    %s16 = ssub.s32 %s10, 2
    %s17 = sadd.s32 %s10, 1
    %s18 = ssub.s32 %s10, %s17
    %p19 = scmp.eq.s32.totalorder %s18, 0
    %s21 = sadd.s32 %s20, 1
    %s22 = scalar_select %p19, %s20, %s21
    %p25 = pneg %p19
    %p26 = scmp.eq.s32.totalorder %s10, 1
    %p27 = por %p25, %p26
    %p28 = scmp.ne.s32.totalorder %s20, %s23
    %p29 = scmp.eq.s32.totalorder %s10, 0
    %p30 = por %p28, %p29
    %p31 = scmp.ne.s32.totalorder %s20, %s23
    %p32 = scmp.eq.s32.totalorder %s15, 1
    %p33 = por %p31, %p32
    %p34 = scmp.ne.s32.totalorder %s23, %s24
    %p35 = scmp.eq.s32.totalorder %s15, 0
    %p36 = por %p34, %p35
    %p37 = scmp.ne.s32.totalorder %s23, %s24
    %p38 = scmp.eq.s32.totalorder %s16, 1
    %p39 = por %p37, %p38
    %p41 = scmp.ne.s32.totalorder %s24, %s40
    %p42 = scmp.eq.s32.totalorder %s16, 0
    %p43 = por %p41, %p42
    %s45 = sadd.s32 %s44, 1
    %p48 = scmp.eq.s32.totalorder %s10, 1
    %p49 = scmp.ne.s32.totalorder %s44, %s46
    %p50 = scmp.eq.s32.totalorder %s10, 0
    %p51 = por %p49, %p50
    %p52 = scmp.ne.s32.totalorder %s44, %s46
    %p53 = scmp.eq.s32.totalorder %s15, 1
    %p54 = por %p52, %p53
    %p55 = scmp.ne.s32.totalorder %s46, %s47
    %p56 = scmp.eq.s32.totalorder %s15, 0
    %p57 = por %p55, %p56
    %p58 = scmp.ne.s32.totalorder %s46, %s47
    %p59 = scmp.eq.s32.totalorder %s16, 1
    %p60 = por %p58, %p59
    %p62 = scmp.ne.s32.totalorder %s47, %s61
    %p63 = scmp.eq.s32.totalorder %s16, 0
    %p64 = por %p62, %p63
    %s65 = ssub.s32 %s10, %s17
    %p66 = scmp.eq.s32.totalorder %s65, 0
    %s68 = sadd.s32 %s67, 1
    %s69 = scalar_select %p66, %s67, %s68
    %p72 = pneg %p66
    %p73 = scmp.eq.s32.totalorder %s10, 1
    %p74 = por %p72, %p73
    %p75 = scmp.ne.s32.totalorder %s67, %s70
    %p76 = scmp.eq.s32.totalorder %s10, 0
    %p77 = por %p75, %p76
    %p78 = scmp.ne.s32.totalorder %s67, %s70
    %p79 = scmp.eq.s32.totalorder %s15, 1
    %p80 = por %p78, %p79
    %p81 = scmp.ne.s32.totalorder %s70, %s71
    %p82 = scmp.eq.s32.totalorder %s15, 0
    %p83 = por %p81, %p82
    %p84 = scmp.ne.s32.totalorder %s70, %s71
    %p85 = scmp.eq.s32.totalorder %s16, 1
    %p86 = por %p84, %p85
    %p88 = scmp.ne.s32.totalorder %s71, %s87
    %p89 = scmp.eq.s32.totalorder %s16, 0
    %p90 = por %p88, %p89
    %s91 = ssub.s32 %s10, %s17
    %p92 = scmp.eq.s32.totalorder %s91, 0
    %s94 = sadd.s32 %s93, 1
    %s95 = scalar_select %p92, %s93, %s94
    %p98 = pneg %p92
    %p99 = scmp.eq.s32.totalorder %s10, 1
    %p100 = por %p98, %p99
    %p101 = scmp.ne.s32.totalorder %s93, %s96
    %p102 = scmp.eq.s32.totalorder %s10, 0
    %p103 = por %p101, %p102
    %p104 = scmp.ne.s32.totalorder %s93, %s96
    %p105 = scmp.eq.s32.totalorder %s15, 1
    %p106 = por %p104, %p105
    %p107 = scmp.ne.s32.totalorder %s96, %s97
    %p108 = scmp.eq.s32.totalorder %s15, 0
    %p109 = por %p107, %p108
    %p110 = scmp.ne.s32.totalorder %s96, %s97
    %p111 = scmp.eq.s32.totalorder %s16, 1
    %p112 = por %p110, %p111
    %p114 = scmp.ne.s32.totalorder %s97, %s113
    %p115 = scmp.eq.s32.totalorder %s16, 0
    %p116 = por %p114, %p115
    %p117 = scmp.le.s32.totalorder 1, %s10
    %p118 = scmp.lt.s32.totalorder %s10, 3
    %p119 = pnand %p117, %p118
    %p120 = pneg %p119
    // Predicated region
    $region9: #{linear_bottleneck.5} parent=5 // pred_check
      _
    $region10: #{linear_bottleneck.5} parent=5 // pred_check_branch
      %122 = sbr.rel (%p119) target = $region12
    $region11: #{linear_bottleneck.5} parent=5 // pred_region
      %s123 = ssub.s32 %s10, 1
      // Predicated region
      $region13: #{linear_bottleneck.5} parent=11 // pred_check
        %p124 = pneg %p57
      $region14: #{linear_bottleneck.5} parent=11 // pred_check_branch
        %126 = sbr.rel (%p124) target = $region16
      $region15: #{linear_bottleneck.5} parent=11 // pred_region
        _
      $region16: #{linear_bottleneck.5} parent=11 // pred_fallthru
        _
    $region12: #{linear_bottleneck.5} parent=5 // pred_fallthru
      _
    %p127 = scmp.lt.s32.totalorder %s10, 2
    // Predicated region
    $region17: #{linear_bottleneck.5} parent=5 // pred_check
      %p128 = pneg %p127
    $region18: #{linear_bottleneck.5} parent=5 // pred_check_branch
      %130 = sbr.rel (%p128) target = $region20
    $region19: #{linear_bottleneck.5} parent=5 // pred_region
      // Predicated region
      $region21: #{linear_bottleneck.5} parent=19 // pred_check
        %p131 = pneg %p30
      $region22: #{linear_bottleneck.5} parent=19 // pred_check_branch
        %133 = sbr.rel (%p131) target = $region24
      $region23: #{linear_bottleneck.5} parent=19 // pred_region
        %s134 = smul.u32 32, %s10
        %p135 = scmp.lt.s32.totalorder %s134, 63
        %s136 = scalar_select %p135, %s134, 63
        %s137 = smul.addr %s136, 8
        %s138 = scalar_lea.vmem %s0, %s137
        %s139 = smul.u32 32, %s10
      $region24: #{linear_bottleneck.5} parent=19 // pred_fallthru
        _
    $region20: #{linear_bottleneck.5} parent=5 // pred_fallthru
      _
    %p140 = scmp.le.s32.totalorder 1, %s10
    %p141 = scmp.lt.s32.totalorder %s10, 3
    %p142 = pnand %p140, %p141
    %p143 = pneg %p142
    // Predicated region
    $region25: #{linear_bottleneck.5} parent=5 // pred_check
      _
    $region26: #{linear_bottleneck.5} parent=5 // pred_check_branch
      %145 = sbr.rel (%p142) target = $region28
    $region27: #{linear_bottleneck.5} parent=5 // pred_region
      %s146 = ssub.s32 %s10, 1
      %s147 = smul.u32 32, %s15
      %p148 = scmp.lt.s32.totalorder %s147, 63
      %s149 = scalar_select %p148, %s147, 63
      %s150 = smul.addr %s149, 8
      %s151 = scalar_lea.vmem %s0, %s150
      %p152 = pneg %p36
      %p153 = pneg %p33
      %p154 = pneg %p57
      %p155 = pneg %p54
      %p156 = pneg %p83
      %p157 = pneg %p80
      %s158 = smul.u32 32, %s15
      %p159 = scmp.lt.s32.totalorder %s158, 63
      %s160 = scalar_select %p159, %s158, 63
      %s161 = smul.addr %s160, 8
      %s162 = scalar_lea.vmem %s2, %s161
      %p163 = pneg %p109
      %p164 = pneg %p106
      %p165 = scmp.lt.s32.totalorder %s15, 1
      %s166 = scalar_select %p165, %s15, 1
      %s167 = smul.addr %s166, 2
      %s168 = scalar_lea.vmem %s3, %s167
      %s169 = smul.u32 32, %s15
      %p170 = scmp.lt.s32.totalorder %s169, 63
      %s171 = scalar_select %p170, %s169, 63
      %s172 = smul.addr %s171, 8
      %s173 = scalar_lea.vmem %s0, %s172
      %s174 = smul.u32 32, %s15
      %s175 = smul.u32 32, %s15
      %p176 = scmp.lt.s32.totalorder %s175, 63
      %s177 = scalar_select %p176, %s175, 63
      %s178 = smul.addr %s177, 8
      %s179 = scalar_lea.vmem %s2, %s178
      %s180 = smul.u32 32, %s15
      %p181 = scmp.lt.s32.totalorder %s15, 1
      %s182 = scalar_select %p181, %s15, 1
      %s183 = smul.addr %s182, 2
      %s184 = scalar_lea.vmem %s3, %s183
      %v185 = vld [vmem:[%s173] sm:$0xff]
      %v186 = vld [vmem:[%s173 + $0x8] sm:$0xff]
      %v187 = vld [vmem:[%s173 + $0x10] sm:$0xff]
      %v188 = vld [vmem:[%s173 + $0x18] sm:$0xff]
      %v189 = vld [vmem:[%s173 + $0x20] sm:$0xff]
      %v190 = vld [vmem:[%s173 + $0x28] sm:$0xff]
      %v191 = vld [vmem:[%s173 + $0x30] sm:$0xff]
      %v192 = vld [vmem:[%s173 + $0x38] sm:$0xff]
      %v193 = vld [vmem:[%s173 + $0x40] sm:$0xff]
      %v194 = vld [vmem:[%s173 + $0x48] sm:$0xff]
      %v195 = vld [vmem:[%s173 + $0x50] sm:$0xff]
      %v196 = vld [vmem:[%s173 + $0x58] sm:$0xff]
      %v197 = vld [vmem:[%s173 + $0x60] sm:$0xff]
      %v198 = vld [vmem:[%s173 + $0x68] sm:$0xff]
      %v199 = vld [vmem:[%s173 + $0x70] sm:$0xff]
      %v200 = vld [vmem:[%s173 + $0x78] sm:$0xff]
      %v201 = vld [vmem:[%s173 + $0x80] sm:$0xff]
      %v202 = vld [vmem:[%s173 + $0x88] sm:$0xff]
      %v203 = vld [vmem:[%s173 + $0x90] sm:$0xff]
      %v204 = vld [vmem:[%s173 + $0x98] sm:$0xff]
      %v205 = vld [vmem:[%s173 + $0xa0] sm:$0xff]
      %v206 = vld [vmem:[%s173 + $0xa8] sm:$0xff]
      %v207 = vld [vmem:[%s173 + $0xb0] sm:$0xff]
      %v208 = vld [vmem:[%s173 + $0xb8] sm:$0xff]
      %v209 = vld [vmem:[%s173 + $0xc0] sm:$0xff]
      %v210 = vld [vmem:[%s173 + $0xc8] sm:$0xff]
      %v211 = vld [vmem:[%s173 + $0xd0] sm:$0xff]
      %v212 = vld [vmem:[%s173 + $0xd8] sm:$0xff]
      %v213 = vld [vmem:[%s173 + $0xe0] sm:$0xff]
      %v214 = vld [vmem:[%s173 + $0xe8] sm:$0xff]
      %v215 = vld [vmem:[%s173 + $0xf0] sm:$0xff]
      %v216 = vld [vmem:[%s173 + $0xf8] sm:$0xff]
      %v217 = vld [vmem:[%s1] sm:$0xff]
      %v218 = vld [vmem:[%s1 + $0x8] sm:$0xff]
      %v219 = vld [vmem:[%s1 + $0x10] sm:$0xff]
      %v220 = vld [vmem:[%s1 + $0x18] sm:$0xff]
      %v221 = vld [vmem:[%s1 + $0x20] sm:$0xff]
      %v222 = vld [vmem:[%s1 + $0x28] sm:$0xff]
      %v223 = vld [vmem:[%s1 + $0x30] sm:$0xff]
      %v224 = vld [vmem:[%s1 + $0x38] sm:$0xff]
      %v225 = vld [vmem:[%s1 + $0x40] sm:$0xff]
      %v226 = vld [vmem:[%s1 + $0x48] sm:$0xff]
      %v227 = vld [vmem:[%s1 + $0x50] sm:$0xff]
      %v228 = vld [vmem:[%s1 + $0x58] sm:$0xff]
      %v229 = vld [vmem:[%s1 + $0x60] sm:$0xff]
      %v230 = vld [vmem:[%s1 + $0x68] sm:$0xff]
      %v231 = vld [vmem:[%s1 + $0x70] sm:$0xff]
      %v232 = vld [vmem:[%s1 + $0x78] sm:$0xff]
      %233 = vmatprep.subr.mxu0 0.0
      %234 = vmatpush1.msra.mxu0 %v232
      %235 = vmatprep.subr.mxu0 0.0
      %236 = vmatpush1.msra.mxu0 %v231
      %237 = vmatprep.subr.mxu0 0.0
      %238 = vmatpush1.msra.mxu0 %v230
      %239 = vmatprep.subr.mxu0 0.0
      %240 = vmatpush1.msra.mxu0 %v229
      %241 = vmatprep.subr.mxu0 0.0
      %242 = vmatpush1.msra.mxu0 %v228
      %243 = vmatprep.subr.mxu0 0.0
      %244 = vmatpush1.msra.mxu0 %v227
      %245 = vmatprep.subr.mxu0 0.0
      %246 = vmatpush1.msra.mxu0 %v226
      %247 = vmatprep.subr.mxu0 0.0
      %248 = vmatpush1.msra.mxu0 %v225
      %249 = vmatprep.subr.mxu0 0.0
      %250 = vmatpush1.msra.mxu0 %v224
      %251 = vmatprep.subr.mxu0 0.0
      %252 = vmatpush1.msra.mxu0 %v223
      %253 = vmatprep.subr.mxu0 0.0
      %254 = vmatpush1.msra.mxu0 %v222
      %255 = vmatprep.subr.mxu0 0.0
      %256 = vmatpush1.msra.mxu0 %v221
      %257 = vmatprep.subr.mxu0 0.0
      %258 = vmatpush1.msra.mxu0 %v220
      %259 = vmatprep.subr.mxu0 0.0
      %260 = vmatpush1.msra.mxu0 %v219
      %261 = vmatprep.subr.mxu0 0.0
      %262 = vmatpush1.msra.mxu0 %v218
      %263 = vmatprep.subr.mxu0 0.0
      %264 = vmatpush1.msra.mxu0 %v217
      %265 = vmatprep.subr.mxu0 0.0
      %266 = vmatpush2.msra.mxu0 0.0
      %267 = vmatprep.subr.mxu0 0.0
      %268 = vmatpush2.msra.mxu0 0.0
      %269 = vmatprep.subr.mxu0 0.0
      %270 = vmatpush2.msra.mxu0 0.0
      %271 = vmatprep.subr.mxu0 0.0
      %272 = vmatpush2.msra.mxu0 0.0
      %273 = vmatprep.subr.mxu0 0.0
      %274 = vmatpush2.msra.mxu0 0.0
      %275 = vmatprep.subr.mxu0 0.0
      %276 = vmatpush2.msra.mxu0 0.0
      %277 = vmatprep.subr.mxu0 0.0
      %278 = vmatpush2.msra.mxu0 0.0
      %279 = vmatprep.subr.mxu0 0.0
      %280 = vmatpush2.msra.mxu0 0.0
      %281 = vmatprep.subr.mxu0 0.0
      %282 = vmatpush2.msra.mxu0 0.0
      %283 = vmatprep.subr.mxu0 0.0
      %284 = vmatpush2.msra.mxu0 0.0
      %285 = vmatprep.subr.mxu0 0.0
      %286 = vmatpush2.msra.mxu0 0.0
      %287 = vmatprep.subr.mxu0 0.0
      %288 = vmatpush2.msra.mxu0 0.0
      %289 = vmatprep.subr.mxu0 0.0
      %290 = vmatpush2.msra.mxu0 0.0
      %291 = vmatprep.subr.mxu0 0.0
      %292 = vmatpush2.msra.mxu0 0.0
      %293 = vmatprep.subr.mxu0 0.0
      %294 = vmatpush2.msra.mxu0 0.0
      %295 = vmatprep.subr.mxu0 0.0
      %296 = vmatpush2.msra.mxu0 0.0
      %297 = vmatprep.mubr.f32.mxu0 0.0
      %298 = vmatmul.mubr.f32.gmra.mxu0 %v185
      %v299 = vpop.f32.mrf.mxu0
      %v300 = vadd.f32 0.0, %v299
      %v301 = vpop.f32.mrf.mxu0
      %302 = vmatprep.mubr.f32.mxu0 0.0
      %303 = vmatmul.mubr.f32.gmra.mxu0 %v186
      %v304 = vpop.f32.mrf.mxu0
      %v305 = vadd.f32 0.0, %v304
      %v306 = vpop.f32.mrf.mxu0
      %307 = vmatprep.mubr.f32.mxu0 0.0
      %308 = vmatmul.mubr.f32.gmra.mxu0 %v187
      %v309 = vpop.f32.mrf.mxu0
      %v310 = vadd.f32 0.0, %v309
      %v311 = vpop.f32.mrf.mxu0
      %312 = vmatprep.mubr.f32.mxu0 0.0
      %313 = vmatmul.mubr.f32.gmra.mxu0 %v188
      %v314 = vpop.f32.mrf.mxu0
      %v315 = vadd.f32 0.0, %v314
      %v316 = vpop.f32.mrf.mxu0
      %317 = vmatprep.mubr.f32.mxu0 0.0
      %318 = vmatmul.mubr.f32.gmra.mxu0 %v189
      %v319 = vpop.f32.mrf.mxu0
      %v320 = vadd.f32 0.0, %v319
      %v321 = vpop.f32.mrf.mxu0
      %322 = vmatprep.mubr.f32.mxu0 0.0
      %323 = vmatmul.mubr.f32.gmra.mxu0 %v190
      %v324 = vpop.f32.mrf.mxu0
      %v325 = vadd.f32 0.0, %v324
      %v326 = vpop.f32.mrf.mxu0
      %327 = vmatprep.mubr.f32.mxu0 0.0
      %328 = vmatmul.mubr.f32.gmra.mxu0 %v191
      %v329 = vpop.f32.mrf.mxu0
      %v330 = vadd.f32 0.0, %v329
      %v331 = vpop.f32.mrf.mxu0
      %332 = vmatprep.mubr.f32.mxu0 0.0
      %333 = vmatmul.mubr.f32.gmra.mxu0 %v192
      %v334 = vpop.f32.mrf.mxu0
      %v335 = vadd.f32 0.0, %v334
      %v336 = vpop.f32.mrf.mxu0
      %337 = vmatprep.mubr.f32.mxu0 0.0
      %338 = vmatmul.mubr.f32.gmra.mxu0 %v193
      %v339 = vpop.f32.mrf.mxu0
      %v340 = vadd.f32 0.0, %v339
      %v341 = vpop.f32.mrf.mxu0
      %342 = vmatprep.mubr.f32.mxu0 0.0
      %343 = vmatmul.mubr.f32.gmra.mxu0 %v194
      %v344 = vpop.f32.mrf.mxu0
      %v345 = vadd.f32 0.0, %v344
      %v346 = vpop.f32.mrf.mxu0
      %347 = vmatprep.mubr.f32.mxu0 0.0
      %348 = vmatmul.mubr.f32.gmra.mxu0 %v195
      %v349 = vpop.f32.mrf.mxu0
      %v350 = vadd.f32 0.0, %v349
      %v351 = vpop.f32.mrf.mxu0
      %352 = vmatprep.mubr.f32.mxu0 0.0
      %353 = vmatmul.mubr.f32.gmra.mxu0 %v196
      %v354 = vpop.f32.mrf.mxu0
      %v355 = vadd.f32 0.0, %v354
      %v356 = vpop.f32.mrf.mxu0
      %357 = vmatprep.mubr.f32.mxu0 0.0
      %358 = vmatmul.mubr.f32.gmra.mxu0 %v197
      %v359 = vpop.f32.mrf.mxu0
      %v360 = vadd.f32 0.0, %v359
      %v361 = vpop.f32.mrf.mxu0
      %362 = vmatprep.mubr.f32.mxu0 0.0
      %363 = vmatmul.mubr.f32.gmra.mxu0 %v198
      %v364 = vpop.f32.mrf.mxu0
      %v365 = vadd.f32 0.0, %v364
      %v366 = vpop.f32.mrf.mxu0
      %367 = vmatprep.mubr.f32.mxu0 0.0
      %368 = vmatmul.mubr.f32.gmra.mxu0 %v199
      %v369 = vpop.f32.mrf.mxu0
      %v370 = vadd.f32 0.0, %v369
      %v371 = vpop.f32.mrf.mxu0
      %372 = vmatprep.mubr.f32.mxu0 0.0
      %373 = vmatmul.mubr.f32.gmra.mxu0 %v200
      %v374 = vpop.f32.mrf.mxu0
      %v375 = vadd.f32 0.0, %v374
      %v376 = vpop.f32.mrf.mxu0
      %377 = vmatprep.mubr.f32.mxu0 0.0
      %378 = vmatmul.mubr.f32.gmra.mxu0 %v201
      %v379 = vpop.f32.mrf.mxu0
      %v380 = vadd.f32 0.0, %v379
      %v381 = vpop.f32.mrf.mxu0
      %382 = vmatprep.mubr.f32.mxu0 0.0
      %383 = vmatmul.mubr.f32.gmra.mxu0 %v202
      %v384 = vpop.f32.mrf.mxu0
      %v385 = vadd.f32 0.0, %v384
      %v386 = vpop.f32.mrf.mxu0
      %387 = vmatprep.mubr.f32.mxu0 0.0
      %388 = vmatmul.mubr.f32.gmra.mxu0 %v203
      %v389 = vpop.f32.mrf.mxu0
      %v390 = vadd.f32 0.0, %v389
      %v391 = vpop.f32.mrf.mxu0
      %392 = vmatprep.mubr.f32.mxu0 0.0
      %393 = vmatmul.mubr.f32.gmra.mxu0 %v204
      %v394 = vpop.f32.mrf.mxu0
      %v395 = vadd.f32 0.0, %v394
      %v396 = vpop.f32.mrf.mxu0
      %397 = vmatprep.mubr.f32.mxu0 0.0
      %398 = vmatmul.mubr.f32.gmra.mxu0 %v205
      %v399 = vpop.f32.mrf.mxu0
      %v400 = vadd.f32 0.0, %v399
      %v401 = vpop.f32.mrf.mxu0
      %402 = vmatprep.mubr.f32.mxu0 0.0
      %403 = vmatmul.mubr.f32.gmra.mxu0 %v206
      %v404 = vpop.f32.mrf.mxu0
      %v405 = vadd.f32 0.0, %v404
      %v406 = vpop.f32.mrf.mxu0
      %407 = vmatprep.mubr.f32.mxu0 0.0
      %408 = vmatmul.mubr.f32.gmra.mxu0 %v207
      %v409 = vpop.f32.mrf.mxu0
      %v410 = vadd.f32 0.0, %v409
      %v411 = vpop.f32.mrf.mxu0
      %412 = vmatprep.mubr.f32.mxu0 0.0
      %413 = vmatmul.mubr.f32.gmra.mxu0 %v208
      %v414 = vpop.f32.mrf.mxu0
      %v415 = vadd.f32 0.0, %v414
      %v416 = vpop.f32.mrf.mxu0
      %417 = vmatprep.mubr.f32.mxu0 0.0
      %418 = vmatmul.mubr.f32.gmra.mxu0 %v209
      %v419 = vpop.f32.mrf.mxu0
      %v420 = vadd.f32 0.0, %v419
      %v421 = vpop.f32.mrf.mxu0
      %422 = vmatprep.mubr.f32.mxu0 0.0
      %423 = vmatmul.mubr.f32.gmra.mxu0 %v210
      %v424 = vpop.f32.mrf.mxu0
      %v425 = vadd.f32 0.0, %v424
      %v426 = vpop.f32.mrf.mxu0
      %427 = vmatprep.mubr.f32.mxu0 0.0
      %428 = vmatmul.mubr.f32.gmra.mxu0 %v211
      %v429 = vpop.f32.mrf.mxu0
      %v430 = vadd.f32 0.0, %v429
      %v431 = vpop.f32.mrf.mxu0
      %432 = vmatprep.mubr.f32.mxu0 0.0
      %433 = vmatmul.mubr.f32.gmra.mxu0 %v212
      %v434 = vpop.f32.mrf.mxu0
      %v435 = vadd.f32 0.0, %v434
      %v436 = vpop.f32.mrf.mxu0
      %437 = vmatprep.mubr.f32.mxu0 0.0
      %438 = vmatmul.mubr.f32.gmra.mxu0 %v213
      %v439 = vpop.f32.mrf.mxu0
      %v440 = vadd.f32 0.0, %v439
      %v441 = vpop.f32.mrf.mxu0
      %442 = vmatprep.mubr.f32.mxu0 0.0
      %443 = vmatmul.mubr.f32.gmra.mxu0 %v214
      %v444 = vpop.f32.mrf.mxu0
      %v445 = vadd.f32 0.0, %v444
      %v446 = vpop.f32.mrf.mxu0
      %447 = vmatprep.mubr.f32.mxu0 0.0
      %448 = vmatmul.mubr.f32.gmra.mxu0 %v215
      %v449 = vpop.f32.mrf.mxu0
      %v450 = vadd.f32 0.0, %v449
      %v451 = vpop.f32.mrf.mxu0
      %452 = vmatprep.mubr.f32.mxu0 0.0
      %453 = vmatmul.mubr.f32.gmra.mxu0 %v216
      %v454 = vpop.f32.mrf.mxu0
      %v455 = vadd.f32 0.0, %v454
      %v456 = vpop.f32.mrf.mxu0
      %457 = vdwg.mxu0
      %458 = vst [vmem:[%s179] sm:$0xff] %v300
      %459 = vst [vmem:[%s179 + $0x8] sm:$0xff] %v305
      %460 = vst [vmem:[%s179 + $0x10] sm:$0xff] %v310
      %461 = vst [vmem:[%s179 + $0x18] sm:$0xff] %v315
      %462 = vst [vmem:[%s179 + $0x20] sm:$0xff] %v320
      %463 = vst [vmem:[%s179 + $0x28] sm:$0xff] %v325
      %464 = vst [vmem:[%s179 + $0x30] sm:$0xff] %v330
      %465 = vst [vmem:[%s179 + $0x38] sm:$0xff] %v335
      %466 = vst [vmem:[%s179 + $0x40] sm:$0xff] %v340
      %467 = vst [vmem:[%s179 + $0x48] sm:$0xff] %v345
      %468 = vst [vmem:[%s179 + $0x50] sm:$0xff] %v350
      %469 = vst [vmem:[%s179 + $0x58] sm:$0xff] %v355
      %470 = vst [vmem:[%s179 + $0x60] sm:$0xff] %v360
      %471 = vst [vmem:[%s179 + $0x68] sm:$0xff] %v365
      %472 = vst [vmem:[%s179 + $0x70] sm:$0xff] %v370
      %473 = vst [vmem:[%s179 + $0x78] sm:$0xff] %v375
      %474 = vst [vmem:[%s179 + $0x80] sm:$0xff] %v380
      %475 = vst [vmem:[%s179 + $0x88] sm:$0xff] %v385
      %476 = vst [vmem:[%s179 + $0x90] sm:$0xff] %v390
      %477 = vst [vmem:[%s179 + $0x98] sm:$0xff] %v395
      %478 = vst [vmem:[%s179 + $0xa0] sm:$0xff] %v400
      %479 = vst [vmem:[%s179 + $0xa8] sm:$0xff] %v405
      %480 = vst [vmem:[%s179 + $0xb0] sm:$0xff] %v410
      %481 = vst [vmem:[%s179 + $0xb8] sm:$0xff] %v415
      %482 = vst [vmem:[%s179 + $0xc0] sm:$0xff] %v420
      %483 = vst [vmem:[%s179 + $0xc8] sm:$0xff] %v425
      %484 = vst [vmem:[%s179 + $0xd0] sm:$0xff] %v430
      %485 = vst [vmem:[%s179 + $0xd8] sm:$0xff] %v435
      %486 = vst [vmem:[%s179 + $0xe0] sm:$0xff] %v440
      %487 = vst [vmem:[%s179 + $0xe8] sm:$0xff] %v445
      %488 = vst [vmem:[%s179 + $0xf0] sm:$0xff] %v450
      %489 = vst [vmem:[%s179 + $0xf8] sm:$0xff] %v455
      %s490 = smul.u32 %s15, 256
      %s491 = ssub.s32 512, %s490
      %v492 = vlaneseq
      %v493 = vand.u32 %v492, 127
      %v494 = vadd.s32 %v493, 128
      %v495 = vstv %s491
      %vm496 = vcmp.lt.s32.totalorder %v493, %v495
      %vm497 = vcmp.lt.s32.totalorder %v494, %v495
      %v498 = vsel %vm496, 1, 0
      %v499 = vsel %vm497, 1, 0
      %v500 = vcvt.s32.f32 %v498
      %v501 = vcvt.s32.f32 %v499
      %502 = vmatprep.subr.mxu0 0.0
      %503 = vmatpush1.msra.mxu0 %v375
      %504 = vmatprep.subr.mxu0 0.0
      %505 = vmatpush1.msra.mxu0 %v370
      %506 = vmatprep.subr.mxu0 0.0
      %507 = vmatpush1.msra.mxu0 %v365
      %508 = vmatprep.subr.mxu0 0.0
      %509 = vmatpush1.msra.mxu0 %v360
      %510 = vmatprep.subr.mxu0 0.0
      %511 = vmatpush1.msra.mxu0 %v355
      %512 = vmatprep.subr.mxu0 0.0
      %513 = vmatpush1.msra.mxu0 %v350
      %514 = vmatprep.subr.mxu0 0.0
      %515 = vmatpush1.msra.mxu0 %v345
      %516 = vmatprep.subr.mxu0 0.0
      %517 = vmatpush1.msra.mxu0 %v340
      %518 = vmatprep.subr.mxu0 0.0
      %519 = vmatpush1.msra.mxu0 %v335
      %520 = vmatprep.subr.mxu0 0.0
      %521 = vmatpush1.msra.mxu0 %v330
      %522 = vmatprep.subr.mxu0 0.0
      %523 = vmatpush1.msra.mxu0 %v325
      %524 = vmatprep.subr.mxu0 0.0
      %525 = vmatpush1.msra.mxu0 %v320
      %526 = vmatprep.subr.mxu0 0.0
      %527 = vmatpush1.msra.mxu0 %v315
      %528 = vmatprep.subr.mxu0 0.0
      %529 = vmatpush1.msra.mxu0 %v310
      %530 = vmatprep.subr.mxu0 0.0
      %531 = vmatpush1.msra.mxu0 %v305
      %532 = vmatprep.subr.mxu0 0.0
      %533 = vmatpush1.msra.mxu0 %v300
      %534 = vmatprep.subr.mxu0 0.0
      %535 = vmatpush2.msra.mxu0 %v455
      %536 = vmatprep.subr.mxu0 0.0
      %537 = vmatpush2.msra.mxu0 %v450
      %538 = vmatprep.subr.mxu0 0.0
      %539 = vmatpush2.msra.mxu0 %v445
      %540 = vmatprep.subr.mxu0 0.0
      %541 = vmatpush2.msra.mxu0 %v440
      %542 = vmatprep.subr.mxu0 0.0
      %543 = vmatpush2.msra.mxu0 %v435
      %544 = vmatprep.subr.mxu0 0.0
      %545 = vmatpush2.msra.mxu0 %v430
      %546 = vmatprep.subr.mxu0 0.0
      %547 = vmatpush2.msra.mxu0 %v425
      %548 = vmatprep.subr.mxu0 0.0
      %549 = vmatpush2.msra.mxu0 %v420
      %550 = vmatprep.subr.mxu0 0.0
      %551 = vmatpush2.msra.mxu0 %v415
      %552 = vmatprep.subr.mxu0 0.0
      %553 = vmatpush2.msra.mxu0 %v410
      %554 = vmatprep.subr.mxu0 0.0
      %555 = vmatpush2.msra.mxu0 %v405
      %556 = vmatprep.subr.mxu0 0.0
      %557 = vmatpush2.msra.mxu0 %v400
      %558 = vmatprep.subr.mxu0 0.0
      %559 = vmatpush2.msra.mxu0 %v395
      %560 = vmatprep.subr.mxu0 0.0
      %561 = vmatpush2.msra.mxu0 %v390
      %562 = vmatprep.subr.mxu0 0.0
      %563 = vmatpush2.msra.mxu0 %v385
      %564 = vmatprep.subr.mxu0 0.0
      %565 = vmatpush2.msra.mxu0 %v380
      %566 = vmatprep.mubr.f32.mxu0 %v501
      %567 = vmatmul.mubr.f32.gmra.mxu0 %v500
      %v568 = vpop.f32.mrf.mxu0
      %v569 = vadd.f32 0.0, %v568
      %v570 = vpop.f32.mrf.mxu0
      %571 = vdwg.mxu0
      %572 = vst [vmem:[%s184] sm:$0x1] %v569
      %v573 = vmul.f32 %v300, %v300
      %v574 = vmul.f32 %v305, %v305
      %v575 = vmul.f32 %v310, %v310
      %v576 = vmul.f32 %v315, %v315
      %v577 = vmul.f32 %v320, %v320
      %v578 = vmul.f32 %v325, %v325
      %v579 = vmul.f32 %v330, %v330
      %v580 = vmul.f32 %v335, %v335
      %v581 = vmul.f32 %v340, %v340
      %v582 = vmul.f32 %v345, %v345
      %v583 = vmul.f32 %v350, %v350
      %v584 = vmul.f32 %v355, %v355
      %v585 = vmul.f32 %v360, %v360
      %v586 = vmul.f32 %v365, %v365
      %v587 = vmul.f32 %v370, %v370
      %v588 = vmul.f32 %v375, %v375
      %v589 = vmul.f32 %v380, %v380
      %v590 = vmul.f32 %v385, %v385
      %v591 = vmul.f32 %v390, %v390
      %v592 = vmul.f32 %v395, %v395
      %v593 = vmul.f32 %v400, %v400
      %v594 = vmul.f32 %v405, %v405
      %v595 = vmul.f32 %v410, %v410
      %v596 = vmul.f32 %v415, %v415
      %v597 = vmul.f32 %v420, %v420
      %v598 = vmul.f32 %v425, %v425
      %v599 = vmul.f32 %v430, %v430
      %v600 = vmul.f32 %v435, %v435
      %v601 = vmul.f32 %v440, %v440
      %v602 = vmul.f32 %v445, %v445
      %v603 = vmul.f32 %v450, %v450
      %v604 = vmul.f32 %v455, %v455
      %605 = vmatprep.subr.mxu0 0.0
      %606 = vmatpush1.msra.mxu0 %v588
      %607 = vmatprep.subr.mxu0 0.0
      %608 = vmatpush1.msra.mxu0 %v587
      %609 = vmatprep.subr.mxu0 0.0
      %610 = vmatpush1.msra.mxu0 %v586
      %611 = vmatprep.subr.mxu0 0.0
      %612 = vmatpush1.msra.mxu0 %v585
      %613 = vmatprep.subr.mxu0 0.0
      %614 = vmatpush1.msra.mxu0 %v584
      %615 = vmatprep.subr.mxu0 0.0
      %616 = vmatpush1.msra.mxu0 %v583
      %617 = vmatprep.subr.mxu0 0.0
      %618 = vmatpush1.msra.mxu0 %v582
      %619 = vmatprep.subr.mxu0 0.0
      %620 = vmatpush1.msra.mxu0 %v581
      %621 = vmatprep.subr.mxu0 0.0
      %622 = vmatpush1.msra.mxu0 %v580
      %623 = vmatprep.subr.mxu0 0.0
      %624 = vmatpush1.msra.mxu0 %v579
      %625 = vmatprep.subr.mxu0 0.0
      %626 = vmatpush1.msra.mxu0 %v578
      %627 = vmatprep.subr.mxu0 0.0
      %628 = vmatpush1.msra.mxu0 %v577
      %629 = vmatprep.subr.mxu0 0.0
      %630 = vmatpush1.msra.mxu0 %v576
      %631 = vmatprep.subr.mxu0 0.0
      %632 = vmatpush1.msra.mxu0 %v575
      %633 = vmatprep.subr.mxu0 0.0
      %634 = vmatpush1.msra.mxu0 %v574
      %635 = vmatprep.subr.mxu0 0.0
      %636 = vmatpush1.msra.mxu0 %v573
      %637 = vmatprep.subr.mxu0 0.0
      %638 = vmatpush2.msra.mxu0 %v604
      %639 = vmatprep.subr.mxu0 0.0
      %640 = vmatpush2.msra.mxu0 %v603
      %641 = vmatprep.subr.mxu0 0.0
      %642 = vmatpush2.msra.mxu0 %v602
      %643 = vmatprep.subr.mxu0 0.0
      %644 = vmatpush2.msra.mxu0 %v601
      %645 = vmatprep.subr.mxu0 0.0
      %646 = vmatpush2.msra.mxu0 %v600
      %647 = vmatprep.subr.mxu0 0.0
      %648 = vmatpush2.msra.mxu0 %v599
      %649 = vmatprep.subr.mxu0 0.0
      %650 = vmatpush2.msra.mxu0 %v598
      %651 = vmatprep.subr.mxu0 0.0
      %652 = vmatpush2.msra.mxu0 %v597
      %653 = vmatprep.subr.mxu0 0.0
      %654 = vmatpush2.msra.mxu0 %v596
      %655 = vmatprep.subr.mxu0 0.0
      %656 = vmatpush2.msra.mxu0 %v595
      %657 = vmatprep.subr.mxu0 0.0
      %658 = vmatpush2.msra.mxu0 %v594
      %659 = vmatprep.subr.mxu0 0.0
      %660 = vmatpush2.msra.mxu0 %v593
      %661 = vmatprep.subr.mxu0 0.0
      %662 = vmatpush2.msra.mxu0 %v592
      %663 = vmatprep.subr.mxu0 0.0
      %664 = vmatpush2.msra.mxu0 %v591
      %665 = vmatprep.subr.mxu0 0.0
      %666 = vmatpush2.msra.mxu0 %v590
      %667 = vmatprep.subr.mxu0 0.0
      %668 = vmatpush2.msra.mxu0 %v589
      %669 = vmatprep.mubr.f32.mxu0 %v501
      %670 = vmatmul.mubr.f32.gmra.mxu0 %v500
      %v671 = vpop.f32.mrf.mxu0
      %v672 = vadd.f32 0.0, %v671
      %v673 = vpop.f32.mrf.mxu0
      %674 = vdwg.mxu0
      %675 = vst [vmem:[%s184 + $0x1] sm:$0x1] %v672
      %s676 = smul.u32 32, %s15
      %p677 = scmp.lt.s32.totalorder %s676, 63
      %s678 = scalar_select %p677, %s676, 63
      %s679 = smul.addr %s678, 8
      %s680 = scalar_lea.vmem %s2, %s679
      %p681 = scmp.lt.s32.totalorder %s15, 1
      %s682 = scalar_select %p681, %s15, 1
      %s683 = smul.addr %s682, 2
      %s684 = scalar_lea.vmem %s3, %s683
      // Predicated region
      $region29: #{linear_bottleneck.5} parent=27 // pred_check
        %p685 = pneg %p80
      $region30: #{linear_bottleneck.5} parent=27 // pred_check_branch
        %687 = sbr.rel (%p685) target = $region32
      $region31: #{linear_bottleneck.5} parent=27 // pred_region
        %s688 = smul.u32 32, %s15
      $region32: #{linear_bottleneck.5} parent=27 // pred_fallthru
        _
      // Predicated region
      $region33: #{linear_bottleneck.5} parent=27 // pred_check
        %p689 = pneg %p106
      $region34: #{linear_bottleneck.5} parent=27 // pred_check_branch
        %691 = sbr.rel (%p689) target = $region36
      $region35: #{linear_bottleneck.5} parent=27 // pred_region
        _
      $region36: #{linear_bottleneck.5} parent=27 // pred_fallthru
        _
    $region28: #{linear_bottleneck.5} parent=5 // pred_fallthru
      _
    %p692 = scmp.le.s32.totalorder 2, %s10
    // Predicated region
    $region37: #{linear_bottleneck.5} parent=5 // pred_check
      %p693 = pneg %p692
    $region38: #{linear_bottleneck.5} parent=5 // pred_check_branch
      %695 = sbr.rel (%p693) target = $region40
    $region39: #{linear_bottleneck.5} parent=5 // pred_region
      %s696 = ssub.s32 %s10, 2
      // Predicated region
      $region41: #{linear_bottleneck.5} parent=39 // pred_check
        %p697 = pneg %p86
      $region42: #{linear_bottleneck.5} parent=39 // pred_check_branch
        %699 = sbr.rel (%p697) target = $region44
      $region43: #{linear_bottleneck.5} parent=39 // pred_region
        %s700 = smul.u32 32, %s16
        %p701 = scmp.lt.s32.totalorder %s700, 63
        %s702 = scalar_select %p701, %s700, 63
        %s703 = smul.addr %s702, 8
        %s704 = scalar_lea.vmem %s2, %s703
      $region44: #{linear_bottleneck.5} parent=39 // pred_fallthru
        _
      // Predicated region
      $region45: #{linear_bottleneck.5} parent=39 // pred_check
        %p705 = pneg %p112
      $region46: #{linear_bottleneck.5} parent=39 // pred_check_branch
        %707 = sbr.rel (%p705) target = $region48
      $region47: #{linear_bottleneck.5} parent=39 // pred_region
        %p708 = scmp.lt.s32.totalorder %s16, 1
        %s709 = scalar_select %p708, %s16, 1
        %s710 = smul.addr %s709, 2
        %s711 = scalar_lea.vmem %s3, %s710
      $region48: #{linear_bottleneck.5} parent=39 // pred_fallthru
        _
    $region40: #{linear_bottleneck.5} parent=5 // pred_fallthru
      _
  $region6: #{linear_bottleneck.5} parent=0 // loop_footer
    %s14 = sadd.s32 1, %s10
  $region7: #{linear_bottleneck.5} parent=0 // loop_footer_branch
    %9 = sbr.rel target = $region3
  $region8: #{linear_bottleneck.5} parent=0 // loop_exit
    _

// kernel: linear_bottleneck.7
$region0: #{linear_bottleneck.7}
  #allocation0 [shape = 'u32[]', space=smem, size = 0x4, offset = 0x4, fixed_abs, tag = 'smem constant byte address 0x4 - core index']
  #allocation1 [shape = 'u32[144,128]{1,0:T(1,128)}', space=vmem, size = 0x12000, scoped, tag = 'internal scratch']
  %s0 = inlined_call_operand.vmem [shape: f32[2,18,18,128], index: 0, kind: input, shape index: {}, may-alias: {0,1,2}]
  %s1 = inlined_call_operand.vmem [shape: f32[2,18,18,128], index: 1, kind: input, shape index: {}, may-alias: {0,1,2}]
  %s2 = inlined_call_operand.vmem [shape: f32[2,18,18,128], index: 2, kind: input, shape index: {}, may-alias: {0,1,2}]
  %s3 = inlined_call_operand.vmem [shape: f32[9,128], index: 3, kind: input, shape index: {}]
  %s4 = inlined_call_operand.vmem [shape: f32[2,16,16,128], index: 4, kind: output, shape index: {0}]
  %s5 = inlined_call_operand.vmem [shape: f32[2,16,2,128], index: 5, kind: output, shape index: {1}]
  %6 = xla_tuple %s4, %s5
  %s7 = sld [smem:[#allocation0]]
  $region57: #{linear_bottleneck.7} parent=0
    _
  %s9 = ssub.s32 1, %s7
  %s10 = scalar_select 0, %s9, %s7
  loop: start=0, step=1, limit=34
  $region2: #{linear_bottleneck.7} parent=0 // loop_pre_header
    _
  $region3: #{linear_bottleneck.7} parent=0 // loop_header
    %s12 = sphi 0, %s16
    %p13 = scmp.ge.s32.totalorder %s12, 34
    %s19 = sphi 0, %s31
    %s20 = sphi 0, %s27
    %s21 = sphi 0, %s19
    %s22 = sphi 0, %s20
    %s23 = sphi 0, %s21
    %s24 = sphi 0, %s22
    %s36 = sphi 0, %s38
    %s39 = sphi 0, %s36
    %s40 = sphi 0, %s39
    %s56 = sphi 0, %s40
    %s66 = sphi 0, %s68
    %s69 = sphi 0, %s66
    %s70 = sphi 0, %s69
    %s86 = sphi 0, %s70
    %s96 = sphi 0, %s98
    %s99 = sphi 0, %s96
    %s100 = sphi 0, %s99
    %s116 = sphi 0, %s100
    %s120 = sphi 0, %s120
    %s122 = sphi 0, %s120
    %s123 = sphi 0, %s122
    %s137 = sphi 0, %s123
    %s145 = sphi 0, %s147
    %s148 = sphi 0, %s145
    %s149 = sphi 0, %s148
    %s165 = sphi 0, %s149
    %s173 = sphi 0, %s175
    %s176 = sphi 0, %s173
    %s177 = sphi 0, %s176
    %s193 = sphi 0, %s177
  $region4: #{linear_bottleneck.7} parent=0 // loop_header_branch
    %15 = sbr.rel (%p13) target = $region8
  $region5: #{linear_bottleneck.7} parent=0 // loop_body
    %s17 = ssub.s32 %s12, 1
    %s18 = ssub.s32 %s12, 2
    %s25 = sadd.s32 1, %s20
    %p26 = scmp.ge.s32.totalorder %s25, 16
    %s27 = scalar_select %p26, 0, %s25
    %s28 = sadd.s32 1, %s19
    %s29 = scalar_select %p26, %s28, %s19
    %p30 = scmp.ge.s32.totalorder %s29, 2
    %s31 = scalar_select %p30, 0, %s29
    %s32 = ssub.s32 %s19, %s31
    %s33 = ssub.s32 %s20, %s27
    %s34 = sor.u32 %s32, %s33
    %p35 = scmp.eq.s32.totalorder %s34, 0
    %s37 = sadd.s32 %s36, 1
    %s38 = scalar_select %p35, %s36, %s37
    %p41 = pneg %p35
    %p42 = scmp.eq.s32.totalorder %s12, 31
    %p43 = por %p41, %p42
    %p44 = scmp.ne.s32.totalorder %s36, %s39
    %p45 = scmp.eq.s32.totalorder %s12, 0
    %p46 = por %p44, %p45
    %p47 = scmp.ne.s32.totalorder %s36, %s39
    %p48 = scmp.eq.s32.totalorder %s17, 31
    %p49 = por %p47, %p48
    %p50 = scmp.ne.s32.totalorder %s39, %s40
    %p51 = scmp.eq.s32.totalorder %s17, 0
    %p52 = por %p50, %p51
    %p53 = scmp.ne.s32.totalorder %s39, %s40
    %p54 = scmp.eq.s32.totalorder %s18, 31
    %p55 = por %p53, %p54
    %p57 = scmp.ne.s32.totalorder %s40, %s56
    %p58 = scmp.eq.s32.totalorder %s18, 0
    %p59 = por %p57, %p58
    %s60 = sadd.s32 %s20, 1
    %s61 = sadd.s32 %s27, 1
    %s62 = ssub.s32 %s19, %s31
    %s63 = ssub.s32 %s60, %s61
    %s64 = sor.u32 %s62, %s63
    %p65 = scmp.eq.s32.totalorder %s64, 0
    %s67 = sadd.s32 %s66, 1
    %s68 = scalar_select %p65, %s66, %s67
    %p71 = pneg %p65
    %p72 = scmp.eq.s32.totalorder %s12, 31
    %p73 = por %p71, %p72
    %p74 = scmp.ne.s32.totalorder %s66, %s69
    %p75 = scmp.eq.s32.totalorder %s12, 0
    %p76 = por %p74, %p75
    %p77 = scmp.ne.s32.totalorder %s66, %s69
    %p78 = scmp.eq.s32.totalorder %s17, 31
    %p79 = por %p77, %p78
    %p80 = scmp.ne.s32.totalorder %s69, %s70
    %p81 = scmp.eq.s32.totalorder %s17, 0
    %p82 = por %p80, %p81
    %p83 = scmp.ne.s32.totalorder %s69, %s70
    %p84 = scmp.eq.s32.totalorder %s18, 31
    %p85 = por %p83, %p84
    %p87 = scmp.ne.s32.totalorder %s70, %s86
    %p88 = scmp.eq.s32.totalorder %s18, 0
    %p89 = por %p87, %p88
    %s90 = sadd.s32 %s20, 2
    %s91 = sadd.s32 %s27, 2
    %s92 = ssub.s32 %s19, %s31
    %s93 = ssub.s32 %s90, %s91
    %s94 = sor.u32 %s92, %s93
    %p95 = scmp.eq.s32.totalorder %s94, 0
    %s97 = sadd.s32 %s96, 1
    %s98 = scalar_select %p95, %s96, %s97
    %p101 = pneg %p95
    %p102 = scmp.eq.s32.totalorder %s12, 31
    %p103 = por %p101, %p102
    %p104 = scmp.ne.s32.totalorder %s96, %s99
    %p105 = scmp.eq.s32.totalorder %s12, 0
    %p106 = por %p104, %p105
    %p107 = scmp.ne.s32.totalorder %s96, %s99
    %p108 = scmp.eq.s32.totalorder %s17, 31
    %p109 = por %p107, %p108
    %p110 = scmp.ne.s32.totalorder %s99, %s100
    %p111 = scmp.eq.s32.totalorder %s17, 0
    %p112 = por %p110, %p111
    %p113 = scmp.ne.s32.totalorder %s99, %s100
    %p114 = scmp.eq.s32.totalorder %s18, 31
    %p115 = por %p113, %p114
    %p117 = scmp.ne.s32.totalorder %s100, %s116
    %p118 = scmp.eq.s32.totalorder %s18, 0
    %p119 = por %p117, %p118
    %s121 = sadd.s32 %s120, 1
    %p124 = scmp.eq.s32.totalorder %s12, 31
    %p125 = scmp.ne.s32.totalorder %s120, %s122
    %p126 = scmp.eq.s32.totalorder %s12, 0
    %p127 = por %p125, %p126
    %p128 = scmp.ne.s32.totalorder %s120, %s122
    %p129 = scmp.eq.s32.totalorder %s17, 31
    %p130 = por %p128, %p129
    %p131 = scmp.ne.s32.totalorder %s122, %s123
    %p132 = scmp.eq.s32.totalorder %s17, 0
    %p133 = por %p131, %p132
    %p134 = scmp.ne.s32.totalorder %s122, %s123
    %p135 = scmp.eq.s32.totalorder %s18, 31
    %p136 = por %p134, %p135
    %p138 = scmp.ne.s32.totalorder %s123, %s137
    %p139 = scmp.eq.s32.totalorder %s18, 0
    %p140 = por %p138, %p139
    %s141 = ssub.s32 %s19, %s31
    %s142 = ssub.s32 %s20, %s27
    %s143 = sor.u32 %s141, %s142
    %p144 = scmp.eq.s32.totalorder %s143, 0
    %s146 = sadd.s32 %s145, 1
    %s147 = scalar_select %p144, %s145, %s146
    %p150 = pneg %p144
    %p151 = scmp.eq.s32.totalorder %s12, 31
    %p152 = por %p150, %p151
    %p153 = scmp.ne.s32.totalorder %s145, %s148
    %p154 = scmp.eq.s32.totalorder %s12, 0
    %p155 = por %p153, %p154
    %p156 = scmp.ne.s32.totalorder %s145, %s148
    %p157 = scmp.eq.s32.totalorder %s17, 31
    %p158 = por %p156, %p157
    %p159 = scmp.ne.s32.totalorder %s148, %s149
    %p160 = scmp.eq.s32.totalorder %s17, 0
    %p161 = por %p159, %p160
    %p162 = scmp.ne.s32.totalorder %s148, %s149
    %p163 = scmp.eq.s32.totalorder %s18, 31
    %p164 = por %p162, %p163
    %p166 = scmp.ne.s32.totalorder %s149, %s165
    %p167 = scmp.eq.s32.totalorder %s18, 0
    %p168 = por %p166, %p167
    %s169 = ssub.s32 %s19, %s31
    %s170 = ssub.s32 %s20, %s27
    %s171 = sor.u32 %s169, %s170
    %p172 = scmp.eq.s32.totalorder %s171, 0
    %s174 = sadd.s32 %s173, 1
    %s175 = scalar_select %p172, %s173, %s174
    %p178 = pneg %p172
    %p179 = scmp.eq.s32.totalorder %s12, 31
    %p180 = por %p178, %p179
    %p181 = scmp.ne.s32.totalorder %s173, %s176
    %p182 = scmp.eq.s32.totalorder %s12, 0
    %p183 = por %p181, %p182
    %p184 = scmp.ne.s32.totalorder %s173, %s176
    %p185 = scmp.eq.s32.totalorder %s17, 31
    %p186 = por %p184, %p185
    %p187 = scmp.ne.s32.totalorder %s176, %s177
    %p188 = scmp.eq.s32.totalorder %s17, 0
    %p189 = por %p187, %p188
    %p190 = scmp.ne.s32.totalorder %s176, %s177
    %p191 = scmp.eq.s32.totalorder %s18, 31
    %p192 = por %p190, %p191
    %p194 = scmp.ne.s32.totalorder %s177, %s193
    %p195 = scmp.eq.s32.totalorder %s18, 0
    %p196 = por %p194, %p195
    %p197 = scmp.le.s32.totalorder 1, %s12
    %p198 = scmp.lt.s32.totalorder %s12, 33
    %p199 = pnand %p197, %p198
    %p200 = pneg %p199
    // Predicated region
    $region9: #{linear_bottleneck.7} parent=5 // pred_check
      _
    $region10: #{linear_bottleneck.7} parent=5 // pred_check_branch
      %202 = sbr.rel (%p199) target = $region12
    $region11: #{linear_bottleneck.7} parent=5 // pred_region
      %s203 = ssub.s32 %s12, 1
      // Predicated region
      $region13: #{linear_bottleneck.7} parent=11 // pred_check
        %p204 = pneg %p133
      $region14: #{linear_bottleneck.7} parent=11 // pred_check_branch
        %206 = sbr.rel (%p204) target = $region16
      $region15: #{linear_bottleneck.7} parent=11 // pred_region
        _
      $region16: #{linear_bottleneck.7} parent=11 // pred_fallthru
        _
    $region12: #{linear_bottleneck.7} parent=5 // pred_fallthru
      _
    %p207 = scmp.lt.s32.totalorder %s12, 32
    // Predicated region
    $region17: #{linear_bottleneck.7} parent=5 // pred_check
      %p208 = pneg %p207
    $region18: #{linear_bottleneck.7} parent=5 // pred_check_branch
      %210 = sbr.rel (%p208) target = $region20
    $region19: #{linear_bottleneck.7} parent=5 // pred_region
      // Predicated region
      $region21: #{linear_bottleneck.7} parent=19 // pred_check
        %p211 = pneg %p46
      $region22: #{linear_bottleneck.7} parent=19 // pred_check_branch
        %213 = sbr.rel (%p211) target = $region24
      $region23: #{linear_bottleneck.7} parent=19 // pred_region
        %p214 = scmp.lt.s32.totalorder %s19, 1
        %s215 = scalar_select %p214, %s19, 1
        %p216 = scmp.lt.s32.totalorder %s20, 17
        %s217 = scalar_select %p216, %s20, 17
        %s218 = smul.addr %s217, 3
        %s219 = smul.addr %s215, 54
        %s220 = sadd.s32 %s218, %s219
        %s221 = smul.addr %s220, 8
        %s222 = scalar_lea.vmem %s0, %s221
      $region24: #{linear_bottleneck.7} parent=19 // pred_fallthru
        _
      // Predicated region
      $region25: #{linear_bottleneck.7} parent=19 // pred_check
        %p223 = pneg %p76
      $region26: #{linear_bottleneck.7} parent=19 // pred_check_branch
        %225 = sbr.rel (%p223) target = $region28
      $region27: #{linear_bottleneck.7} parent=19 // pred_region
        %s226 = sadd.s32 %s20, 1
        %p227 = scmp.lt.s32.totalorder %s19, 1
        %s228 = scalar_select %p227, %s19, 1
        %p229 = scmp.lt.s32.totalorder %s226, 17
        %s230 = scalar_select %p229, %s226, 17
        %s231 = smul.addr %s230, 3
        %s232 = smul.addr %s228, 54
        %s233 = sadd.s32 %s231, %s232
        %s234 = smul.addr %s233, 8
        %s235 = scalar_lea.vmem %s1, %s234
        %s236 = sadd.s32 %s20, 1
      $region28: #{linear_bottleneck.7} parent=19 // pred_fallthru
        _
      // Predicated region
      $region29: #{linear_bottleneck.7} parent=19 // pred_check
        %p237 = pneg %p106
      $region30: #{linear_bottleneck.7} parent=19 // pred_check_branch
        %239 = sbr.rel (%p237) target = $region32
      $region31: #{linear_bottleneck.7} parent=19 // pred_region
        %s240 = sadd.s32 %s20, 2
        %p241 = scmp.lt.s32.totalorder %s19, 1
        %s242 = scalar_select %p241, %s19, 1
        %p243 = scmp.lt.s32.totalorder %s240, 17
        %s244 = scalar_select %p243, %s240, 17
        %s245 = smul.addr %s244, 3
        %s246 = smul.addr %s242, 54
        %s247 = sadd.s32 %s245, %s246
        %s248 = smul.addr %s247, 8
        %s249 = scalar_lea.vmem %s2, %s248
        %s250 = sadd.s32 %s20, 2
      $region32: #{linear_bottleneck.7} parent=19 // pred_fallthru
        _
    $region20: #{linear_bottleneck.7} parent=5 // pred_fallthru
      _
    %p251 = scmp.le.s32.totalorder 1, %s12
    %p252 = scmp.lt.s32.totalorder %s12, 33
    %p253 = pnand %p251, %p252
    %p254 = pneg %p253
    // Predicated region
    $region33: #{linear_bottleneck.7} parent=5 // pred_check
      _
    $region34: #{linear_bottleneck.7} parent=5 // pred_check_branch
      %256 = sbr.rel (%p253) target = $region36
    $region35: #{linear_bottleneck.7} parent=5 // pred_region
      %s257 = ssub.s32 %s12, 1
      %p258 = scmp.lt.s32.totalorder %s21, 1
      %s259 = scalar_select %p258, %s21, 1
      %p260 = scmp.lt.s32.totalorder %s22, 17
      %s261 = scalar_select %p260, %s22, 17
      %s262 = smul.addr %s261, 3
      %s263 = smul.addr %s259, 54
      %s264 = sadd.s32 %s262, %s263
      %s265 = smul.addr %s264, 8
      %s266 = scalar_lea.vmem %s0, %s265
      %p267 = pneg %p52
      %p268 = pneg %p49
      %s269 = sadd.s32 %s22, 1
      %p270 = scmp.lt.s32.totalorder %s21, 1
      %s271 = scalar_select %p270, %s21, 1
      %p272 = scmp.lt.s32.totalorder %s269, 17
      %s273 = scalar_select %p272, %s269, 17
      %s274 = smul.addr %s273, 3
      %s275 = smul.addr %s271, 54
      %s276 = sadd.s32 %s274, %s275
      %s277 = smul.addr %s276, 8
      %s278 = scalar_lea.vmem %s1, %s277
      %p279 = pneg %p82
      %p280 = pneg %p79
      %s281 = sadd.s32 %s22, 2
      %p282 = scmp.lt.s32.totalorder %s21, 1
      %s283 = scalar_select %p282, %s21, 1
      %p284 = scmp.lt.s32.totalorder %s281, 17
      %s285 = scalar_select %p284, %s281, 17
      %s286 = smul.addr %s285, 3
      %s287 = smul.addr %s283, 54
      %s288 = sadd.s32 %s286, %s287
      %s289 = smul.addr %s288, 8
      %s290 = scalar_lea.vmem %s2, %s289
      %p291 = pneg %p112
      %p292 = pneg %p109
      %p293 = pneg %p133
      %p294 = pneg %p130
      %p295 = pneg %p161
      %p296 = pneg %p158
      %p297 = scmp.lt.s32.totalorder %s21, 1
      %s298 = scalar_select %p297, %s21, 1
      %p299 = scmp.lt.s32.totalorder %s22, 15
      %s300 = scalar_select %p299, %s22, 15
      %s301 = smul.addr %s300, 2
      %s302 = smul.addr %s298, 32
      %s303 = sadd.s32 %s301, %s302
      %s304 = smul.addr %s303, 8
      %s305 = scalar_lea.vmem %s4, %s304
      %p306 = pneg %p189
      %p307 = pneg %p186
      %p308 = scmp.lt.s32.totalorder %s21, 1
      %s309 = scalar_select %p308, %s21, 1
      %p310 = scmp.lt.s32.totalorder %s22, 15
      %s311 = scalar_select %p310, %s22, 15
      %s312 = smul.addr %s309, 16
      %s313 = sadd.s32 %s311, %s312
      %s314 = smul.addr %s313, 2
      %s315 = scalar_lea.vmem %s5, %s314
      %p316 = scmp.lt.s32.totalorder %s21, 1
      %s317 = scalar_select %p316, %s21, 1
      %p318 = scmp.lt.s32.totalorder %s22, 17
      %s319 = scalar_select %p318, %s22, 17
      %s320 = smul.addr %s319, 3
      %s321 = smul.addr %s317, 54
      %s322 = sadd.s32 %s320, %s321
      %s323 = smul.addr %s322, 8
      %s324 = scalar_lea.vmem %s0, %s323
      %s325 = sadd.s32 %s22, 1
      %p326 = scmp.lt.s32.totalorder %s21, 1
      %s327 = scalar_select %p326, %s21, 1
      %p328 = scmp.lt.s32.totalorder %s325, 17
      %s329 = scalar_select %p328, %s325, 17
      %s330 = smul.addr %s329, 3
      %s331 = smul.addr %s327, 54
      %s332 = sadd.s32 %s330, %s331
      %s333 = smul.addr %s332, 8
      %s334 = scalar_lea.vmem %s1, %s333
      %s335 = sadd.s32 %s22, 1
      %s336 = sadd.s32 %s22, 2
      %p337 = scmp.lt.s32.totalorder %s21, 1
      %s338 = scalar_select %p337, %s21, 1
      %p339 = scmp.lt.s32.totalorder %s336, 17
      %s340 = scalar_select %p339, %s336, 17
      %s341 = smul.addr %s340, 3
      %s342 = smul.addr %s338, 54
      %s343 = sadd.s32 %s341, %s342
      %s344 = smul.addr %s343, 8
      %s345 = scalar_lea.vmem %s2, %s344
      %s346 = sadd.s32 %s22, 2
      %p347 = scmp.lt.s32.totalorder %s21, 1
      %s348 = scalar_select %p347, %s21, 1
      %p349 = scmp.lt.s32.totalorder %s22, 15
      %s350 = scalar_select %p349, %s22, 15
      %s351 = smul.addr %s350, 2
      %s352 = smul.addr %s348, 32
      %s353 = sadd.s32 %s351, %s352
      %s354 = smul.addr %s353, 8
      %s355 = scalar_lea.vmem %s4, %s354
      %p356 = scmp.lt.s32.totalorder %s21, 1
      %s357 = scalar_select %p356, %s21, 1
      %p358 = scmp.lt.s32.totalorder %s22, 15
      %s359 = scalar_select %p358, %s22, 15
      %s360 = smul.addr %s357, 16
      %s361 = sadd.s32 %s359, %s360
      %s362 = smul.addr %s361, 2
      %s363 = scalar_lea.vmem %s5, %s362
      %v364 = vld [vmem:[%s3] sm:$0xff]
      %v365 = vld [vmem:[%s3 + $0x8] sm:$0x1]
      %v366 = vld [vmem:[%s324] sm:$0xff]
      %v367 = vld [vmem:[%s324 + $0x8] sm:$0xff]
      %v368 = vld [vmem:[%s324 + $0x10] sm:$0x3]
      %v369 = vld [vmem:[%s334] sm:$0xff]
      %v370 = vld [vmem:[%s334 + $0x8] sm:$0xff]
      %v371 = vld [vmem:[%s334 + $0x10] sm:$0x3]
      %v372 = vld [vmem:[%s345] sm:$0xff]
      %v373 = vld [vmem:[%s345 + $0x8] sm:$0xff]
      %v374 = vld [vmem:[%s345 + $0x10] sm:$0x3]
      %v375 = vlaneseq
      %v376 = vshrl.u32 %v375, 7
      %v377 = vsub.s32 0, %v376
      %v378 = vrot.slane %v364, %v377
      %v379 = vmul.f32 %v366, %v378
      %v380 = vmul.f32 %v367, %v378
      %v381 = vadd.f32 %v379, 0.0
      %v382 = vadd.f32 %v380, 0.0
      %v383 = vlaneseq
      %v384 = vshrl.u32 %v383, 7
      %v385 = vsub.s32 1, %v384
      %v386 = vrot.slane %v364, %v385
      %v387 = vmul.f32 %v366, %v386
      %v388 = vmul.f32 %v367, %v386
      %v389 = vmul.f32 %v368, %v386
      %vm393 = vcmask 1046528
      %v394 = vrot.slane %v387, 1
      %v395 = vrot.slane %v388, 1
      %v396 = vsel %vm393, %v394, %v395
      %v397 = vrot.slane %v389, 1
      %v398 = vsel %vm393, %v395, %v397
      %v401 = vadd.f32 %v381, %v396
      %v402 = vadd.f32 %v382, %v398
      %v403 = vlaneseq
      %v404 = vshrl.u32 %v403, 7
      %v405 = vsub.s32 2, %v404
      %v406 = vrot.slane %v364, %v405
      %v407 = vmul.f32 %v366, %v406
      %v408 = vmul.f32 %v367, %v406
      %v409 = vmul.f32 %v368, %v406
      %vm413 = vcmask 1045504
      %v414 = vrot.slane %v407, 2
      %v415 = vrot.slane %v408, 2
      %v416 = vsel %vm413, %v414, %v415
      %v417 = vrot.slane %v409, 2
      %v418 = vsel %vm413, %v415, %v417
      %v421 = vadd.f32 %v401, %v416
      %v422 = vadd.f32 %v402, %v418
      %v423 = vlaneseq
      %v424 = vshrl.u32 %v423, 7
      %v425 = vsub.s32 3, %v424
      %v426 = vrot.slane %v364, %v425
      %v427 = vmul.f32 %v369, %v426
      %v428 = vmul.f32 %v370, %v426
      %v429 = vadd.f32 %v421, %v427
      %v430 = vadd.f32 %v422, %v428
      %v431 = vlaneseq
      %v432 = vshrl.u32 %v431, 7
      %v433 = vsub.s32 4, %v432
      %v434 = vrot.slane %v364, %v433
      %v435 = vmul.f32 %v369, %v434
      %v436 = vmul.f32 %v370, %v434
      %v437 = vmul.f32 %v371, %v434
      %v441 = vrot.slane %v435, 1
      %v442 = vrot.slane %v436, 1
      %v443 = vsel %vm393, %v441, %v442
      %v444 = vrot.slane %v437, 1
      %v445 = vsel %vm393, %v442, %v444
      %v448 = vadd.f32 %v429, %v443
      %v449 = vadd.f32 %v430, %v445
      %v450 = vlaneseq
      %v451 = vshrl.u32 %v450, 7
      %v452 = vsub.s32 5, %v451
      %v453 = vrot.slane %v364, %v452
      %v454 = vmul.f32 %v369, %v453
      %v455 = vmul.f32 %v370, %v453
      %v456 = vmul.f32 %v371, %v453
      %v460 = vrot.slane %v454, 2
      %v461 = vrot.slane %v455, 2
      %v462 = vsel %vm413, %v460, %v461
      %v463 = vrot.slane %v456, 2
      %v464 = vsel %vm413, %v461, %v463
      %v467 = vadd.f32 %v448, %v462
      %v468 = vadd.f32 %v449, %v464
      %v469 = vlaneseq
      %v470 = vshrl.u32 %v469, 7
      %v471 = vsub.s32 6, %v470
      %v472 = vrot.slane %v364, %v471
      %v473 = vmul.f32 %v372, %v472
      %v474 = vmul.f32 %v373, %v472
      %v475 = vadd.f32 %v467, %v473
      %v476 = vadd.f32 %v468, %v474
      %v477 = vlaneseq
      %v478 = vshrl.u32 %v477, 7
      %v479 = vsub.s32 7, %v478
      %v480 = vrot.slane %v364, %v479
      %v481 = vmul.f32 %v372, %v480
      %v482 = vmul.f32 %v373, %v480
      %v483 = vmul.f32 %v374, %v480
      %v487 = vrot.slane %v481, 1
      %v488 = vrot.slane %v482, 1
      %v489 = vsel %vm393, %v487, %v488
      %v490 = vrot.slane %v483, 1
      %v491 = vsel %vm393, %v488, %v490
      %v494 = vadd.f32 %v475, %v489
      %v495 = vadd.f32 %v476, %v491
      %v496 = vlaneseq
      %v497 = vshrl.u32 %v496, 7
      %v498 = vsub.s32 0, %v497
      %v499 = vrot.slane %v365, %v498
      %v500 = vmul.f32 %v372, %v499
      %v501 = vmul.f32 %v373, %v499
      %v502 = vmul.f32 %v374, %v499
      %v506 = vrot.slane %v500, 2
      %v507 = vrot.slane %v501, 2
      %v508 = vsel %vm413, %v506, %v507
      %v509 = vrot.slane %v502, 2
      %v510 = vsel %vm413, %v507, %v509
      %v513 = vadd.f32 %v494, %v508
      %v514 = vadd.f32 %v495, %v510
      %515 = vst [vmem:[%s355] sm:$0xff] %v513
      %516 = vst [vmem:[%s355 + $0x8] sm:$0xff] %v514
      %vm517 = vcmask 130048
      %v519 = vsel %vm517, 1.0, 0
      %521 = vmatprep.subr.mxu0 0.0
      %522 = vmatpush1.msra.mxu0 0.0
      %523 = vmatprep.subr.mxu0 0.0
      %524 = vmatpush1.msra.mxu0 0.0
      %525 = vmatprep.subr.mxu0 0.0
      %526 = vmatpush1.msra.mxu0 0.0
      %527 = vmatprep.subr.mxu0 0.0
      %528 = vmatpush1.msra.mxu0 0.0
      %529 = vmatprep.subr.mxu0 0.0
      %530 = vmatpush1.msra.mxu0 0.0
      %531 = vmatprep.subr.mxu0 0.0
      %532 = vmatpush1.msra.mxu0 0.0
      %533 = vmatprep.subr.mxu0 0.0
      %534 = vmatpush1.msra.mxu0 0.0
      %535 = vmatprep.subr.mxu0 0.0
      %536 = vmatpush1.msra.mxu0 0.0
      %537 = vmatprep.subr.mxu0 0.0
      %538 = vmatpush1.msra.mxu0 0.0
      %539 = vmatprep.subr.mxu0 0.0
      %540 = vmatpush1.msra.mxu0 0.0
      %541 = vmatprep.subr.mxu0 0.0
      %542 = vmatpush1.msra.mxu0 0.0
      %543 = vmatprep.subr.mxu0 0.0
      %544 = vmatpush1.msra.mxu0 0.0
      %545 = vmatprep.subr.mxu0 0.0
      %546 = vmatpush1.msra.mxu0 0.0
      %547 = vmatprep.subr.mxu0 0.0
      %548 = vmatpush1.msra.mxu0 0.0
      %549 = vmatprep.subr.mxu0 0.0
      %550 = vmatpush1.msra.mxu0 %v514
      %551 = vmatprep.subr.mxu0 0.0
      %552 = vmatpush1.msra.mxu0 %v513
      %553 = vmatprep.subr.mxu0 0.0
      %554 = vmatpush2.msra.mxu0 0.0
      %555 = vmatprep.subr.mxu0 0.0
      %556 = vmatpush2.msra.mxu0 0.0
      %557 = vmatprep.subr.mxu0 0.0
      %558 = vmatpush2.msra.mxu0 0.0
      %559 = vmatprep.subr.mxu0 0.0
      %560 = vmatpush2.msra.mxu0 0.0
      %561 = vmatprep.subr.mxu0 0.0
      %562 = vmatpush2.msra.mxu0 0.0
      %563 = vmatprep.subr.mxu0 0.0
      %564 = vmatpush2.msra.mxu0 0.0
      %565 = vmatprep.subr.mxu0 0.0
      %566 = vmatpush2.msra.mxu0 0.0
      %567 = vmatprep.subr.mxu0 0.0
      %568 = vmatpush2.msra.mxu0 0.0
      %569 = vmatprep.subr.mxu0 0.0
      %570 = vmatpush2.msra.mxu0 0.0
      %571 = vmatprep.subr.mxu0 0.0
      %572 = vmatpush2.msra.mxu0 0.0
      %573 = vmatprep.subr.mxu0 0.0
      %574 = vmatpush2.msra.mxu0 0.0
      %575 = vmatprep.subr.mxu0 0.0
      %576 = vmatpush2.msra.mxu0 0.0
      %577 = vmatprep.subr.mxu0 0.0
      %578 = vmatpush2.msra.mxu0 0.0
      %579 = vmatprep.subr.mxu0 0.0
      %580 = vmatpush2.msra.mxu0 0.0
      %581 = vmatprep.subr.mxu0 0.0
      %582 = vmatpush2.msra.mxu0 0.0
      %583 = vmatprep.subr.mxu0 0.0
      %584 = vmatpush2.msra.mxu0 0.0
      %585 = vmatprep.mubr.f32.mxu0 0.0
      %586 = vmatmul.mubr.f32.gmra.mxu0 %v519
      %v587 = vpop.f32.mrf.mxu0
      %v588 = vadd.f32 0.0, %v587
      %v589 = vpop.f32.mrf.mxu0
      %590 = vdwg.mxu0
      %591 = vst [vmem:[%s363] sm:$0x1] %v588
      %v592 = vmul.f32 %v513, %v513
      %v593 = vmul.f32 %v514, %v514
      %594 = vmatprep.subr.mxu0 0.0
      %595 = vmatpush1.msra.mxu0 0.0
      %596 = vmatprep.subr.mxu0 0.0
      %597 = vmatpush1.msra.mxu0 0.0
      %598 = vmatprep.subr.mxu0 0.0
      %599 = vmatpush1.msra.mxu0 0.0
      %600 = vmatprep.subr.mxu0 0.0
      %601 = vmatpush1.msra.mxu0 0.0
      %602 = vmatprep.subr.mxu0 0.0
      %603 = vmatpush1.msra.mxu0 0.0
      %604 = vmatprep.subr.mxu0 0.0
      %605 = vmatpush1.msra.mxu0 0.0
      %606 = vmatprep.subr.mxu0 0.0
      %607 = vmatpush1.msra.mxu0 0.0
      %608 = vmatprep.subr.mxu0 0.0
      %609 = vmatpush1.msra.mxu0 0.0
      %610 = vmatprep.subr.mxu0 0.0
      %611 = vmatpush1.msra.mxu0 0.0
      %612 = vmatprep.subr.mxu0 0.0
      %613 = vmatpush1.msra.mxu0 0.0
      %614 = vmatprep.subr.mxu0 0.0
      %615 = vmatpush1.msra.mxu0 0.0
      %616 = vmatprep.subr.mxu0 0.0
      %617 = vmatpush1.msra.mxu0 0.0
      %618 = vmatprep.subr.mxu0 0.0
      %619 = vmatpush1.msra.mxu0 0.0
      %620 = vmatprep.subr.mxu0 0.0
      %621 = vmatpush1.msra.mxu0 0.0
      %622 = vmatprep.subr.mxu0 0.0
      %623 = vmatpush1.msra.mxu0 %v593
      %624 = vmatprep.subr.mxu0 0.0
      %625 = vmatpush1.msra.mxu0 %v592
      %626 = vmatprep.subr.mxu0 0.0
      %627 = vmatpush2.msra.mxu0 0.0
      %628 = vmatprep.subr.mxu0 0.0
      %629 = vmatpush2.msra.mxu0 0.0
      %630 = vmatprep.subr.mxu0 0.0
      %631 = vmatpush2.msra.mxu0 0.0
      %632 = vmatprep.subr.mxu0 0.0
      %633 = vmatpush2.msra.mxu0 0.0
      %634 = vmatprep.subr.mxu0 0.0
      %635 = vmatpush2.msra.mxu0 0.0
      %636 = vmatprep.subr.mxu0 0.0
      %637 = vmatpush2.msra.mxu0 0.0
      %638 = vmatprep.subr.mxu0 0.0
      %639 = vmatpush2.msra.mxu0 0.0
      %640 = vmatprep.subr.mxu0 0.0
      %641 = vmatpush2.msra.mxu0 0.0
      %642 = vmatprep.subr.mxu0 0.0
      %643 = vmatpush2.msra.mxu0 0.0
      %644 = vmatprep.subr.mxu0 0.0
      %645 = vmatpush2.msra.mxu0 0.0
      %646 = vmatprep.subr.mxu0 0.0
      %647 = vmatpush2.msra.mxu0 0.0
      %648 = vmatprep.subr.mxu0 0.0
      %649 = vmatpush2.msra.mxu0 0.0
      %650 = vmatprep.subr.mxu0 0.0
      %651 = vmatpush2.msra.mxu0 0.0
      %652 = vmatprep.subr.mxu0 0.0
      %653 = vmatpush2.msra.mxu0 0.0
      %654 = vmatprep.subr.mxu0 0.0
      %655 = vmatpush2.msra.mxu0 0.0
      %656 = vmatprep.subr.mxu0 0.0
      %657 = vmatpush2.msra.mxu0 0.0
      %658 = vmatprep.mubr.f32.mxu0 0.0
      %659 = vmatmul.mubr.f32.gmra.mxu0 %v519
      %v660 = vpop.f32.mrf.mxu0
      %v661 = vadd.f32 0.0, %v660
      %v662 = vpop.f32.mrf.mxu0
      %663 = vdwg.mxu0
      %664 = vst [vmem:[%s363 + $0x1] sm:$0x1] %v661
      %p665 = scmp.lt.s32.totalorder %s21, 1
      %s666 = scalar_select %p665, %s21, 1
      %p667 = scmp.lt.s32.totalorder %s22, 15
      %s668 = scalar_select %p667, %s22, 15
      %s669 = smul.addr %s668, 2
      %s670 = smul.addr %s666, 32
      %s671 = sadd.s32 %s669, %s670
      %s672 = smul.addr %s671, 8
      %s673 = scalar_lea.vmem %s4, %s672
      %p674 = scmp.lt.s32.totalorder %s21, 1
      %s675 = scalar_select %p674, %s21, 1
      %p676 = scmp.lt.s32.totalorder %s22, 15
      %s677 = scalar_select %p676, %s22, 15
      %s678 = smul.addr %s675, 16
      %s679 = sadd.s32 %s677, %s678
      %s680 = smul.addr %s679, 2
      %s681 = scalar_lea.vmem %s5, %s680
      // Predicated region
      $region37: #{linear_bottleneck.7} parent=35 // pred_check
        %p682 = pneg %p158
      $region38: #{linear_bottleneck.7} parent=35 // pred_check_branch
        %684 = sbr.rel (%p682) target = $region40
      $region39: #{linear_bottleneck.7} parent=35 // pred_region
        _
      $region40: #{linear_bottleneck.7} parent=35 // pred_fallthru
        _
      // Predicated region
      $region41: #{linear_bottleneck.7} parent=35 // pred_check
        %p685 = pneg %p186
      $region42: #{linear_bottleneck.7} parent=35 // pred_check_branch
        %687 = sbr.rel (%p685) target = $region44
      $region43: #{linear_bottleneck.7} parent=35 // pred_region
        _
      $region44: #{linear_bottleneck.7} parent=35 // pred_fallthru
        _
    $region36: #{linear_bottleneck.7} parent=5 // pred_fallthru
      _
    %p688 = scmp.le.s32.totalorder 2, %s12
    // Predicated region
    $region45: #{linear_bottleneck.7} parent=5 // pred_check
      %p689 = pneg %p688
    $region46: #{linear_bottleneck.7} parent=5 // pred_check_branch
      %691 = sbr.rel (%p689) target = $region48
    $region47: #{linear_bottleneck.7} parent=5 // pred_region
      %s692 = ssub.s32 %s12, 2
      // Predicated region
      $region49: #{linear_bottleneck.7} parent=47 // pred_check
        %p693 = pneg %p164
      $region50: #{linear_bottleneck.7} parent=47 // pred_check_branch
        %695 = sbr.rel (%p693) target = $region52
      $region51: #{linear_bottleneck.7} parent=47 // pred_region
        %p696 = scmp.lt.s32.totalorder %s23, 1
        %s697 = scalar_select %p696, %s23, 1
        %p698 = scmp.lt.s32.totalorder %s24, 15
        %s699 = scalar_select %p698, %s24, 15
        %s700 = smul.addr %s699, 2
        %s701 = smul.addr %s697, 32
        %s702 = sadd.s32 %s700, %s701
        %s703 = smul.addr %s702, 8
        %s704 = scalar_lea.vmem %s4, %s703
      $region52: #{linear_bottleneck.7} parent=47 // pred_fallthru
        _
      // Predicated region
      $region53: #{linear_bottleneck.7} parent=47 // pred_check
        %p705 = pneg %p192
      $region54: #{linear_bottleneck.7} parent=47 // pred_check_branch
        %707 = sbr.rel (%p705) target = $region56
      $region55: #{linear_bottleneck.7} parent=47 // pred_region
        %p708 = scmp.lt.s32.totalorder %s23, 1
        %s709 = scalar_select %p708, %s23, 1
        %p710 = scmp.lt.s32.totalorder %s24, 15
        %s711 = scalar_select %p710, %s24, 15
        %s712 = smul.addr %s709, 16
        %s713 = sadd.s32 %s711, %s712
        %s714 = smul.addr %s713, 2
        %s715 = scalar_lea.vmem %s5, %s714
      $region56: #{linear_bottleneck.7} parent=47 // pred_fallthru
        _
    $region48: #{linear_bottleneck.7} parent=5 // pred_fallthru
      _
  $region6: #{linear_bottleneck.7} parent=0 // loop_footer
    %s16 = sadd.s32 1, %s12
  $region7: #{linear_bottleneck.7} parent=0 // loop_footer_branch
    %11 = sbr.rel target = $region3
  $region8: #{linear_bottleneck.7} parent=0 // loop_exit
    _

// kernel: linear_bottleneck.9
$region0: #{linear_bottleneck.9}
  #allocation0 [shape = 'u32[]', space=smem, size = 0x4, offset = 0x4, fixed_abs, tag = 'smem constant byte address 0x4 - core index']
  #allocation1 [shape = 'u32[144,128]{1,0:T(1,128)}', space=vmem, size = 0x12000, scoped, tag = 'internal scratch']
  %s0 = inlined_call_operand.vmem [shape: f32[512,128], index: 0, kind: input, shape index: {}]
  %s1 = inlined_call_operand.vmem [shape: f32[2,128], index: 1, kind: input, shape index: {}]
  %s2 = inlined_call_operand.vmem [shape: f32[512,128], index: 2, kind: input, shape index: {}]
  %s3 = inlined_call_operand.vmem [shape: f32[512,128], index: 3, kind: output, shape index: {}]
  %s4 = sld [smem:[#allocation0]]
  $region45: #{linear_bottleneck.9} parent=0
    _
  %s6 = ssub.s32 1, %s4
  %s7 = scalar_select 0, %s6, %s4
  loop: start=0, step=1, limit=4
  $region2: #{linear_bottleneck.9} parent=0 // loop_pre_header
    _
  $region3: #{linear_bottleneck.9} parent=0 // loop_header
    %s9 = sphi 0, %s13
    %p10 = scmp.ge.s32.totalorder %s9, 4
    %s19 = sphi 0, %s21
    %s22 = sphi 0, %s19
    %s23 = sphi 0, %s22
    %s39 = sphi 0, %s23
    %s43 = sphi 0, %s43
    %s45 = sphi 0, %s43
    %s46 = sphi 0, %s45
    %s60 = sphi 0, %s46
    %s66 = sphi 0, %s68
    %s69 = sphi 0, %s66
    %s70 = sphi 0, %s69
    %s86 = sphi 0, %s70
    %s92 = sphi 0, %s94
    %s95 = sphi 0, %s92
    %s96 = sphi 0, %s95
    %s112 = sphi 0, %s96
  $region4: #{linear_bottleneck.9} parent=0 // loop_header_branch
    %12 = sbr.rel (%p10) target = $region8
  $region5: #{linear_bottleneck.9} parent=0 // loop_body
    %s14 = ssub.s32 %s9, 1
    %s15 = ssub.s32 %s9, 2
    %s16 = sadd.s32 %s9, 1
    %s17 = ssub.s32 %s9, %s16
    %p18 = scmp.eq.s32.totalorder %s17, 0
    %s20 = sadd.s32 %s19, 1
    %s21 = scalar_select %p18, %s19, %s20
    %p24 = pneg %p18
    %p25 = scmp.eq.s32.totalorder %s9, 1
    %p26 = por %p24, %p25
    %p27 = scmp.ne.s32.totalorder %s19, %s22
    %p28 = scmp.eq.s32.totalorder %s9, 0
    %p29 = por %p27, %p28
    %p30 = scmp.ne.s32.totalorder %s19, %s22
    %p31 = scmp.eq.s32.totalorder %s14, 1
    %p32 = por %p30, %p31
    %p33 = scmp.ne.s32.totalorder %s22, %s23
    %p34 = scmp.eq.s32.totalorder %s14, 0
    %p35 = por %p33, %p34
    %p36 = scmp.ne.s32.totalorder %s22, %s23
    %p37 = scmp.eq.s32.totalorder %s15, 1
    %p38 = por %p36, %p37
    %p40 = scmp.ne.s32.totalorder %s23, %s39
    %p41 = scmp.eq.s32.totalorder %s15, 0
    %p42 = por %p40, %p41
    %s44 = sadd.s32 %s43, 1
    %p47 = scmp.eq.s32.totalorder %s9, 1
    %p48 = scmp.ne.s32.totalorder %s43, %s45
    %p49 = scmp.eq.s32.totalorder %s9, 0
    %p50 = por %p48, %p49
    %p51 = scmp.ne.s32.totalorder %s43, %s45
    %p52 = scmp.eq.s32.totalorder %s14, 1
    %p53 = por %p51, %p52
    %p54 = scmp.ne.s32.totalorder %s45, %s46
    %p55 = scmp.eq.s32.totalorder %s14, 0
    %p56 = por %p54, %p55
    %p57 = scmp.ne.s32.totalorder %s45, %s46
    %p58 = scmp.eq.s32.totalorder %s15, 1
    %p59 = por %p57, %p58
    %p61 = scmp.ne.s32.totalorder %s46, %s60
    %p62 = scmp.eq.s32.totalorder %s15, 0
    %p63 = por %p61, %p62
    %s64 = ssub.s32 %s9, %s16
    %p65 = scmp.eq.s32.totalorder %s64, 0
    %s67 = sadd.s32 %s66, 1
    %s68 = scalar_select %p65, %s66, %s67
    %p71 = pneg %p65
    %p72 = scmp.eq.s32.totalorder %s9, 1
    %p73 = por %p71, %p72
    %p74 = scmp.ne.s32.totalorder %s66, %s69
    %p75 = scmp.eq.s32.totalorder %s9, 0
    %p76 = por %p74, %p75
    %p77 = scmp.ne.s32.totalorder %s66, %s69
    %p78 = scmp.eq.s32.totalorder %s14, 1
    %p79 = por %p77, %p78
    %p80 = scmp.ne.s32.totalorder %s69, %s70
    %p81 = scmp.eq.s32.totalorder %s14, 0
    %p82 = por %p80, %p81
    %p83 = scmp.ne.s32.totalorder %s69, %s70
    %p84 = scmp.eq.s32.totalorder %s15, 1
    %p85 = por %p83, %p84
    %p87 = scmp.ne.s32.totalorder %s70, %s86
    %p88 = scmp.eq.s32.totalorder %s15, 0
    %p89 = por %p87, %p88
    %s90 = ssub.s32 %s9, %s16
    %p91 = scmp.eq.s32.totalorder %s90, 0
    %s93 = sadd.s32 %s92, 1
    %s94 = scalar_select %p91, %s92, %s93
    %p97 = pneg %p91
    %p98 = scmp.eq.s32.totalorder %s9, 1
    %p99 = por %p97, %p98
    %p100 = scmp.ne.s32.totalorder %s92, %s95
    %p101 = scmp.eq.s32.totalorder %s9, 0
    %p102 = por %p100, %p101
    %p103 = scmp.ne.s32.totalorder %s92, %s95
    %p104 = scmp.eq.s32.totalorder %s14, 1
    %p105 = por %p103, %p104
    %p106 = scmp.ne.s32.totalorder %s95, %s96
    %p107 = scmp.eq.s32.totalorder %s14, 0
    %p108 = por %p106, %p107
    %p109 = scmp.ne.s32.totalorder %s95, %s96
    %p110 = scmp.eq.s32.totalorder %s15, 1
    %p111 = por %p109, %p110
    %p113 = scmp.ne.s32.totalorder %s96, %s112
    %p114 = scmp.eq.s32.totalorder %s15, 0
    %p115 = por %p113, %p114
    %p116 = scmp.le.s32.totalorder 1, %s9
    %p117 = scmp.lt.s32.totalorder %s9, 3
    %p118 = pnand %p116, %p117
    %p119 = pneg %p118
    // Predicated region
    $region9: #{linear_bottleneck.9} parent=5 // pred_check
      _
    $region10: #{linear_bottleneck.9} parent=5 // pred_check_branch
      %121 = sbr.rel (%p118) target = $region12
    $region11: #{linear_bottleneck.9} parent=5 // pred_region
      %s122 = ssub.s32 %s9, 1
      // Predicated region
      $region13: #{linear_bottleneck.9} parent=11 // pred_check
        %p123 = pneg %p56
      $region14: #{linear_bottleneck.9} parent=11 // pred_check_branch
        %125 = sbr.rel (%p123) target = $region16
      $region15: #{linear_bottleneck.9} parent=11 // pred_region
        _
      $region16: #{linear_bottleneck.9} parent=11 // pred_fallthru
        _
    $region12: #{linear_bottleneck.9} parent=5 // pred_fallthru
      _
    %p126 = scmp.lt.s32.totalorder %s9, 2
    // Predicated region
    $region17: #{linear_bottleneck.9} parent=5 // pred_check
      %p127 = pneg %p126
    $region18: #{linear_bottleneck.9} parent=5 // pred_check_branch
      %129 = sbr.rel (%p127) target = $region20
    $region19: #{linear_bottleneck.9} parent=5 // pred_region
      // Predicated region
      $region21: #{linear_bottleneck.9} parent=19 // pred_check
        %p130 = pneg %p29
      $region22: #{linear_bottleneck.9} parent=19 // pred_check_branch
        %132 = sbr.rel (%p130) target = $region24
      $region23: #{linear_bottleneck.9} parent=19 // pred_region
        %s133 = smul.u32 32, %s9
        %p134 = scmp.lt.s32.totalorder %s133, 63
        %s135 = scalar_select %p134, %s133, 63
        %s136 = smul.addr %s135, 8
        %s137 = scalar_lea.vmem %s0, %s136
        %s138 = smul.u32 32, %s9
      $region24: #{linear_bottleneck.9} parent=19 // pred_fallthru
        _
      // Predicated region
      $region25: #{linear_bottleneck.9} parent=19 // pred_check
        %p139 = pneg %p76
      $region26: #{linear_bottleneck.9} parent=19 // pred_check_branch
        %141 = sbr.rel (%p139) target = $region28
      $region27: #{linear_bottleneck.9} parent=19 // pred_region
        %s142 = smul.u32 32, %s9
        %p143 = scmp.lt.s32.totalorder %s142, 63
        %s144 = scalar_select %p143, %s142, 63
        %s145 = smul.addr %s144, 8
        %s146 = scalar_lea.vmem %s2, %s145
        %s147 = smul.u32 32, %s9
      $region28: #{linear_bottleneck.9} parent=19 // pred_fallthru
        _
    $region20: #{linear_bottleneck.9} parent=5 // pred_fallthru
      _
    %p148 = scmp.le.s32.totalorder 1, %s9
    %p149 = scmp.lt.s32.totalorder %s9, 3
    %p150 = pnand %p148, %p149
    %p151 = pneg %p150
    // Predicated region
    $region29: #{linear_bottleneck.9} parent=5 // pred_check
      _
    $region30: #{linear_bottleneck.9} parent=5 // pred_check_branch
      %153 = sbr.rel (%p150) target = $region32
    $region31: #{linear_bottleneck.9} parent=5 // pred_region
      %s154 = ssub.s32 %s9, 1
      %s155 = smul.u32 32, %s14
      %p156 = scmp.lt.s32.totalorder %s155, 63
      %s157 = scalar_select %p156, %s155, 63
      %s158 = smul.addr %s157, 8
      %s159 = scalar_lea.vmem %s0, %s158
      %p160 = pneg %p35
      %p161 = pneg %p32
      %p162 = pneg %p56
      %p163 = pneg %p53
      %s164 = smul.u32 32, %s14
      %p165 = scmp.lt.s32.totalorder %s164, 63
      %s166 = scalar_select %p165, %s164, 63
      %s167 = smul.addr %s166, 8
      %s168 = scalar_lea.vmem %s2, %s167
      %p169 = pneg %p82
      %p170 = pneg %p79
      %p171 = pneg %p108
      %p172 = pneg %p105
      %s173 = smul.u32 32, %s14
      %p174 = scmp.lt.s32.totalorder %s173, 63
      %s175 = scalar_select %p174, %s173, 63
      %s176 = smul.addr %s175, 8
      %s177 = scalar_lea.vmem %s3, %s176
      %s178 = smul.u32 32, %s14
      %p179 = scmp.lt.s32.totalorder %s178, 63
      %s180 = scalar_select %p179, %s178, 63
      %s181 = smul.addr %s180, 8
      %s182 = scalar_lea.vmem %s0, %s181
      %s183 = smul.u32 32, %s14
      %s184 = smul.u32 32, %s14
      %p185 = scmp.lt.s32.totalorder %s184, 63
      %s186 = scalar_select %p185, %s184, 63
      %s187 = smul.addr %s186, 8
      %s188 = scalar_lea.vmem %s2, %s187
      %s189 = smul.u32 32, %s14
      %s190 = smul.u32 32, %s14
      %p191 = scmp.lt.s32.totalorder %s190, 63
      %s192 = scalar_select %p191, %s190, 63
      %s193 = smul.addr %s192, 8
      %s194 = scalar_lea.vmem %s3, %s193
      %s195 = smul.u32 32, %s14
      %v196 = vld [vmem:[%s182] sm:$0xff]
      %v197 = vld [vmem:[%s182 + $0x8] sm:$0xff]
      %v198 = vld [vmem:[%s182 + $0x10] sm:$0xff]
      %v199 = vld [vmem:[%s182 + $0x18] sm:$0xff]
      %v200 = vld [vmem:[%s182 + $0x20] sm:$0xff]
      %v201 = vld [vmem:[%s182 + $0x28] sm:$0xff]
      %v202 = vld [vmem:[%s182 + $0x30] sm:$0xff]
      %v203 = vld [vmem:[%s182 + $0x38] sm:$0xff]
      %v204 = vld [vmem:[%s182 + $0x40] sm:$0xff]
      %v205 = vld [vmem:[%s182 + $0x48] sm:$0xff]
      %v206 = vld [vmem:[%s182 + $0x50] sm:$0xff]
      %v207 = vld [vmem:[%s182 + $0x58] sm:$0xff]
      %v208 = vld [vmem:[%s182 + $0x60] sm:$0xff]
      %v209 = vld [vmem:[%s182 + $0x68] sm:$0xff]
      %v210 = vld [vmem:[%s182 + $0x70] sm:$0xff]
      %v211 = vld [vmem:[%s182 + $0x78] sm:$0xff]
      %v212 = vld [vmem:[%s182 + $0x80] sm:$0xff]
      %v213 = vld [vmem:[%s182 + $0x88] sm:$0xff]
      %v214 = vld [vmem:[%s182 + $0x90] sm:$0xff]
      %v215 = vld [vmem:[%s182 + $0x98] sm:$0xff]
      %v216 = vld [vmem:[%s182 + $0xa0] sm:$0xff]
      %v217 = vld [vmem:[%s182 + $0xa8] sm:$0xff]
      %v218 = vld [vmem:[%s182 + $0xb0] sm:$0xff]
      %v219 = vld [vmem:[%s182 + $0xb8] sm:$0xff]
      %v220 = vld [vmem:[%s182 + $0xc0] sm:$0xff]
      %v221 = vld [vmem:[%s182 + $0xc8] sm:$0xff]
      %v222 = vld [vmem:[%s182 + $0xd0] sm:$0xff]
      %v223 = vld [vmem:[%s182 + $0xd8] sm:$0xff]
      %v224 = vld [vmem:[%s182 + $0xe0] sm:$0xff]
      %v225 = vld [vmem:[%s182 + $0xe8] sm:$0xff]
      %v226 = vld [vmem:[%s182 + $0xf0] sm:$0xff]
      %v227 = vld [vmem:[%s182 + $0xf8] sm:$0xff]
      %v228 = vld [vmem:[%s1] sm:$0x1]
      %v229 = vlaneseq
      %v230 = vshrl.u32 %v229, 7
      %v231 = vsub.s32 0, %v230
      %v232 = vrot.slane %v228, %v231
      %v233 = vmul.f32 %v196, %v232
      %v234 = vmul.f32 %v197, %v232
      %v235 = vmul.f32 %v198, %v232
      %v236 = vmul.f32 %v199, %v232
      %v237 = vmul.f32 %v200, %v232
      %v238 = vmul.f32 %v201, %v232
      %v239 = vmul.f32 %v202, %v232
      %v240 = vmul.f32 %v203, %v232
      %v241 = vmul.f32 %v204, %v232
      %v242 = vmul.f32 %v205, %v232
      %v243 = vmul.f32 %v206, %v232
      %v244 = vmul.f32 %v207, %v232
      %v245 = vmul.f32 %v208, %v232
      %v246 = vmul.f32 %v209, %v232
      %v247 = vmul.f32 %v210, %v232
      %v248 = vmul.f32 %v211, %v232
      %v249 = vmul.f32 %v212, %v232
      %v250 = vmul.f32 %v213, %v232
      %v251 = vmul.f32 %v214, %v232
      %v252 = vmul.f32 %v215, %v232
      %v253 = vmul.f32 %v216, %v232
      %v254 = vmul.f32 %v217, %v232
      %v255 = vmul.f32 %v218, %v232
      %v256 = vmul.f32 %v219, %v232
      %v257 = vmul.f32 %v220, %v232
      %v258 = vmul.f32 %v221, %v232
      %v259 = vmul.f32 %v222, %v232
      %v260 = vmul.f32 %v223, %v232
      %v261 = vmul.f32 %v224, %v232
      %v262 = vmul.f32 %v225, %v232
      %v263 = vmul.f32 %v226, %v232
      %v264 = vmul.f32 %v227, %v232
      %v265 = vld [vmem:[%s1 + $0x1] sm:$0x1]
      %v266 = vlaneseq
      %v267 = vshrl.u32 %v266, 7
      %v268 = vsub.s32 0, %v267
      %v269 = vrot.slane %v265, %v268
      %v270 = vadd.f32 %v233, %v269
      %v271 = vadd.f32 %v234, %v269
      %v272 = vadd.f32 %v235, %v269
      %v273 = vadd.f32 %v236, %v269
      %v274 = vadd.f32 %v237, %v269
      %v275 = vadd.f32 %v238, %v269
      %v276 = vadd.f32 %v239, %v269
      %v277 = vadd.f32 %v240, %v269
      %v278 = vadd.f32 %v241, %v269
      %v279 = vadd.f32 %v242, %v269
      %v280 = vadd.f32 %v243, %v269
      %v281 = vadd.f32 %v244, %v269
      %v282 = vadd.f32 %v245, %v269
      %v283 = vadd.f32 %v246, %v269
      %v284 = vadd.f32 %v247, %v269
      %v285 = vadd.f32 %v248, %v269
      %v286 = vadd.f32 %v249, %v269
      %v287 = vadd.f32 %v250, %v269
      %v288 = vadd.f32 %v251, %v269
      %v289 = vadd.f32 %v252, %v269
      %v290 = vadd.f32 %v253, %v269
      %v291 = vadd.f32 %v254, %v269
      %v292 = vadd.f32 %v255, %v269
      %v293 = vadd.f32 %v256, %v269
      %v294 = vadd.f32 %v257, %v269
      %v295 = vadd.f32 %v258, %v269
      %v296 = vadd.f32 %v259, %v269
      %v297 = vadd.f32 %v260, %v269
      %v298 = vadd.f32 %v261, %v269
      %v299 = vadd.f32 %v262, %v269
      %v300 = vadd.f32 %v263, %v269
      %v301 = vadd.f32 %v264, %v269
      %v302 = vmax.f32 %v270, 0.0
      %v303 = vmax.f32 %v271, 0.0
      %v304 = vmax.f32 %v272, 0.0
      %v305 = vmax.f32 %v273, 0.0
      %v306 = vmax.f32 %v274, 0.0
      %v307 = vmax.f32 %v275, 0.0
      %v308 = vmax.f32 %v276, 0.0
      %v309 = vmax.f32 %v277, 0.0
      %v310 = vmax.f32 %v278, 0.0
      %v311 = vmax.f32 %v279, 0.0
      %v312 = vmax.f32 %v280, 0.0
      %v313 = vmax.f32 %v281, 0.0
      %v314 = vmax.f32 %v282, 0.0
      %v315 = vmax.f32 %v283, 0.0
      %v316 = vmax.f32 %v284, 0.0
      %v317 = vmax.f32 %v285, 0.0
      %v318 = vmax.f32 %v286, 0.0
      %v319 = vmax.f32 %v287, 0.0
      %v320 = vmax.f32 %v288, 0.0
      %v321 = vmax.f32 %v289, 0.0
      %v322 = vmax.f32 %v290, 0.0
      %v323 = vmax.f32 %v291, 0.0
      %v324 = vmax.f32 %v292, 0.0
      %v325 = vmax.f32 %v293, 0.0
      %v326 = vmax.f32 %v294, 0.0
      %v327 = vmax.f32 %v295, 0.0
      %v328 = vmax.f32 %v296, 0.0
      %v329 = vmax.f32 %v297, 0.0
      %v330 = vmax.f32 %v298, 0.0
      %v331 = vmax.f32 %v299, 0.0
      %v332 = vmax.f32 %v300, 0.0
      %v333 = vmax.f32 %v301, 0.0
      %v334 = vld [vmem:[%s188] sm:$0xff]
      %v335 = vld [vmem:[%s188 + $0x8] sm:$0xff]
      %v336 = vld [vmem:[%s188 + $0x10] sm:$0xff]
      %v337 = vld [vmem:[%s188 + $0x18] sm:$0xff]
      %v338 = vld [vmem:[%s188 + $0x20] sm:$0xff]
      %v339 = vld [vmem:[%s188 + $0x28] sm:$0xff]
      %v340 = vld [vmem:[%s188 + $0x30] sm:$0xff]
      %v341 = vld [vmem:[%s188 + $0x38] sm:$0xff]
      %v342 = vld [vmem:[%s188 + $0x40] sm:$0xff]
      %v343 = vld [vmem:[%s188 + $0x48] sm:$0xff]
      %v344 = vld [vmem:[%s188 + $0x50] sm:$0xff]
      %v345 = vld [vmem:[%s188 + $0x58] sm:$0xff]
      %v346 = vld [vmem:[%s188 + $0x60] sm:$0xff]
      %v347 = vld [vmem:[%s188 + $0x68] sm:$0xff]
      %v348 = vld [vmem:[%s188 + $0x70] sm:$0xff]
      %v349 = vld [vmem:[%s188 + $0x78] sm:$0xff]
      %v350 = vld [vmem:[%s188 + $0x80] sm:$0xff]
      %v351 = vld [vmem:[%s188 + $0x88] sm:$0xff]
      %v352 = vld [vmem:[%s188 + $0x90] sm:$0xff]
      %v353 = vld [vmem:[%s188 + $0x98] sm:$0xff]
      %v354 = vld [vmem:[%s188 + $0xa0] sm:$0xff]
      %v355 = vld [vmem:[%s188 + $0xa8] sm:$0xff]
      %v356 = vld [vmem:[%s188 + $0xb0] sm:$0xff]
      %v357 = vld [vmem:[%s188 + $0xb8] sm:$0xff]
      %v358 = vld [vmem:[%s188 + $0xc0] sm:$0xff]
      %v359 = vld [vmem:[%s188 + $0xc8] sm:$0xff]
      %v360 = vld [vmem:[%s188 + $0xd0] sm:$0xff]
      %v361 = vld [vmem:[%s188 + $0xd8] sm:$0xff]
      %v362 = vld [vmem:[%s188 + $0xe0] sm:$0xff]
      %v363 = vld [vmem:[%s188 + $0xe8] sm:$0xff]
      %v364 = vld [vmem:[%s188 + $0xf0] sm:$0xff]
      %v365 = vld [vmem:[%s188 + $0xf8] sm:$0xff]
      %v366 = vadd.f32 %v302, %v334
      %v367 = vadd.f32 %v303, %v335
      %v368 = vadd.f32 %v304, %v336
      %v369 = vadd.f32 %v305, %v337
      %v370 = vadd.f32 %v306, %v338
      %v371 = vadd.f32 %v307, %v339
      %v372 = vadd.f32 %v308, %v340
      %v373 = vadd.f32 %v309, %v341
      %v374 = vadd.f32 %v310, %v342
      %v375 = vadd.f32 %v311, %v343
      %v376 = vadd.f32 %v312, %v344
      %v377 = vadd.f32 %v313, %v345
      %v378 = vadd.f32 %v314, %v346
      %v379 = vadd.f32 %v315, %v347
      %v380 = vadd.f32 %v316, %v348
      %v381 = vadd.f32 %v317, %v349
      %v382 = vadd.f32 %v318, %v350
      %v383 = vadd.f32 %v319, %v351
      %v384 = vadd.f32 %v320, %v352
      %v385 = vadd.f32 %v321, %v353
      %v386 = vadd.f32 %v322, %v354
      %v387 = vadd.f32 %v323, %v355
      %v388 = vadd.f32 %v324, %v356
      %v389 = vadd.f32 %v325, %v357
      %v390 = vadd.f32 %v326, %v358
      %v391 = vadd.f32 %v327, %v359
      %v392 = vadd.f32 %v328, %v360
      %v393 = vadd.f32 %v329, %v361
      %v394 = vadd.f32 %v330, %v362
      %v395 = vadd.f32 %v331, %v363
      %v396 = vadd.f32 %v332, %v364
      %v397 = vadd.f32 %v333, %v365
      %398 = vst [vmem:[%s194] sm:$0xff] %v366
      %399 = vst [vmem:[%s194 + $0x8] sm:$0xff] %v367
      %400 = vst [vmem:[%s194 + $0x10] sm:$0xff] %v368
      %401 = vst [vmem:[%s194 + $0x18] sm:$0xff] %v369
      %402 = vst [vmem:[%s194 + $0x20] sm:$0xff] %v370
      %403 = vst [vmem:[%s194 + $0x28] sm:$0xff] %v371
      %404 = vst [vmem:[%s194 + $0x30] sm:$0xff] %v372
      %405 = vst [vmem:[%s194 + $0x38] sm:$0xff] %v373
      %406 = vst [vmem:[%s194 + $0x40] sm:$0xff] %v374
      %407 = vst [vmem:[%s194 + $0x48] sm:$0xff] %v375
      %408 = vst [vmem:[%s194 + $0x50] sm:$0xff] %v376
      %409 = vst [vmem:[%s194 + $0x58] sm:$0xff] %v377
      %410 = vst [vmem:[%s194 + $0x60] sm:$0xff] %v378
      %411 = vst [vmem:[%s194 + $0x68] sm:$0xff] %v379
      %412 = vst [vmem:[%s194 + $0x70] sm:$0xff] %v380
      %413 = vst [vmem:[%s194 + $0x78] sm:$0xff] %v381
      %414 = vst [vmem:[%s194 + $0x80] sm:$0xff] %v382
      %415 = vst [vmem:[%s194 + $0x88] sm:$0xff] %v383
      %416 = vst [vmem:[%s194 + $0x90] sm:$0xff] %v384
      %417 = vst [vmem:[%s194 + $0x98] sm:$0xff] %v385
      %418 = vst [vmem:[%s194 + $0xa0] sm:$0xff] %v386
      %419 = vst [vmem:[%s194 + $0xa8] sm:$0xff] %v387
      %420 = vst [vmem:[%s194 + $0xb0] sm:$0xff] %v388
      %421 = vst [vmem:[%s194 + $0xb8] sm:$0xff] %v389
      %422 = vst [vmem:[%s194 + $0xc0] sm:$0xff] %v390
      %423 = vst [vmem:[%s194 + $0xc8] sm:$0xff] %v391
      %424 = vst [vmem:[%s194 + $0xd0] sm:$0xff] %v392
      %425 = vst [vmem:[%s194 + $0xd8] sm:$0xff] %v393
      %426 = vst [vmem:[%s194 + $0xe0] sm:$0xff] %v394
      %427 = vst [vmem:[%s194 + $0xe8] sm:$0xff] %v395
      %428 = vst [vmem:[%s194 + $0xf0] sm:$0xff] %v396
      %429 = vst [vmem:[%s194 + $0xf8] sm:$0xff] %v397
      %s430 = smul.u32 32, %s14
      %p431 = scmp.lt.s32.totalorder %s430, 63
      %s432 = scalar_select %p431, %s430, 63
      %s433 = smul.addr %s432, 8
      %s434 = scalar_lea.vmem %s3, %s433
      // Predicated region
      $region33: #{linear_bottleneck.9} parent=31 // pred_check
        %p435 = pneg %p105
      $region34: #{linear_bottleneck.9} parent=31 // pred_check_branch
        %437 = sbr.rel (%p435) target = $region36
      $region35: #{linear_bottleneck.9} parent=31 // pred_region
        %s438 = smul.u32 32, %s14
      $region36: #{linear_bottleneck.9} parent=31 // pred_fallthru
        _
    $region32: #{linear_bottleneck.9} parent=5 // pred_fallthru
      _
    %p439 = scmp.le.s32.totalorder 2, %s9
    // Predicated region
    $region37: #{linear_bottleneck.9} parent=5 // pred_check
      %p440 = pneg %p439
    $region38: #{linear_bottleneck.9} parent=5 // pred_check_branch
      %442 = sbr.rel (%p440) target = $region40
    $region39: #{linear_bottleneck.9} parent=5 // pred_region
      %s443 = ssub.s32 %s9, 2
      // Predicated region
      $region41: #{linear_bottleneck.9} parent=39 // pred_check
        %p444 = pneg %p111
      $region42: #{linear_bottleneck.9} parent=39 // pred_check_branch
        %446 = sbr.rel (%p444) target = $region44
      $region43: #{linear_bottleneck.9} parent=39 // pred_region
        %s447 = smul.u32 32, %s15
        %p448 = scmp.lt.s32.totalorder %s447, 63
        %s449 = scalar_select %p448, %s447, 63
        %s450 = smul.addr %s449, 8
        %s451 = scalar_lea.vmem %s3, %s450
      $region44: #{linear_bottleneck.9} parent=39 // pred_fallthru
        _
    $region40: #{linear_bottleneck.9} parent=5 // pred_fallthru
      _
  $region6: #{linear_bottleneck.9} parent=0 // loop_footer
    %s13 = sadd.s32 1, %s9
  $region7: #{linear_bottleneck.9} parent=0 // loop_footer_branch
    %8 = sbr.rel target = $region3
  $region8: #{linear_bottleneck.9} parent=0 // loop_exit
    _

// kernel: linear_bottleneck.8
$region0: #{linear_bottleneck.8}
  #allocation0 [shape = 'u32[]', space=smem, size = 0x4, offset = 0x4, fixed_abs, tag = 'smem constant byte address 0x4 - core index']
  #allocation1 [shape = 'u32[144,128]{1,0:T(1,128)}', space=vmem, size = 0x12000, scoped, tag = 'internal scratch']
  %s0 = inlined_call_operand.vmem [shape: f32[512,128], index: 0, kind: input, shape index: {}]
  %s1 = inlined_call_operand.vmem [shape: f32[2,128], index: 1, kind: input, shape index: {}]
  %s2 = inlined_call_operand.vmem [shape: f32[128,128], index: 2, kind: input, shape index: {}]
  %s3 = inlined_call_operand.vmem [shape: f32[512,128], index: 3, kind: output, shape index: {0}]
  %s4 = inlined_call_operand.vmem [shape: f32[2,2,128], index: 4, kind: output, shape index: {1}]
  %5 = xla_tuple %s3, %s4
  %s6 = sld [smem:[#allocation0]]
  $region53: #{linear_bottleneck.8} parent=0
    _
  %s8 = ssub.s32 1, %s6
  %s9 = scalar_select 0, %s8, %s6
  loop: start=0, step=1, limit=4
  $region2: #{linear_bottleneck.8} parent=0 // loop_pre_header
    _
  $region3: #{linear_bottleneck.8} parent=0 // loop_header
    %s11 = sphi 0, %s15
    %p12 = scmp.ge.s32.totalorder %s11, 4
    %s21 = sphi 0, %s23
    %s24 = sphi 0, %s21
    %s25 = sphi 0, %s24
    %s41 = sphi 0, %s25
    %s45 = sphi 0, %s45
    %s47 = sphi 0, %s45
    %s48 = sphi 0, %s47
    %s62 = sphi 0, %s48
    %s66 = sphi 0, %s66
    %s68 = sphi 0, %s66
    %s69 = sphi 0, %s68
    %s83 = sphi 0, %s69
    %s89 = sphi 0, %s91
    %s92 = sphi 0, %s89
    %s93 = sphi 0, %s92
    %s109 = sphi 0, %s93
    %s115 = sphi 0, %s117
    %s118 = sphi 0, %s115
    %s119 = sphi 0, %s118
    %s135 = sphi 0, %s119
  $region4: #{linear_bottleneck.8} parent=0 // loop_header_branch
    %14 = sbr.rel (%p12) target = $region8
  $region5: #{linear_bottleneck.8} parent=0 // loop_body
    %s16 = ssub.s32 %s11, 1
    %s17 = ssub.s32 %s11, 2
    %s18 = sadd.s32 %s11, 1
    %s19 = ssub.s32 %s11, %s18
    %p20 = scmp.eq.s32.totalorder %s19, 0
    %s22 = sadd.s32 %s21, 1
    %s23 = scalar_select %p20, %s21, %s22
    %p26 = pneg %p20
    %p27 = scmp.eq.s32.totalorder %s11, 1
    %p28 = por %p26, %p27
    %p29 = scmp.ne.s32.totalorder %s21, %s24
    %p30 = scmp.eq.s32.totalorder %s11, 0
    %p31 = por %p29, %p30
    %p32 = scmp.ne.s32.totalorder %s21, %s24
    %p33 = scmp.eq.s32.totalorder %s16, 1
    %p34 = por %p32, %p33
    %p35 = scmp.ne.s32.totalorder %s24, %s25
    %p36 = scmp.eq.s32.totalorder %s16, 0
    %p37 = por %p35, %p36
    %p38 = scmp.ne.s32.totalorder %s24, %s25
    %p39 = scmp.eq.s32.totalorder %s17, 1
    %p40 = por %p38, %p39
    %p42 = scmp.ne.s32.totalorder %s25, %s41
    %p43 = scmp.eq.s32.totalorder %s17, 0
    %p44 = por %p42, %p43
    %s46 = sadd.s32 %s45, 1
    %p49 = scmp.eq.s32.totalorder %s11, 1
    %p50 = scmp.ne.s32.totalorder %s45, %s47
    %p51 = scmp.eq.s32.totalorder %s11, 0
    %p52 = por %p50, %p51
    %p53 = scmp.ne.s32.totalorder %s45, %s47
    %p54 = scmp.eq.s32.totalorder %s16, 1
    %p55 = por %p53, %p54
    %p56 = scmp.ne.s32.totalorder %s47, %s48
    %p57 = scmp.eq.s32.totalorder %s16, 0
    %p58 = por %p56, %p57
    %p59 = scmp.ne.s32.totalorder %s47, %s48
    %p60 = scmp.eq.s32.totalorder %s17, 1
    %p61 = por %p59, %p60
    %p63 = scmp.ne.s32.totalorder %s48, %s62
    %p64 = scmp.eq.s32.totalorder %s17, 0
    %p65 = por %p63, %p64
    %s67 = sadd.s32 %s66, 1
    %p70 = scmp.eq.s32.totalorder %s11, 1
    %p71 = scmp.ne.s32.totalorder %s66, %s68
    %p72 = scmp.eq.s32.totalorder %s11, 0
    %p73 = por %p71, %p72
    %p74 = scmp.ne.s32.totalorder %s66, %s68
    %p75 = scmp.eq.s32.totalorder %s16, 1
    %p76 = por %p74, %p75
    %p77 = scmp.ne.s32.totalorder %s68, %s69
    %p78 = scmp.eq.s32.totalorder %s16, 0
    %p79 = por %p77, %p78
    %p80 = scmp.ne.s32.totalorder %s68, %s69
    %p81 = scmp.eq.s32.totalorder %s17, 1
    %p82 = por %p80, %p81
    %p84 = scmp.ne.s32.totalorder %s69, %s83
    %p85 = scmp.eq.s32.totalorder %s17, 0
    %p86 = por %p84, %p85
    %s87 = ssub.s32 %s11, %s18
    %p88 = scmp.eq.s32.totalorder %s87, 0
    %s90 = sadd.s32 %s89, 1
    %s91 = scalar_select %p88, %s89, %s90
    %p94 = pneg %p88
    %p95 = scmp.eq.s32.totalorder %s11, 1
    %p96 = por %p94, %p95
    %p97 = scmp.ne.s32.totalorder %s89, %s92
    %p98 = scmp.eq.s32.totalorder %s11, 0
    %p99 = por %p97, %p98
    %p100 = scmp.ne.s32.totalorder %s89, %s92
    %p101 = scmp.eq.s32.totalorder %s16, 1
    %p102 = por %p100, %p101
    %p103 = scmp.ne.s32.totalorder %s92, %s93
    %p104 = scmp.eq.s32.totalorder %s16, 0
    %p105 = por %p103, %p104
    %p106 = scmp.ne.s32.totalorder %s92, %s93
    %p107 = scmp.eq.s32.totalorder %s17, 1
    %p108 = por %p106, %p107
    %p110 = scmp.ne.s32.totalorder %s93, %s109
    %p111 = scmp.eq.s32.totalorder %s17, 0
    %p112 = por %p110, %p111
    %s113 = ssub.s32 %s11, %s18
    %p114 = scmp.eq.s32.totalorder %s113, 0
    %s116 = sadd.s32 %s115, 1
    %s117 = scalar_select %p114, %s115, %s116
    %p120 = pneg %p114
    %p121 = scmp.eq.s32.totalorder %s11, 1
    %p122 = por %p120, %p121
    %p123 = scmp.ne.s32.totalorder %s115, %s118
    %p124 = scmp.eq.s32.totalorder %s11, 0
    %p125 = por %p123, %p124
    %p126 = scmp.ne.s32.totalorder %s115, %s118
    %p127 = scmp.eq.s32.totalorder %s16, 1
    %p128 = por %p126, %p127
    %p129 = scmp.ne.s32.totalorder %s118, %s119
    %p130 = scmp.eq.s32.totalorder %s16, 0
    %p131 = por %p129, %p130
    %p132 = scmp.ne.s32.totalorder %s118, %s119
    %p133 = scmp.eq.s32.totalorder %s17, 1
    %p134 = por %p132, %p133
    %p136 = scmp.ne.s32.totalorder %s119, %s135
    %p137 = scmp.eq.s32.totalorder %s17, 0
    %p138 = por %p136, %p137
    %p139 = scmp.le.s32.totalorder 1, %s11
    %p140 = scmp.lt.s32.totalorder %s11, 3
    %p141 = pnand %p139, %p140
    %p142 = pneg %p141
    // Predicated region
    $region9: #{linear_bottleneck.8} parent=5 // pred_check
      _
    $region10: #{linear_bottleneck.8} parent=5 // pred_check_branch
      %144 = sbr.rel (%p141) target = $region12
    $region11: #{linear_bottleneck.8} parent=5 // pred_region
      %s145 = ssub.s32 %s11, 1
      // Predicated region
      $region13: #{linear_bottleneck.8} parent=11 // pred_check
        %p146 = pneg %p58
      $region14: #{linear_bottleneck.8} parent=11 // pred_check_branch
        %148 = sbr.rel (%p146) target = $region16
      $region15: #{linear_bottleneck.8} parent=11 // pred_region
        _
      $region16: #{linear_bottleneck.8} parent=11 // pred_fallthru
        _
      // Predicated region
      $region17: #{linear_bottleneck.8} parent=11 // pred_check
        %p149 = pneg %p79
      $region18: #{linear_bottleneck.8} parent=11 // pred_check_branch
        %151 = sbr.rel (%p149) target = $region20
      $region19: #{linear_bottleneck.8} parent=11 // pred_region
        _
      $region20: #{linear_bottleneck.8} parent=11 // pred_fallthru
        _
    $region12: #{linear_bottleneck.8} parent=5 // pred_fallthru
      _
    %p152 = scmp.lt.s32.totalorder %s11, 2
    // Predicated region
    $region21: #{linear_bottleneck.8} parent=5 // pred_check
      %p153 = pneg %p152
    $region22: #{linear_bottleneck.8} parent=5 // pred_check_branch
      %155 = sbr.rel (%p153) target = $region24
    $region23: #{linear_bottleneck.8} parent=5 // pred_region
      // Predicated region
      $region25: #{linear_bottleneck.8} parent=23 // pred_check
        %p156 = pneg %p31
      $region26: #{linear_bottleneck.8} parent=23 // pred_check_branch
        %158 = sbr.rel (%p156) target = $region28
      $region27: #{linear_bottleneck.8} parent=23 // pred_region
        %s159 = smul.u32 32, %s11
        %p160 = scmp.lt.s32.totalorder %s159, 63
        %s161 = scalar_select %p160, %s159, 63
        %s162 = smul.addr %s161, 8
        %s163 = scalar_lea.vmem %s0, %s162
        %s164 = smul.u32 32, %s11
      $region28: #{linear_bottleneck.8} parent=23 // pred_fallthru
        _
    $region24: #{linear_bottleneck.8} parent=5 // pred_fallthru
      _
    %p165 = scmp.le.s32.totalorder 1, %s11
    %p166 = scmp.lt.s32.totalorder %s11, 3
    %p167 = pnand %p165, %p166
    %p168 = pneg %p167
    // Predicated region
    $region29: #{linear_bottleneck.8} parent=5 // pred_check
      _
    $region30: #{linear_bottleneck.8} parent=5 // pred_check_branch
      %170 = sbr.rel (%p167) target = $region32
    $region31: #{linear_bottleneck.8} parent=5 // pred_region
      %s171 = ssub.s32 %s11, 1
      %s172 = smul.u32 32, %s16
      %p173 = scmp.lt.s32.totalorder %s172, 63
      %s174 = scalar_select %p173, %s172, 63
      %s175 = smul.addr %s174, 8
      %s176 = scalar_lea.vmem %s0, %s175
      %p177 = pneg %p37
      %p178 = pneg %p34
      %p179 = pneg %p58
      %p180 = pneg %p55
      %p181 = pneg %p79
      %p182 = pneg %p76
      %p183 = pneg %p105
      %p184 = pneg %p102
      %s185 = smul.u32 32, %s16
      %p186 = scmp.lt.s32.totalorder %s185, 63
      %s187 = scalar_select %p186, %s185, 63
      %s188 = smul.addr %s187, 8
      %s189 = scalar_lea.vmem %s3, %s188
      %p190 = pneg %p131
      %p191 = pneg %p128
      %p192 = scmp.lt.s32.totalorder %s16, 1
      %s193 = scalar_select %p192, %s16, 1
      %s194 = smul.addr %s193, 2
      %s195 = scalar_lea.vmem %s4, %s194
      %s196 = smul.u32 32, %s16
      %p197 = scmp.lt.s32.totalorder %s196, 63
      %s198 = scalar_select %p197, %s196, 63
      %s199 = smul.addr %s198, 8
      %s200 = scalar_lea.vmem %s0, %s199
      %s201 = smul.u32 32, %s16
      %s202 = smul.u32 32, %s16
      %p203 = scmp.lt.s32.totalorder %s202, 63
      %s204 = scalar_select %p203, %s202, 63
      %s205 = smul.addr %s204, 8
      %s206 = scalar_lea.vmem %s3, %s205
      %s207 = smul.u32 32, %s16
      %p208 = scmp.lt.s32.totalorder %s16, 1
      %s209 = scalar_select %p208, %s16, 1
      %s210 = smul.addr %s209, 2
      %s211 = scalar_lea.vmem %s4, %s210
      %v212 = vld [vmem:[%s200] sm:$0xff]
      %v213 = vld [vmem:[%s200 + $0x8] sm:$0xff]
      %v214 = vld [vmem:[%s200 + $0x10] sm:$0xff]
      %v215 = vld [vmem:[%s200 + $0x18] sm:$0xff]
      %v216 = vld [vmem:[%s200 + $0x20] sm:$0xff]
      %v217 = vld [vmem:[%s200 + $0x28] sm:$0xff]
      %v218 = vld [vmem:[%s200 + $0x30] sm:$0xff]
      %v219 = vld [vmem:[%s200 + $0x38] sm:$0xff]
      %v220 = vld [vmem:[%s200 + $0x40] sm:$0xff]
      %v221 = vld [vmem:[%s200 + $0x48] sm:$0xff]
      %v222 = vld [vmem:[%s200 + $0x50] sm:$0xff]
      %v223 = vld [vmem:[%s200 + $0x58] sm:$0xff]
      %v224 = vld [vmem:[%s200 + $0x60] sm:$0xff]
      %v225 = vld [vmem:[%s200 + $0x68] sm:$0xff]
      %v226 = vld [vmem:[%s200 + $0x70] sm:$0xff]
      %v227 = vld [vmem:[%s200 + $0x78] sm:$0xff]
      %v228 = vld [vmem:[%s200 + $0x80] sm:$0xff]
      %v229 = vld [vmem:[%s200 + $0x88] sm:$0xff]
      %v230 = vld [vmem:[%s200 + $0x90] sm:$0xff]
      %v231 = vld [vmem:[%s200 + $0x98] sm:$0xff]
      %v232 = vld [vmem:[%s200 + $0xa0] sm:$0xff]
      %v233 = vld [vmem:[%s200 + $0xa8] sm:$0xff]
      %v234 = vld [vmem:[%s200 + $0xb0] sm:$0xff]
      %v235 = vld [vmem:[%s200 + $0xb8] sm:$0xff]
      %v236 = vld [vmem:[%s200 + $0xc0] sm:$0xff]
      %v237 = vld [vmem:[%s200 + $0xc8] sm:$0xff]
      %v238 = vld [vmem:[%s200 + $0xd0] sm:$0xff]
      %v239 = vld [vmem:[%s200 + $0xd8] sm:$0xff]
      %v240 = vld [vmem:[%s200 + $0xe0] sm:$0xff]
      %v241 = vld [vmem:[%s200 + $0xe8] sm:$0xff]
      %v242 = vld [vmem:[%s200 + $0xf0] sm:$0xff]
      %v243 = vld [vmem:[%s200 + $0xf8] sm:$0xff]
      %v244 = vld [vmem:[%s1] sm:$0x1]
      %v245 = vlaneseq
      %v246 = vshrl.u32 %v245, 7
      %v247 = vsub.s32 0, %v246
      %v248 = vrot.slane %v244, %v247
      %v249 = vmul.f32 %v212, %v248
      %v250 = vmul.f32 %v213, %v248
      %v251 = vmul.f32 %v214, %v248
      %v252 = vmul.f32 %v215, %v248
      %v253 = vmul.f32 %v216, %v248
      %v254 = vmul.f32 %v217, %v248
      %v255 = vmul.f32 %v218, %v248
      %v256 = vmul.f32 %v219, %v248
      %v257 = vmul.f32 %v220, %v248
      %v258 = vmul.f32 %v221, %v248
      %v259 = vmul.f32 %v222, %v248
      %v260 = vmul.f32 %v223, %v248
      %v261 = vmul.f32 %v224, %v248
      %v262 = vmul.f32 %v225, %v248
      %v263 = vmul.f32 %v226, %v248
      %v264 = vmul.f32 %v227, %v248
      %v265 = vmul.f32 %v228, %v248
      %v266 = vmul.f32 %v229, %v248
      %v267 = vmul.f32 %v230, %v248
      %v268 = vmul.f32 %v231, %v248
      %v269 = vmul.f32 %v232, %v248
      %v270 = vmul.f32 %v233, %v248
      %v271 = vmul.f32 %v234, %v248
      %v272 = vmul.f32 %v235, %v248
      %v273 = vmul.f32 %v236, %v248
      %v274 = vmul.f32 %v237, %v248
      %v275 = vmul.f32 %v238, %v248
      %v276 = vmul.f32 %v239, %v248
      %v277 = vmul.f32 %v240, %v248
      %v278 = vmul.f32 %v241, %v248
      %v279 = vmul.f32 %v242, %v248
      %v280 = vmul.f32 %v243, %v248
      %v281 = vld [vmem:[%s1 + $0x1] sm:$0x1]
      %v282 = vlaneseq
      %v283 = vshrl.u32 %v282, 7
      %v284 = vsub.s32 0, %v283
      %v285 = vrot.slane %v281, %v284
      %v286 = vadd.f32 %v249, %v285
      %v287 = vadd.f32 %v250, %v285
      %v288 = vadd.f32 %v251, %v285
      %v289 = vadd.f32 %v252, %v285
      %v290 = vadd.f32 %v253, %v285
      %v291 = vadd.f32 %v254, %v285
      %v292 = vadd.f32 %v255, %v285
      %v293 = vadd.f32 %v256, %v285
      %v294 = vadd.f32 %v257, %v285
      %v295 = vadd.f32 %v258, %v285
      %v296 = vadd.f32 %v259, %v285
      %v297 = vadd.f32 %v260, %v285
      %v298 = vadd.f32 %v261, %v285
      %v299 = vadd.f32 %v262, %v285
      %v300 = vadd.f32 %v263, %v285
      %v301 = vadd.f32 %v264, %v285
      %v302 = vadd.f32 %v265, %v285
      %v303 = vadd.f32 %v266, %v285
      %v304 = vadd.f32 %v267, %v285
      %v305 = vadd.f32 %v268, %v285
      %v306 = vadd.f32 %v269, %v285
      %v307 = vadd.f32 %v270, %v285
      %v308 = vadd.f32 %v271, %v285
      %v309 = vadd.f32 %v272, %v285
      %v310 = vadd.f32 %v273, %v285
      %v311 = vadd.f32 %v274, %v285
      %v312 = vadd.f32 %v275, %v285
      %v313 = vadd.f32 %v276, %v285
      %v314 = vadd.f32 %v277, %v285
      %v315 = vadd.f32 %v278, %v285
      %v316 = vadd.f32 %v279, %v285
      %v317 = vadd.f32 %v280, %v285
      %v318 = vmax.f32 %v286, 0.0
      %v319 = vmax.f32 %v287, 0.0
      %v320 = vmax.f32 %v288, 0.0
      %v321 = vmax.f32 %v289, 0.0
      %v322 = vmax.f32 %v290, 0.0
      %v323 = vmax.f32 %v291, 0.0
      %v324 = vmax.f32 %v292, 0.0
      %v325 = vmax.f32 %v293, 0.0
      %v326 = vmax.f32 %v294, 0.0
      %v327 = vmax.f32 %v295, 0.0
      %v328 = vmax.f32 %v296, 0.0
      %v329 = vmax.f32 %v297, 0.0
      %v330 = vmax.f32 %v298, 0.0
      %v331 = vmax.f32 %v299, 0.0
      %v332 = vmax.f32 %v300, 0.0
      %v333 = vmax.f32 %v301, 0.0
      %v334 = vmax.f32 %v302, 0.0
      %v335 = vmax.f32 %v303, 0.0
      %v336 = vmax.f32 %v304, 0.0
      %v337 = vmax.f32 %v305, 0.0
      %v338 = vmax.f32 %v306, 0.0
      %v339 = vmax.f32 %v307, 0.0
      %v340 = vmax.f32 %v308, 0.0
      %v341 = vmax.f32 %v309, 0.0
      %v342 = vmax.f32 %v310, 0.0
      %v343 = vmax.f32 %v311, 0.0
      %v344 = vmax.f32 %v312, 0.0
      %v345 = vmax.f32 %v313, 0.0
      %v346 = vmax.f32 %v314, 0.0
      %v347 = vmax.f32 %v315, 0.0
      %v348 = vmax.f32 %v316, 0.0
      %v349 = vmax.f32 %v317, 0.0
      %v350 = vld [vmem:[%s2] sm:$0xff]
      %v351 = vld [vmem:[%s2 + $0x8] sm:$0xff]
      %v352 = vld [vmem:[%s2 + $0x10] sm:$0xff]
      %v353 = vld [vmem:[%s2 + $0x18] sm:$0xff]
      %v354 = vld [vmem:[%s2 + $0x20] sm:$0xff]
      %v355 = vld [vmem:[%s2 + $0x28] sm:$0xff]
      %v356 = vld [vmem:[%s2 + $0x30] sm:$0xff]
      %v357 = vld [vmem:[%s2 + $0x38] sm:$0xff]
      %v358 = vld [vmem:[%s2 + $0x40] sm:$0xff]
      %v359 = vld [vmem:[%s2 + $0x48] sm:$0xff]
      %v360 = vld [vmem:[%s2 + $0x50] sm:$0xff]
      %v361 = vld [vmem:[%s2 + $0x58] sm:$0xff]
      %v362 = vld [vmem:[%s2 + $0x60] sm:$0xff]
      %v363 = vld [vmem:[%s2 + $0x68] sm:$0xff]
      %v364 = vld [vmem:[%s2 + $0x70] sm:$0xff]
      %v365 = vld [vmem:[%s2 + $0x78] sm:$0xff]
      %366 = vmatprep.subr.mxu0 0.0
      %367 = vmatpush1.msra.mxu0 %v365
      %368 = vmatprep.subr.mxu0 0.0
      %369 = vmatpush1.msra.mxu0 %v364
      %370 = vmatprep.subr.mxu0 0.0
      %371 = vmatpush1.msra.mxu0 %v363
      %372 = vmatprep.subr.mxu0 0.0
      %373 = vmatpush1.msra.mxu0 %v362
      %374 = vmatprep.subr.mxu0 0.0
      %375 = vmatpush1.msra.mxu0 %v361
      %376 = vmatprep.subr.mxu0 0.0
      %377 = vmatpush1.msra.mxu0 %v360
      %378 = vmatprep.subr.mxu0 0.0
      %379 = vmatpush1.msra.mxu0 %v359
      %380 = vmatprep.subr.mxu0 0.0
      %381 = vmatpush1.msra.mxu0 %v358
      %382 = vmatprep.subr.mxu0 0.0
      %383 = vmatpush1.msra.mxu0 %v357
      %384 = vmatprep.subr.mxu0 0.0
      %385 = vmatpush1.msra.mxu0 %v356
      %386 = vmatprep.subr.mxu0 0.0
      %387 = vmatpush1.msra.mxu0 %v355
      %388 = vmatprep.subr.mxu0 0.0
      %389 = vmatpush1.msra.mxu0 %v354
      %390 = vmatprep.subr.mxu0 0.0
      %391 = vmatpush1.msra.mxu0 %v353
      %392 = vmatprep.subr.mxu0 0.0
      %393 = vmatpush1.msra.mxu0 %v352
      %394 = vmatprep.subr.mxu0 0.0
      %395 = vmatpush1.msra.mxu0 %v351
      %396 = vmatprep.subr.mxu0 0.0
      %397 = vmatpush1.msra.mxu0 %v350
      %398 = vmatprep.subr.mxu0 0.0
      %399 = vmatpush2.msra.mxu0 0.0
      %400 = vmatprep.subr.mxu0 0.0
      %401 = vmatpush2.msra.mxu0 0.0
      %402 = vmatprep.subr.mxu0 0.0
      %403 = vmatpush2.msra.mxu0 0.0
      %404 = vmatprep.subr.mxu0 0.0
      %405 = vmatpush2.msra.mxu0 0.0
      %406 = vmatprep.subr.mxu0 0.0
      %407 = vmatpush2.msra.mxu0 0.0
      %408 = vmatprep.subr.mxu0 0.0
      %409 = vmatpush2.msra.mxu0 0.0
      %410 = vmatprep.subr.mxu0 0.0
      %411 = vmatpush2.msra.mxu0 0.0
      %412 = vmatprep.subr.mxu0 0.0
      %413 = vmatpush2.msra.mxu0 0.0
      %414 = vmatprep.subr.mxu0 0.0
      %415 = vmatpush2.msra.mxu0 0.0
      %416 = vmatprep.subr.mxu0 0.0
      %417 = vmatpush2.msra.mxu0 0.0
      %418 = vmatprep.subr.mxu0 0.0
      %419 = vmatpush2.msra.mxu0 0.0
      %420 = vmatprep.subr.mxu0 0.0
      %421 = vmatpush2.msra.mxu0 0.0
      %422 = vmatprep.subr.mxu0 0.0
      %423 = vmatpush2.msra.mxu0 0.0
      %424 = vmatprep.subr.mxu0 0.0
      %425 = vmatpush2.msra.mxu0 0.0
      %426 = vmatprep.subr.mxu0 0.0
      %427 = vmatpush2.msra.mxu0 0.0
      %428 = vmatprep.subr.mxu0 0.0
      %429 = vmatpush2.msra.mxu0 0.0
      %430 = vmatprep.mubr.f32.mxu0 0.0
      %431 = vmatmul.mubr.f32.gmra.mxu0 %v318
      %v432 = vpop.f32.mrf.mxu0
      %v433 = vadd.f32 0.0, %v432
      %v434 = vpop.f32.mrf.mxu0
      %435 = vmatprep.mubr.f32.mxu0 0.0
      %436 = vmatmul.mubr.f32.gmra.mxu0 %v319
      %v437 = vpop.f32.mrf.mxu0
      %v438 = vadd.f32 0.0, %v437
      %v439 = vpop.f32.mrf.mxu0
      %440 = vmatprep.mubr.f32.mxu0 0.0
      %441 = vmatmul.mubr.f32.gmra.mxu0 %v320
      %v442 = vpop.f32.mrf.mxu0
      %v443 = vadd.f32 0.0, %v442
      %v444 = vpop.f32.mrf.mxu0
      %445 = vmatprep.mubr.f32.mxu0 0.0
      %446 = vmatmul.mubr.f32.gmra.mxu0 %v321
      %v447 = vpop.f32.mrf.mxu0
      %v448 = vadd.f32 0.0, %v447
      %v449 = vpop.f32.mrf.mxu0
      %450 = vmatprep.mubr.f32.mxu0 0.0
      %451 = vmatmul.mubr.f32.gmra.mxu0 %v322
      %v452 = vpop.f32.mrf.mxu0
      %v453 = vadd.f32 0.0, %v452
      %v454 = vpop.f32.mrf.mxu0
      %455 = vmatprep.mubr.f32.mxu0 0.0
      %456 = vmatmul.mubr.f32.gmra.mxu0 %v323
      %v457 = vpop.f32.mrf.mxu0
      %v458 = vadd.f32 0.0, %v457
      %v459 = vpop.f32.mrf.mxu0
      %460 = vmatprep.mubr.f32.mxu0 0.0
      %461 = vmatmul.mubr.f32.gmra.mxu0 %v324
      %v462 = vpop.f32.mrf.mxu0
      %v463 = vadd.f32 0.0, %v462
      %v464 = vpop.f32.mrf.mxu0
      %465 = vmatprep.mubr.f32.mxu0 0.0
      %466 = vmatmul.mubr.f32.gmra.mxu0 %v325
      %v467 = vpop.f32.mrf.mxu0
      %v468 = vadd.f32 0.0, %v467
      %v469 = vpop.f32.mrf.mxu0
      %470 = vmatprep.mubr.f32.mxu0 0.0
      %471 = vmatmul.mubr.f32.gmra.mxu0 %v326
      %v472 = vpop.f32.mrf.mxu0
      %v473 = vadd.f32 0.0, %v472
      %v474 = vpop.f32.mrf.mxu0
      %475 = vmatprep.mubr.f32.mxu0 0.0
      %476 = vmatmul.mubr.f32.gmra.mxu0 %v327
      %v477 = vpop.f32.mrf.mxu0
      %v478 = vadd.f32 0.0, %v477
      %v479 = vpop.f32.mrf.mxu0
      %480 = vmatprep.mubr.f32.mxu0 0.0
      %481 = vmatmul.mubr.f32.gmra.mxu0 %v328
      %v482 = vpop.f32.mrf.mxu0
      %v483 = vadd.f32 0.0, %v482
      %v484 = vpop.f32.mrf.mxu0
      %485 = vmatprep.mubr.f32.mxu0 0.0
      %486 = vmatmul.mubr.f32.gmra.mxu0 %v329
      %v487 = vpop.f32.mrf.mxu0
      %v488 = vadd.f32 0.0, %v487
      %v489 = vpop.f32.mrf.mxu0
      %490 = vmatprep.mubr.f32.mxu0 0.0
      %491 = vmatmul.mubr.f32.gmra.mxu0 %v330
      %v492 = vpop.f32.mrf.mxu0
      %v493 = vadd.f32 0.0, %v492
      %v494 = vpop.f32.mrf.mxu0
      %495 = vmatprep.mubr.f32.mxu0 0.0
      %496 = vmatmul.mubr.f32.gmra.mxu0 %v331
      %v497 = vpop.f32.mrf.mxu0
      %v498 = vadd.f32 0.0, %v497
      %v499 = vpop.f32.mrf.mxu0
      %500 = vmatprep.mubr.f32.mxu0 0.0
      %501 = vmatmul.mubr.f32.gmra.mxu0 %v332
      %v502 = vpop.f32.mrf.mxu0
      %v503 = vadd.f32 0.0, %v502
      %v504 = vpop.f32.mrf.mxu0
      %505 = vmatprep.mubr.f32.mxu0 0.0
      %506 = vmatmul.mubr.f32.gmra.mxu0 %v333
      %v507 = vpop.f32.mrf.mxu0
      %v508 = vadd.f32 0.0, %v507
      %v509 = vpop.f32.mrf.mxu0
      %510 = vmatprep.mubr.f32.mxu0 0.0
      %511 = vmatmul.mubr.f32.gmra.mxu0 %v334
      %v512 = vpop.f32.mrf.mxu0
      %v513 = vadd.f32 0.0, %v512
      %v514 = vpop.f32.mrf.mxu0
      %515 = vmatprep.mubr.f32.mxu0 0.0
      %516 = vmatmul.mubr.f32.gmra.mxu0 %v335
      %v517 = vpop.f32.mrf.mxu0
      %v518 = vadd.f32 0.0, %v517
      %v519 = vpop.f32.mrf.mxu0
      %520 = vmatprep.mubr.f32.mxu0 0.0
      %521 = vmatmul.mubr.f32.gmra.mxu0 %v336
      %v522 = vpop.f32.mrf.mxu0
      %v523 = vadd.f32 0.0, %v522
      %v524 = vpop.f32.mrf.mxu0
      %525 = vmatprep.mubr.f32.mxu0 0.0
      %526 = vmatmul.mubr.f32.gmra.mxu0 %v337
      %v527 = vpop.f32.mrf.mxu0
      %v528 = vadd.f32 0.0, %v527
      %v529 = vpop.f32.mrf.mxu0
      %530 = vmatprep.mubr.f32.mxu0 0.0
      %531 = vmatmul.mubr.f32.gmra.mxu0 %v338
      %v532 = vpop.f32.mrf.mxu0
      %v533 = vadd.f32 0.0, %v532
      %v534 = vpop.f32.mrf.mxu0
      %535 = vmatprep.mubr.f32.mxu0 0.0
      %536 = vmatmul.mubr.f32.gmra.mxu0 %v339
      %v537 = vpop.f32.mrf.mxu0
      %v538 = vadd.f32 0.0, %v537
      %v539 = vpop.f32.mrf.mxu0
      %540 = vmatprep.mubr.f32.mxu0 0.0
      %541 = vmatmul.mubr.f32.gmra.mxu0 %v340
      %v542 = vpop.f32.mrf.mxu0
      %v543 = vadd.f32 0.0, %v542
      %v544 = vpop.f32.mrf.mxu0
      %545 = vmatprep.mubr.f32.mxu0 0.0
      %546 = vmatmul.mubr.f32.gmra.mxu0 %v341
      %v547 = vpop.f32.mrf.mxu0
      %v548 = vadd.f32 0.0, %v547
      %v549 = vpop.f32.mrf.mxu0
      %550 = vmatprep.mubr.f32.mxu0 0.0
      %551 = vmatmul.mubr.f32.gmra.mxu0 %v342
      %v552 = vpop.f32.mrf.mxu0
      %v553 = vadd.f32 0.0, %v552
      %v554 = vpop.f32.mrf.mxu0
      %555 = vmatprep.mubr.f32.mxu0 0.0
      %556 = vmatmul.mubr.f32.gmra.mxu0 %v343
      %v557 = vpop.f32.mrf.mxu0
      %v558 = vadd.f32 0.0, %v557
      %v559 = vpop.f32.mrf.mxu0
      %560 = vmatprep.mubr.f32.mxu0 0.0
      %561 = vmatmul.mubr.f32.gmra.mxu0 %v344
      %v562 = vpop.f32.mrf.mxu0
      %v563 = vadd.f32 0.0, %v562
      %v564 = vpop.f32.mrf.mxu0
      %565 = vmatprep.mubr.f32.mxu0 0.0
      %566 = vmatmul.mubr.f32.gmra.mxu0 %v345
      %v567 = vpop.f32.mrf.mxu0
      %v568 = vadd.f32 0.0, %v567
      %v569 = vpop.f32.mrf.mxu0
      %570 = vmatprep.mubr.f32.mxu0 0.0
      %571 = vmatmul.mubr.f32.gmra.mxu0 %v346
      %v572 = vpop.f32.mrf.mxu0
      %v573 = vadd.f32 0.0, %v572
      %v574 = vpop.f32.mrf.mxu0
      %575 = vmatprep.mubr.f32.mxu0 0.0
      %576 = vmatmul.mubr.f32.gmra.mxu0 %v347
      %v577 = vpop.f32.mrf.mxu0
      %v578 = vadd.f32 0.0, %v577
      %v579 = vpop.f32.mrf.mxu0
      %580 = vmatprep.mubr.f32.mxu0 0.0
      %581 = vmatmul.mubr.f32.gmra.mxu0 %v348
      %v582 = vpop.f32.mrf.mxu0
      %v583 = vadd.f32 0.0, %v582
      %v584 = vpop.f32.mrf.mxu0
      %585 = vmatprep.mubr.f32.mxu0 0.0
      %586 = vmatmul.mubr.f32.gmra.mxu0 %v349
      %v587 = vpop.f32.mrf.mxu0
      %v588 = vadd.f32 0.0, %v587
      %v589 = vpop.f32.mrf.mxu0
      %590 = vdwg.mxu0
      %591 = vst [vmem:[%s206] sm:$0xff] %v433
      %592 = vst [vmem:[%s206 + $0x8] sm:$0xff] %v438
      %593 = vst [vmem:[%s206 + $0x10] sm:$0xff] %v443
      %594 = vst [vmem:[%s206 + $0x18] sm:$0xff] %v448
      %595 = vst [vmem:[%s206 + $0x20] sm:$0xff] %v453
      %596 = vst [vmem:[%s206 + $0x28] sm:$0xff] %v458
      %597 = vst [vmem:[%s206 + $0x30] sm:$0xff] %v463
      %598 = vst [vmem:[%s206 + $0x38] sm:$0xff] %v468
      %599 = vst [vmem:[%s206 + $0x40] sm:$0xff] %v473
      %600 = vst [vmem:[%s206 + $0x48] sm:$0xff] %v478
      %601 = vst [vmem:[%s206 + $0x50] sm:$0xff] %v483
      %602 = vst [vmem:[%s206 + $0x58] sm:$0xff] %v488
      %603 = vst [vmem:[%s206 + $0x60] sm:$0xff] %v493
      %604 = vst [vmem:[%s206 + $0x68] sm:$0xff] %v498
      %605 = vst [vmem:[%s206 + $0x70] sm:$0xff] %v503
      %606 = vst [vmem:[%s206 + $0x78] sm:$0xff] %v508
      %607 = vst [vmem:[%s206 + $0x80] sm:$0xff] %v513
      %608 = vst [vmem:[%s206 + $0x88] sm:$0xff] %v518
      %609 = vst [vmem:[%s206 + $0x90] sm:$0xff] %v523
      %610 = vst [vmem:[%s206 + $0x98] sm:$0xff] %v528
      %611 = vst [vmem:[%s206 + $0xa0] sm:$0xff] %v533
      %612 = vst [vmem:[%s206 + $0xa8] sm:$0xff] %v538
      %613 = vst [vmem:[%s206 + $0xb0] sm:$0xff] %v543
      %614 = vst [vmem:[%s206 + $0xb8] sm:$0xff] %v548
      %615 = vst [vmem:[%s206 + $0xc0] sm:$0xff] %v553
      %616 = vst [vmem:[%s206 + $0xc8] sm:$0xff] %v558
      %617 = vst [vmem:[%s206 + $0xd0] sm:$0xff] %v563
      %618 = vst [vmem:[%s206 + $0xd8] sm:$0xff] %v568
      %619 = vst [vmem:[%s206 + $0xe0] sm:$0xff] %v573
      %620 = vst [vmem:[%s206 + $0xe8] sm:$0xff] %v578
      %621 = vst [vmem:[%s206 + $0xf0] sm:$0xff] %v583
      %622 = vst [vmem:[%s206 + $0xf8] sm:$0xff] %v588
      %s623 = smul.u32 %s16, 256
      %s624 = ssub.s32 512, %s623
      %v625 = vlaneseq
      %v626 = vand.u32 %v625, 127
      %v627 = vadd.s32 %v626, 128
      %v628 = vstv %s624
      %vm629 = vcmp.lt.s32.totalorder %v626, %v628
      %vm630 = vcmp.lt.s32.totalorder %v627, %v628
      %v631 = vsel %vm629, 1, 0
      %v632 = vsel %vm630, 1, 0
      %v633 = vcvt.s32.f32 %v631
      %v634 = vcvt.s32.f32 %v632
      %635 = vmatprep.subr.mxu0 0.0
      %636 = vmatpush1.msra.mxu0 %v508
      %637 = vmatprep.subr.mxu0 0.0
      %638 = vmatpush1.msra.mxu0 %v503
      %639 = vmatprep.subr.mxu0 0.0
      %640 = vmatpush1.msra.mxu0 %v498
      %641 = vmatprep.subr.mxu0 0.0
      %642 = vmatpush1.msra.mxu0 %v493
      %643 = vmatprep.subr.mxu0 0.0
      %644 = vmatpush1.msra.mxu0 %v488
      %645 = vmatprep.subr.mxu0 0.0
      %646 = vmatpush1.msra.mxu0 %v483
      %647 = vmatprep.subr.mxu0 0.0
      %648 = vmatpush1.msra.mxu0 %v478
      %649 = vmatprep.subr.mxu0 0.0
      %650 = vmatpush1.msra.mxu0 %v473
      %651 = vmatprep.subr.mxu0 0.0
      %652 = vmatpush1.msra.mxu0 %v468
      %653 = vmatprep.subr.mxu0 0.0
      %654 = vmatpush1.msra.mxu0 %v463
      %655 = vmatprep.subr.mxu0 0.0
      %656 = vmatpush1.msra.mxu0 %v458
      %657 = vmatprep.subr.mxu0 0.0
      %658 = vmatpush1.msra.mxu0 %v453
      %659 = vmatprep.subr.mxu0 0.0
      %660 = vmatpush1.msra.mxu0 %v448
      %661 = vmatprep.subr.mxu0 0.0
      %662 = vmatpush1.msra.mxu0 %v443
      %663 = vmatprep.subr.mxu0 0.0
      %664 = vmatpush1.msra.mxu0 %v438
      %665 = vmatprep.subr.mxu0 0.0
      %666 = vmatpush1.msra.mxu0 %v433
      %667 = vmatprep.subr.mxu0 0.0
      %668 = vmatpush2.msra.mxu0 %v588
      %669 = vmatprep.subr.mxu0 0.0
      %670 = vmatpush2.msra.mxu0 %v583
      %671 = vmatprep.subr.mxu0 0.0
      %672 = vmatpush2.msra.mxu0 %v578
      %673 = vmatprep.subr.mxu0 0.0
      %674 = vmatpush2.msra.mxu0 %v573
      %675 = vmatprep.subr.mxu0 0.0
      %676 = vmatpush2.msra.mxu0 %v568
      %677 = vmatprep.subr.mxu0 0.0
      %678 = vmatpush2.msra.mxu0 %v563
      %679 = vmatprep.subr.mxu0 0.0
      %680 = vmatpush2.msra.mxu0 %v558
      %681 = vmatprep.subr.mxu0 0.0
      %682 = vmatpush2.msra.mxu0 %v553
      %683 = vmatprep.subr.mxu0 0.0
      %684 = vmatpush2.msra.mxu0 %v548
      %685 = vmatprep.subr.mxu0 0.0
      %686 = vmatpush2.msra.mxu0 %v543
      %687 = vmatprep.subr.mxu0 0.0
      %688 = vmatpush2.msra.mxu0 %v538
      %689 = vmatprep.subr.mxu0 0.0
      %690 = vmatpush2.msra.mxu0 %v533
      %691 = vmatprep.subr.mxu0 0.0
      %692 = vmatpush2.msra.mxu0 %v528
      %693 = vmatprep.subr.mxu0 0.0
      %694 = vmatpush2.msra.mxu0 %v523
      %695 = vmatprep.subr.mxu0 0.0
      %696 = vmatpush2.msra.mxu0 %v518
      %697 = vmatprep.subr.mxu0 0.0
      %698 = vmatpush2.msra.mxu0 %v513
      %699 = vmatprep.mubr.f32.mxu0 %v634
      %700 = vmatmul.mubr.f32.gmra.mxu0 %v633
      %v701 = vpop.f32.mrf.mxu0
      %v702 = vadd.f32 0.0, %v701
      %v703 = vpop.f32.mrf.mxu0
      %704 = vdwg.mxu0
      %705 = vst [vmem:[%s211] sm:$0x1] %v702
      %v706 = vmul.f32 %v433, %v433
      %v707 = vmul.f32 %v438, %v438
      %v708 = vmul.f32 %v443, %v443
      %v709 = vmul.f32 %v448, %v448
      %v710 = vmul.f32 %v453, %v453
      %v711 = vmul.f32 %v458, %v458
      %v712 = vmul.f32 %v463, %v463
      %v713 = vmul.f32 %v468, %v468
      %v714 = vmul.f32 %v473, %v473
      %v715 = vmul.f32 %v478, %v478
      %v716 = vmul.f32 %v483, %v483
      %v717 = vmul.f32 %v488, %v488
      %v718 = vmul.f32 %v493, %v493
      %v719 = vmul.f32 %v498, %v498
      %v720 = vmul.f32 %v503, %v503
      %v721 = vmul.f32 %v508, %v508
      %v722 = vmul.f32 %v513, %v513
      %v723 = vmul.f32 %v518, %v518
      %v724 = vmul.f32 %v523, %v523
      %v725 = vmul.f32 %v528, %v528
      %v726 = vmul.f32 %v533, %v533
      %v727 = vmul.f32 %v538, %v538
      %v728 = vmul.f32 %v543, %v543
      %v729 = vmul.f32 %v548, %v548
      %v730 = vmul.f32 %v553, %v553
      %v731 = vmul.f32 %v558, %v558
      %v732 = vmul.f32 %v563, %v563
      %v733 = vmul.f32 %v568, %v568
      %v734 = vmul.f32 %v573, %v573
      %v735 = vmul.f32 %v578, %v578
      %v736 = vmul.f32 %v583, %v583
      %v737 = vmul.f32 %v588, %v588
      %738 = vmatprep.subr.mxu0 0.0
      %739 = vmatpush1.msra.mxu0 %v721
      %740 = vmatprep.subr.mxu0 0.0
      %741 = vmatpush1.msra.mxu0 %v720
      %742 = vmatprep.subr.mxu0 0.0
      %743 = vmatpush1.msra.mxu0 %v719
      %744 = vmatprep.subr.mxu0 0.0
      %745 = vmatpush1.msra.mxu0 %v718
      %746 = vmatprep.subr.mxu0 0.0
      %747 = vmatpush1.msra.mxu0 %v717
      %748 = vmatprep.subr.mxu0 0.0
      %749 = vmatpush1.msra.mxu0 %v716
      %750 = vmatprep.subr.mxu0 0.0
      %751 = vmatpush1.msra.mxu0 %v715
      %752 = vmatprep.subr.mxu0 0.0
      %753 = vmatpush1.msra.mxu0 %v714
      %754 = vmatprep.subr.mxu0 0.0
      %755 = vmatpush1.msra.mxu0 %v713
      %756 = vmatprep.subr.mxu0 0.0
      %757 = vmatpush1.msra.mxu0 %v712
      %758 = vmatprep.subr.mxu0 0.0
      %759 = vmatpush1.msra.mxu0 %v711
      %760 = vmatprep.subr.mxu0 0.0
      %761 = vmatpush1.msra.mxu0 %v710
      %762 = vmatprep.subr.mxu0 0.0
      %763 = vmatpush1.msra.mxu0 %v709
      %764 = vmatprep.subr.mxu0 0.0
      %765 = vmatpush1.msra.mxu0 %v708
      %766 = vmatprep.subr.mxu0 0.0
      %767 = vmatpush1.msra.mxu0 %v707
      %768 = vmatprep.subr.mxu0 0.0
      %769 = vmatpush1.msra.mxu0 %v706
      %770 = vmatprep.subr.mxu0 0.0
      %771 = vmatpush2.msra.mxu0 %v737
      %772 = vmatprep.subr.mxu0 0.0
      %773 = vmatpush2.msra.mxu0 %v736
      %774 = vmatprep.subr.mxu0 0.0
      %775 = vmatpush2.msra.mxu0 %v735
      %776 = vmatprep.subr.mxu0 0.0
      %777 = vmatpush2.msra.mxu0 %v734
      %778 = vmatprep.subr.mxu0 0.0
      %779 = vmatpush2.msra.mxu0 %v733
      %780 = vmatprep.subr.mxu0 0.0
      %781 = vmatpush2.msra.mxu0 %v732
      %782 = vmatprep.subr.mxu0 0.0
      %783 = vmatpush2.msra.mxu0 %v731
      %784 = vmatprep.subr.mxu0 0.0
      %785 = vmatpush2.msra.mxu0 %v730
      %786 = vmatprep.subr.mxu0 0.0
      %787 = vmatpush2.msra.mxu0 %v729
      %788 = vmatprep.subr.mxu0 0.0
      %789 = vmatpush2.msra.mxu0 %v728
      %790 = vmatprep.subr.mxu0 0.0
      %791 = vmatpush2.msra.mxu0 %v727
      %792 = vmatprep.subr.mxu0 0.0
      %793 = vmatpush2.msra.mxu0 %v726
      %794 = vmatprep.subr.mxu0 0.0
      %795 = vmatpush2.msra.mxu0 %v725
      %796 = vmatprep.subr.mxu0 0.0
      %797 = vmatpush2.msra.mxu0 %v724
      %798 = vmatprep.subr.mxu0 0.0
      %799 = vmatpush2.msra.mxu0 %v723
      %800 = vmatprep.subr.mxu0 0.0
      %801 = vmatpush2.msra.mxu0 %v722
      %802 = vmatprep.mubr.f32.mxu0 %v634
      %803 = vmatmul.mubr.f32.gmra.mxu0 %v633
      %v804 = vpop.f32.mrf.mxu0
      %v805 = vadd.f32 0.0, %v804
      %v806 = vpop.f32.mrf.mxu0
      %807 = vdwg.mxu0
      %808 = vst [vmem:[%s211 + $0x1] sm:$0x1] %v805
      %s809 = smul.u32 32, %s16
      %p810 = scmp.lt.s32.totalorder %s809, 63
      %s811 = scalar_select %p810, %s809, 63
      %s812 = smul.addr %s811, 8
      %s813 = scalar_lea.vmem %s3, %s812
      %p814 = scmp.lt.s32.totalorder %s16, 1
      %s815 = scalar_select %p814, %s16, 1
      %s816 = smul.addr %s815, 2
      %s817 = scalar_lea.vmem %s4, %s816
      // Predicated region
      $region33: #{linear_bottleneck.8} parent=31 // pred_check
        %p818 = pneg %p102
      $region34: #{linear_bottleneck.8} parent=31 // pred_check_branch
        %820 = sbr.rel (%p818) target = $region36
      $region35: #{linear_bottleneck.8} parent=31 // pred_region
        %s821 = smul.u32 32, %s16
      $region36: #{linear_bottleneck.8} parent=31 // pred_fallthru
        _
      // Predicated region
      $region37: #{linear_bottleneck.8} parent=31 // pred_check
        %p822 = pneg %p128
      $region38: #{linear_bottleneck.8} parent=31 // pred_check_branch
        %824 = sbr.rel (%p822) target = $region40
      $region39: #{linear_bottleneck.8} parent=31 // pred_region
        _
      $region40: #{linear_bottleneck.8} parent=31 // pred_fallthru
        _
    $region32: #{linear_bottleneck.8} parent=5 // pred_fallthru
      _
    %p825 = scmp.le.s32.totalorder 2, %s11
    // Predicated region
    $region41: #{linear_bottleneck.8} parent=5 // pred_check
      %p826 = pneg %p825
    $region42: #{linear_bottleneck.8} parent=5 // pred_check_branch
      %828 = sbr.rel (%p826) target = $region44
    $region43: #{linear_bottleneck.8} parent=5 // pred_region
      %s829 = ssub.s32 %s11, 2
      // Predicated region
      $region45: #{linear_bottleneck.8} parent=43 // pred_check
        %p830 = pneg %p108
      $region46: #{linear_bottleneck.8} parent=43 // pred_check_branch
        %832 = sbr.rel (%p830) target = $region48
      $region47: #{linear_bottleneck.8} parent=43 // pred_region
        %s833 = smul.u32 32, %s17
        %p834 = scmp.lt.s32.totalorder %s833, 63
        %s835 = scalar_select %p834, %s833, 63
        %s836 = smul.addr %s835, 8
        %s837 = scalar_lea.vmem %s3, %s836
      $region48: #{linear_bottleneck.8} parent=43 // pred_fallthru
        _
      // Predicated region
      $region49: #{linear_bottleneck.8} parent=43 // pred_check
        %p838 = pneg %p134
      $region50: #{linear_bottleneck.8} parent=43 // pred_check_branch
        %840 = sbr.rel (%p838) target = $region52
      $region51: #{linear_bottleneck.8} parent=43 // pred_region
        %p841 = scmp.lt.s32.totalorder %s17, 1
        %s842 = scalar_select %p841, %s17, 1
        %s843 = smul.addr %s842, 2
        %s844 = scalar_lea.vmem %s4, %s843
      $region52: #{linear_bottleneck.8} parent=43 // pred_fallthru
        _
    $region44: #{linear_bottleneck.8} parent=5 // pred_fallthru
      _
  $region6: #{linear_bottleneck.8} parent=0 // loop_footer
    %s15 = sadd.s32 1, %s11
  $region7: #{linear_bottleneck.8} parent=0 // loop_footer_branch
    %10 = sbr.rel target = $region3
  $region8: #{linear_bottleneck.8} parent=0 // loop_exit
    _

</llo_original>
